<compile_context>
chip_gen: v5e
topology: v5e:2x2
jax: 0.10.0
libtpu: 0.0.40
codegen_flags: <defaults>
</compile_context>

<pallas_src>
import functools
import math

import jax
import jax.numpy as jnp
from jax import lax
from jax.experimental import pallas as pl
from jax.experimental.pallas import tpu as pltpu

LANE = 128


# ----------------------------- in-kernel helpers ------------------------------

def _softmax(x, axis=-1):
    m = jnp.max(x, axis=axis, keepdims=True)
    e = jnp.exp(x - m)
    s = jnp.sum(e, axis=axis, keepdims=True)
    return e * pl.reciprocal(s, approx=True)              # divide on the EUP slot


def _layernorm(h, g, b, eps=1e-5):
    mu = jnp.mean(h, axis=-1, keepdims=True)
    var = jnp.mean(jnp.square(h - mu), axis=-1, keepdims=True)
    return (h - mu) * lax.rsqrt(var + eps) * g + b


def _tokenizer(xr, wc, bc, wa, ba, *, Tp, stride):
    """Conv2d(1, D, (1,K), stride=(1,stride)) + ChannelAttention for ONE sample.

    xr: (C, stride, Tq) lane-dense time-folded signal, wc: (K, D), bc: (1, D),
    wa: (C, C), ba: (C, 1).  Returns (Tp, D) tokens.
    """
    C = xr.shape[0]
    K, D = wc.shape
    y = jnp.zeros((C, Tp, D), jnp.float32)
    for j in range(K):                                     # K small; lane-dense taps
        tap = xr[:, j % stride, j // stride:j // stride + Tp]        # (C, Tp)
        y = y + tap[:, :, None] * wc[j][None, None, :]
    y = y + bc[:, None, :]                                           # (C, Tp, D)

    # ChannelAttention: softmax(Linear(mean over time)) over sensor channels.
    m = jnp.mean(y, axis=1)                                          # (C, D)
    logits = jnp.dot(wa, m, preferred_element_type=jnp.float32) + ba
    a = _softmax(logits, axis=0)
    # TODO(synk): the reference keeps a 4-D (D, C, T') tensor that cannot feed
    # the downstream permute/cat; collapse the sensor-channel axis by mean.
    return jnp.mean(y * a[:, None, :], axis=0)                       # (Tp, D)


# ------------------------- fused forward (one kernel) --------------------------

def fused_forward_kernel(
        eeg_ref, fnirs_ref, mask_ref,
        wce_ref, bce_ref, wae_ref, bae_ref,
        wcf_ref, bcf_ref, waf_ref, baf_ref,
        fw_ref, fb_ref, pe_ref,
        wq_ref, bq_ref, wk_ref, bk_ref, wv_ref, bv_ref, wo_ref, bo_ref,
        g1_ref, be1_ref, w1_ref, b1_ref, w2_ref, b2_ref, g2_ref, be2_ref,
        fcw_ref, fcb_ref,
        out_ref, *, num_heads):
    f32, bf16 = jnp.float32, jnp.bfloat16
    BB = eeg_ref.shape[0]                      # samples in this grid block
    stride = eeg_ref.shape[2]
    S, D = pe_ref.shape
    Tp = S // 2
    L = wq_ref.shape[0]
    hd = D // num_heads
    scale = 1.0 / math.sqrt(hd)

    # ---- tokenizers + fusion Conv1d(k=3, pad=1) + positional encoding --------
    wce, bce, wae, bae = wce_ref[...], bce_ref[...], wae_ref[...], bae_ref[...]
    wcf, bcf, waf, baf = wcf_ref[...], bcf_ref[...], waf_ref[...], baf_ref[...]
    pe_plus_bias = pe_ref[...] + fb_ref[...]               # hoisted once
    zrow = jnp.zeros((1, D), f32)

    xb_list = []
    for b in range(BB):                                    # small static per-sample loop
        te = _tokenizer(eeg_ref[b], wce, bce, wae, bae, Tp=Tp, stride=stride)
        tf_ = _tokenizer(fnirs_ref[b], wcf, bcf, waf, baf, Tp=Tp, stride=stride)
        # zero-halo padded token sequence, built in registers (no scratch store).
        xpad = jnp.concatenate([zrow, te, tf_, zrow], axis=0).astype(bf16)
        xb = pe_plus_bias
        for j in range(3):                                 # 'same' conv = 3 shifted dots
            xb = xb + jnp.dot(xpad[j:j + S, :], fw_ref[j],
                              preferred_element_type=f32)
        xb_list.append(xb)
    x = jnp.concatenate(xb_list, axis=0) if BB > 1 else xb_list[0]   # (BB*S, D)

    mask = mask_ref[...]                                   # (BB*S, BB*S) 0 / -1e30

    # ---- transformer encoder layers (post-LN, ReLU FFN, eval-mode dropout) ----
    # TODO(synk): nn.TransformerEncoder default is seq-first; the intended
    # batch-first per-sample attention is implemented (cross-sample blocks masked).
    def layer(l, x):
        xh = x.astype(bf16)
        q = jnp.dot(xh, wq_ref[l], preferred_element_type=f32) + bq_ref[l]
        k = jnp.dot(xh, wk_ref[l], preferred_element_type=f32) + bk_ref[l]
        v = jnp.dot(xh, wv_ref[l], preferred_element_type=f32) + bv_ref[l]
        heads = []
        for h in range(num_heads):                         # heads = lane slices
            sl = slice(h * hd, (h + 1) * hd)
            sc = lax.dot_general(q[:, sl].astype(bf16), k[:, sl].astype(bf16),
                                 (((1,), (1,)), ((), ())),
                                 preferred_element_type=f32) * scale
            pr = _softmax(sc + mask, axis=-1)
            heads.append(jnp.dot(pr.astype(bf16), v[:, sl].astype(bf16),
                                 preferred_element_type=f32))
        cat = jnp.concatenate(heads, axis=-1).astype(bf16)             # (BB*S, D)
        attn = jnp.dot(cat, wo_ref[l], preferred_element_type=f32) + bo_ref[l]
        h1 = _layernorm(x + attn, g1_ref[l], be1_ref[l])
        ff = jnp.dot(h1.astype(bf16), w1_ref[l], preferred_element_type=f32) + b1_ref[l]
        ff = jnp.maximum(ff, 0.0)
        ff = jnp.dot(ff.astype(bf16), w2_ref[l], preferred_element_type=f32) + b2_ref[l]
        return _layernorm(h1 + ff, g2_ref[l], be2_ref[l])

    x = lax.fori_loop(0, L, layer, x)                      # per-layer weight reads inside

    # ---- classifier: Linear(S*D, Cn) + LogSoftmax, fully lane-dense ----------
    # TODO(synk): TransformerClassifier is constructed with a missing positional
    # argument in the reference; num_segments is taken as the fused token count S.
    Cn_pad = fcb_ref.shape[1]
    logits = jnp.zeros((BB, Cn_pad), f32) + fcb_ref[...]
    for s in range(S):                                     # contract token s across block
        if BB > 1:
            rows = jnp.concatenate(
                [x[b * S + s:b * S + s + 1, :] for b in range(BB)], axis=0)
        else:
            rows = x[s:s + 1, :]
        logits = logits + jnp.dot(rows, fcw_ref[s], preferred_element_type=f32)
    m = jnp.max(logits, axis=-1, keepdims=True)
    lse = m + jnp.log(jnp.sum(jnp.exp(logits - m), axis=-1, keepdims=True))
    out_ref[...] = logits - lse                            # (BB, Cn_pad) log-probs


# ------------------------------- wrapper / glue --------------------------------

def _fold_time(x, stride):
    """(B, C, T) -> (B, C, stride, ceil(T/stride)) with time on the LANE axis so
    the kernel reads each conv tap as a lane-dense, contiguous slice."""
    B, C, T = x.shape
    if T % stride:
        x = jnp.pad(x, ((0, 0), (0, 0), (0, stride - T % stride)))
    Tq = x.shape[2] // stride
    return x.reshape(B, C, Tq, stride).swapaxes(-1, -2)    # (B, C, stride, Tq)


def eeg_fnirs_forward(eeg, fnirs, params, *, stride, num_classes, num_heads,
                      block_b=None):
    B = eeg.shape[0]
    S, _ = params["pe"].shape
    Cn_pad = params["fc_b"].shape[1]
    if block_b is None:
        block_b = B                        # whole batch per step at demo sizes
    assert B % block_b == 0
    # NOTE: for block_b < B keep block_b a multiple of 8 (sublane tiling of out).
    grid = (B // block_b,)
    BS = block_b * S

    eeg_f = _fold_time(eeg, stride)
    fnirs_f = _fold_time(fnirs, stride)

    # Block-diagonal attention bias: tokens attend only within their own sample.
    sid = jnp.repeat(jnp.arange(block_b, dtype=jnp.int32), S)
    mask_bias = jnp.where(sid[:, None] == sid[None, :], 0.0, -1e30
                          ).astype(jnp.float32)            # (BS, BS)

    def full(a):                           # weight resident across all grid steps
        return pl.BlockSpec(a.shape, lambda i, _nd=a.ndim: (0,) * _nd)

    weights = (
        *params["eeg_tok"], *params["fnirs_tok"],
        params["fusion_w"], params["fusion_b"], params["pe"],
        params["wq"], params["bq"], params["wk"], params["bk"],
        params["wv"], params["bv"], params["wo"], params["bo"],
        params["g1"], params["be1"], params["w1"], params["b1"],
        params["w2"], params["b2"], params["g2"], params["be2"],
        params["fc_w"], params["fc_b"],
    )
    in_specs = [
        pl.BlockSpec((block_b,) + eeg_f.shape[1:], lambda i: (i, 0, 0, 0)),
        pl.BlockSpec((block_b,) + fnirs_f.shape[1:], lambda i: (i, 0, 0, 0)),
        full(mask_bias),
        *[full(w) for w in weights],
    ]
    out_spec = pl.BlockSpec((block_b, Cn_pad), lambda i: (i, 0))

    kernel = functools.partial(fused_forward_kernel, num_heads=num_heads)
    out_pad = pl.pallas_call(
        kernel,
        out_shape=jax.ShapeDtypeStruct((B, Cn_pad), jnp.float32),
        grid=grid,
        in_specs=in_specs,
        out_specs=out_spec,
        compiler_params=pltpu.CompilerParams(
            dimension_semantics=("parallel",),             # shards batch blocks on v7x
            vmem_limit_bytes=32 * 1024 * 1024,
        ),
    )(eeg_f, fnirs_f, mask_bias, *weights)
    return out_pad[:, :num_classes]                        # drop lane padding


# ------------------------------ parameter setup --------------------------------

def positional_encoding(S, D):
    pos = jnp.arange(S, dtype=jnp.float32)[:, None]
    div = jnp.exp(jnp.arange(0, D, 2, dtype=jnp.float32) * (-jnp.log(10000.0) / D))
    pe = jnp.zeros((S, D), jnp.float32)
    pe = pe.at[:, 0::2].set(jnp.sin(pos * div))
    pe = pe.at[:, 1::2].set(jnp.cos(pos * div))
    return pe


def init_params(key, *, C_e, C_f, T, D, dff, num_layers, num_heads, num_classes,
                kernel_size, stride):
    Tp = (T - kernel_size) // stride + 1
    S = 2 * Tp
    Cn_pad = ((num_classes + LANE - 1) // LANE) * LANE
    keys = iter(jax.random.split(key, 64))
    bf = lambda a: a.astype(jnp.bfloat16)                  # bf16 MXU operands

    def rnd(shape, scale=0.1):
        return jax.random.normal(next(keys), shape, jnp.float32) * scale

    def tok_params(C):                                     # conv w/b, attn w/b
        return (rnd((kernel_size, D)), rnd((1, D)), rnd((C, C)), rnd((C, 1)))

    def stack(shape):
        return rnd((num_layers,) + shape)

    fc_w = rnd((S, D, num_classes))                        # (s, d) flatten order
    fc_b = rnd((1, num_classes))

    return dict(
        eeg_tok=tok_params(C_e),
        fnirs_tok=tok_params(C_f),
        fusion_w=bf(rnd((3, D, D))),                       # (tap, D_in, D_out)
        fusion_b=rnd((1, D)),
        pe=positional_encoding(S, D),
        wq=bf(stack((D, D))), bq=stack((1, D)),
        wk=bf(stack((D, D))), bk=stack((1, D)),
        wv=bf(stack((D, D))), bv=stack((1, D)),
        wo=bf(stack((D, D))), bo=stack((1, D)),
        g1=jnp.ones((num_layers, 1, D), jnp.float32),
        be1=jnp.zeros((num_layers, 1, D), jnp.float32),
        w1=bf(stack((D, dff))), b1=stack((1, dff)),
        w2=bf(stack((dff, D))), b2=stack((1, D)),
        g2=jnp.ones((num_layers, 1, D), jnp.float32),
        be2=jnp.zeros((num_layers, 1, D), jnp.float32),
        # lane-dense classifier: zero-pad weights, -1e30-pad bias (kept in f32)
        # so padded logits vanish under log-softmax; the wrapper slices them off.
        fc_w=jnp.pad(fc_w, ((0, 0), (0, 0), (0, Cn_pad - num_classes))),
        fc_b=jnp.pad(fc_b, ((0, 0), (0, Cn_pad - num_classes)),
                     constant_values=-1e30),
    )


# ----------------------------------- main ---------------------------------------

if __name__ == "__main__":
    key = jax.random.PRNGKey(0)
    B, C_e, C_f, T = 2, 4, 3, 16
    D, H, L, dff, num_classes = 32, 4, 2, 128, 2
    K, stride = 5, 2

    k_e, k_f, k_p = jax.random.split(key, 3)
    eeg = jax.random.normal(k_e, (B, C_e, T), jnp.float32)
    fnirs = jax.random.normal(k_f, (B, C_f, T), jnp.float32)
    params = init_params(k_p, C_e=C_e, C_f=C_f, T=T, D=D, dff=dff,
                         num_layers=L, num_heads=H, num_classes=num_classes,
                         kernel_size=K, stride=stride)

    out = eeg_fnirs_forward(eeg, fnirs, params, stride=stride,
                            num_classes=num_classes, num_heads=H)
    out = jax.block_until_ready(out)
    assert out.shape == (B, num_classes)
    assert bool(jnp.all(jnp.isfinite(out)))
    print("KERNEL_OK")
</pallas_src>

<mosaic_0001>
module attributes {stable_mosaic.version = 11 : i64} {
  func.func @fused_forward_kernel(%arg0: i32, %arg1: memref<2x4x2x8xf32, #tpu.memory_space<vmem>>, %arg2: memref<2x3x2x8xf32, #tpu.memory_space<vmem>>, %arg3: memref<24x24xf32, #tpu.memory_space<vmem>>, %arg4: memref<5x32xf32, #tpu.memory_space<vmem>>, %arg5: memref<1x32xf32, #tpu.memory_space<vmem>>, %arg6: memref<4x4xf32, #tpu.memory_space<vmem>>, %arg7: memref<4x1xf32, #tpu.memory_space<vmem>>, %arg8: memref<5x32xf32, #tpu.memory_space<vmem>>, %arg9: memref<1x32xf32, #tpu.memory_space<vmem>>, %arg10: memref<3x3xf32, #tpu.memory_space<vmem>>, %arg11: memref<3x1xf32, #tpu.memory_space<vmem>>, %arg12: memref<3x32x32xbf16, #tpu.memory_space<vmem>>, %arg13: memref<1x32xf32, #tpu.memory_space<vmem>>, %arg14: memref<12x32xf32, #tpu.memory_space<vmem>>, %arg15: memref<2x32x32xbf16, #tpu.memory_space<vmem>>, %arg16: memref<2x1x32xf32, #tpu.memory_space<vmem>>, %arg17: memref<2x32x32xbf16, #tpu.memory_space<vmem>>, %arg18: memref<2x1x32xf32, #tpu.memory_space<vmem>>, %arg19: memref<2x32x32xbf16, #tpu.memory_space<vmem>>, %arg20: memref<2x1x32xf32, #tpu.memory_space<vmem>>, %arg21: memref<2x32x32xbf16, #tpu.memory_space<vmem>>, %arg22: memref<2x1x32xf32, #tpu.memory_space<vmem>>, %arg23: memref<2x1x32xf32, #tpu.memory_space<vmem>>, %arg24: memref<2x1x32xf32, #tpu.memory_space<vmem>>, %arg25: memref<2x32x128xbf16, #tpu.memory_space<vmem>>, %arg26: memref<2x1x128xf32, #tpu.memory_space<vmem>>, %arg27: memref<2x128x32xbf16, #tpu.memory_space<vmem>>, %arg28: memref<2x1x32xf32, #tpu.memory_space<vmem>>, %arg29: memref<2x1x32xf32, #tpu.memory_space<vmem>>, %arg30: memref<2x1x32xf32, #tpu.memory_space<vmem>>, %arg31: memref<12x32x128xf32, #tpu.memory_space<vmem>>, %arg32: memref<1x128xf32, #tpu.memory_space<vmem>>, %arg33: memref<2x128xf32, #tpu.memory_space<vmem>>) attributes {dimension_semantics = [#tpu.dimension_semantics<parallel>], iteration_bounds = array<i64: 1>, scalar_prefetch = 0 : i64, scratch_operands = 0 : i64, tpu.core_type = #tpu.core_type<tc>, window_params = [{transform_indices = @transform_0, window_bounds = array<i64: 2, 4, 2, 8>}, {transform_indices = @transform_1, window_bounds = array<i64: 2, 3, 2, 8>}, {pipeline_mode = #tpu.pipeline_mode<synchronous>, transform_indices = @transform_2, window_bounds = array<i64: 24, 24>}, {pipeline_mode = #tpu.pipeline_mode<synchronous>, transform_indices = @transform_3, window_bounds = array<i64: 5, 32>}, {pipeline_mode = #tpu.pipeline_mode<synchronous>, transform_indices = @transform_4, window_bounds = array<i64: 1, 32>}, {pipeline_mode = #tpu.pipeline_mode<synchronous>, transform_indices = @transform_5, window_bounds = array<i64: 4, 4>}, {pipeline_mode = #tpu.pipeline_mode<synchronous>, transform_indices = @transform_6, window_bounds = array<i64: 4, 1>}, {pipeline_mode = #tpu.pipeline_mode<synchronous>, transform_indices = @transform_7, window_bounds = array<i64: 5, 32>}, {pipeline_mode = #tpu.pipeline_mode<synchronous>, transform_indices = @transform_8, window_bounds = array<i64: 1, 32>}, {pipeline_mode = #tpu.pipeline_mode<synchronous>, transform_indices = @transform_9, window_bounds = array<i64: 3, 3>}, {pipeline_mode = #tpu.pipeline_mode<synchronous>, transform_indices = @transform_10, window_bounds = array<i64: 3, 1>}, {pipeline_mode = #tpu.pipeline_mode<synchronous>, transform_indices = @transform_11, window_bounds = array<i64: 3, 32, 32>}, {pipeline_mode = #tpu.pipeline_mode<synchronous>, transform_indices = @transform_12, window_bounds = array<i64: 1, 32>}, {pipeline_mode = #tpu.pipeline_mode<synchronous>, transform_indices = @transform_13, window_bounds = array<i64: 12, 32>}, {pipeline_mode = #tpu.pipeline_mode<synchronous>, transform_indices = @transform_14, window_bounds = array<i64: 2, 32, 32>}, {pipeline_mode = #tpu.pipeline_mode<synchronous>, transform_indices = @transform_15, window_bounds = array<i64: 2, 1, 32>}, {pipeline_mode = #tpu.pipeline_mode<synchronous>, transform_indices = @transform_16, window_bounds = array<i64: 2, 32, 32>}, {pipeline_mode = #tpu.pipeline_mode<synchronous>, transform_indices = @transform_17, window_bounds = array<i64: 2, 1, 32>}, {pipeline_mode = #tpu.pipeline_mode<synchronous>, transform_indices = @transform_18, window_bounds = array<i64: 2, 32, 32>}, {pipeline_mode = #tpu.pipeline_mode<synchronous>, transform_indices = @transform_19, window_bounds = array<i64: 2, 1, 32>}, {pipeline_mode = #tpu.pipeline_mode<synchronous>, transform_indices = @transform_20, window_bounds = array<i64: 2, 32, 32>}, {pipeline_mode = #tpu.pipeline_mode<synchronous>, transform_indices = @transform_21, window_bounds = array<i64: 2, 1, 32>}, {pipeline_mode = #tpu.pipeline_mode<synchronous>, transform_indices = @transform_22, window_bounds = array<i64: 2, 1, 32>}, {pipeline_mode = #tpu.pipeline_mode<synchronous>, transform_indices = @transform_23, window_bounds = array<i64: 2, 1, 32>}, {pipeline_mode = #tpu.pipeline_mode<synchronous>, transform_indices = @transform_24, window_bounds = array<i64: 2, 32, 128>}, {pipeline_mode = #tpu.pipeline_mode<synchronous>, transform_indices = @transform_25, window_bounds = array<i64: 2, 1, 128>}, {pipeline_mode = #tpu.pipeline_mode<synchronous>, transform_indices = @transform_26, window_bounds = array<i64: 2, 128, 32>}, {pipeline_mode = #tpu.pipeline_mode<synchronous>, transform_indices = @transform_27, window_bounds = array<i64: 2, 1, 32>}, {pipeline_mode = #tpu.pipeline_mode<synchronous>, transform_indices = @transform_28, window_bounds = array<i64: 2, 1, 32>}, {pipeline_mode = #tpu.pipeline_mode<synchronous>, transform_indices = @transform_29, window_bounds = array<i64: 2, 1, 32>}, {pipeline_mode = #tpu.pipeline_mode<synchronous>, transform_indices = @transform_30, window_bounds = array<i64: 12, 32, 128>}, {pipeline_mode = #tpu.pipeline_mode<synchronous>, transform_indices = @transform_31, window_bounds = array<i64: 1, 128>}, {transform_indices = @transform_32, window_bounds = array<i64: 2, 128>}]} {
    %c0 = arith.constant 0 : index
    %c0_0 = arith.constant 0 : index
    %0 = vector.load %arg4[%c0, %c0_0] : memref<5x32xf32, #tpu.memory_space<vmem>>, vector<5x32xf32>
    %c0_1 = arith.constant 0 : index
    %c0_2 = arith.constant 0 : index
    %1 = vector.load %arg5[%c0_1, %c0_2] : memref<1x32xf32, #tpu.memory_space<vmem>>, vector<1x32xf32>
    %c0_3 = arith.constant 0 : index
    %c0_4 = arith.constant 0 : index
    %2 = vector.load %arg6[%c0_3, %c0_4] : memref<4x4xf32, #tpu.memory_space<vmem>>, vector<4x4xf32>
    %c0_5 = arith.constant 0 : index
    %c0_6 = arith.constant 0 : index
    %3 = vector.load %arg7[%c0_5, %c0_6] : memref<4x1xf32, #tpu.memory_space<vmem>>, vector<4x1xf32>
    %c0_7 = arith.constant 0 : index
    %c0_8 = arith.constant 0 : index
    %4 = vector.load %arg8[%c0_7, %c0_8] : memref<5x32xf32, #tpu.memory_space<vmem>>, vector<5x32xf32>
    %c0_9 = arith.constant 0 : index
    %c0_10 = arith.constant 0 : index
    %5 = vector.load %arg9[%c0_9, %c0_10] : memref<1x32xf32, #tpu.memory_space<vmem>>, vector<1x32xf32>
    %c0_11 = arith.constant 0 : index
    %c0_12 = arith.constant 0 : index
    %6 = vector.load %arg10[%c0_11, %c0_12] : memref<3x3xf32, #tpu.memory_space<vmem>>, vector<3x3xf32>
    %c0_13 = arith.constant 0 : index
    %c0_14 = arith.constant 0 : index
    %7 = vector.load %arg11[%c0_13, %c0_14] : memref<3x1xf32, #tpu.memory_space<vmem>>, vector<3x1xf32>
    %c0_15 = arith.constant 0 : index
    %c0_16 = arith.constant 0 : index
    %8 = vector.load %arg14[%c0_15, %c0_16] : memref<12x32xf32, #tpu.memory_space<vmem>>, vector<12x32xf32>
    %c0_17 = arith.constant 0 : index
    %c0_18 = arith.constant 0 : index
    %9 = vector.load %arg13[%c0_17, %c0_18] : memref<1x32xf32, #tpu.memory_space<vmem>>, vector<1x32xf32>
    %10 = vector.broadcast %9 : vector<1x32xf32> to vector<12x32xf32>
    %11 = arith.addf %8, %10 : vector<12x32xf32>
    %cst = arith.constant 0.000000e+00 : f32
    %12 = vector.broadcast %cst : f32 to vector<1x32xf32>
    %c0_19 = arith.constant 0 : index
    %c0_20 = arith.constant 0 : index
    %c0_21 = arith.constant 0 : index
    %c0_22 = arith.constant 0 : index
    %13 = vector.load %arg1[%c0_19, %c0_20, %c0_21, %c0_22] : memref<2x4x2x8xf32, #tpu.memory_space<vmem>>, vector<1x4x2x8xf32>
    %14 = vector.shape_cast %13 : vector<1x4x2x8xf32> to vector<4x2x8xf32>
    %cst_23 = arith.constant 0.000000e+00 : f32
    %15 = vector.broadcast %cst_23 : f32 to vector<4x6x32xf32>
    %16 = vector.extract_strided_slice %14 {offsets = [0, 0, 0], sizes = [4, 1, 6], strides = [1, 1, 1]} : vector<4x2x8xf32> to vector<4x1x6xf32>
    %17 = vector.shape_cast %16 : vector<4x1x6xf32> to vector<4x6xf32>
    %18 = vector.shape_cast %17 : vector<4x6xf32> to vector<4x6x1xf32>
    %19 = vector.extract_strided_slice %0 {offsets = [0, 0], sizes = [1, 32], strides = [1, 1]} : vector<5x32xf32> to vector<1x32xf32>
    %20 = vector.shape_cast %19 : vector<1x32xf32> to vector<32xf32>
    %21 = vector.shape_cast %20 : vector<32xf32> to vector<1x1x32xf32>
    %22 = vector.broadcast %18 : vector<4x6x1xf32> to vector<4x6x32xf32>
    %23 = vector.broadcast %21 : vector<1x1x32xf32> to vector<4x6x32xf32>
    %24 = arith.mulf %22, %23 : vector<4x6x32xf32>
    %25 = arith.addf %15, %24 : vector<4x6x32xf32>
    %26 = vector.extract_strided_slice %14 {offsets = [0, 1, 0], sizes = [4, 1, 6], strides = [1, 1, 1]} : vector<4x2x8xf32> to vector<4x1x6xf32>
    %27 = vector.shape_cast %26 : vector<4x1x6xf32> to vector<4x6xf32>
    %28 = vector.shape_cast %27 : vector<4x6xf32> to vector<4x6x1xf32>
    %29 = vector.extract_strided_slice %0 {offsets = [1, 0], sizes = [1, 32], strides = [1, 1]} : vector<5x32xf32> to vector<1x32xf32>
    %30 = vector.shape_cast %29 : vector<1x32xf32> to vector<32xf32>
    %31 = vector.shape_cast %30 : vector<32xf32> to vector<1x1x32xf32>
    %32 = vector.broadcast %28 : vector<4x6x1xf32> to vector<4x6x32xf32>
    %33 = vector.broadcast %31 : vector<1x1x32xf32> to vector<4x6x32xf32>
    %34 = arith.mulf %32, %33 : vector<4x6x32xf32>
    %35 = arith.addf %25, %34 : vector<4x6x32xf32>
    %36 = vector.extract_strided_slice %14 {offsets = [0, 0, 1], sizes = [4, 1, 6], strides = [1, 1, 1]} : vector<4x2x8xf32> to vector<4x1x6xf32>
    %37 = vector.shape_cast %36 : vector<4x1x6xf32> to vector<4x6xf32>
    %38 = vector.shape_cast %37 : vector<4x6xf32> to vector<4x6x1xf32>
    %39 = vector.extract_strided_slice %0 {offsets = [2, 0], sizes = [1, 32], strides = [1, 1]} : vector<5x32xf32> to vector<1x32xf32>
    %40 = vector.shape_cast %39 : vector<1x32xf32> to vector<32xf32>
    %41 = vector.shape_cast %40 : vector<32xf32> to vector<1x1x32xf32>
    %42 = vector.broadcast %38 : vector<4x6x1xf32> to vector<4x6x32xf32>
    %43 = vector.broadcast %41 : vector<1x1x32xf32> to vector<4x6x32xf32>
    %44 = arith.mulf %42, %43 : vector<4x6x32xf32>
    %45 = arith.addf %35, %44 : vector<4x6x32xf32>
    %46 = vector.extract_strided_slice %14 {offsets = [0, 1, 1], sizes = [4, 1, 6], strides = [1, 1, 1]} : vector<4x2x8xf32> to vector<4x1x6xf32>
    %47 = vector.shape_cast %46 : vector<4x1x6xf32> to vector<4x6xf32>
    %48 = vector.shape_cast %47 : vector<4x6xf32> to vector<4x6x1xf32>
    %49 = vector.extract_strided_slice %0 {offsets = [3, 0], sizes = [1, 32], strides = [1, 1]} : vector<5x32xf32> to vector<1x32xf32>
    %50 = vector.shape_cast %49 : vector<1x32xf32> to vector<32xf32>
    %51 = vector.shape_cast %50 : vector<32xf32> to vector<1x1x32xf32>
    %52 = vector.broadcast %48 : vector<4x6x1xf32> to vector<4x6x32xf32>
    %53 = vector.broadcast %51 : vector<1x1x32xf32> to vector<4x6x32xf32>
    %54 = arith.mulf %52, %53 : vector<4x6x32xf32>
    %55 = arith.addf %45, %54 : vector<4x6x32xf32>
    %56 = vector.extract_strided_slice %14 {offsets = [0, 0, 2], sizes = [4, 1, 6], strides = [1, 1, 1]} : vector<4x2x8xf32> to vector<4x1x6xf32>
    %57 = vector.shape_cast %56 : vector<4x1x6xf32> to vector<4x6xf32>
    %58 = vector.shape_cast %57 : vector<4x6xf32> to vector<4x6x1xf32>
    %59 = vector.extract_strided_slice %0 {offsets = [4, 0], sizes = [1, 32], strides = [1, 1]} : vector<5x32xf32> to vector<1x32xf32>
    %60 = vector.shape_cast %59 : vector<1x32xf32> to vector<32xf32>
    %61 = vector.shape_cast %60 : vector<32xf32> to vector<1x1x32xf32>
    %62 = vector.broadcast %58 : vector<4x6x1xf32> to vector<4x6x32xf32>
    %63 = vector.broadcast %61 : vector<1x1x32xf32> to vector<4x6x32xf32>
    %64 = arith.mulf %62, %63 : vector<4x6x32xf32>
    %65 = arith.addf %55, %64 : vector<4x6x32xf32>
    %66 = vector.shape_cast %1 : vector<1x32xf32> to vector<1x1x32xf32>
    %67 = vector.broadcast %66 : vector<1x1x32xf32> to vector<4x6x32xf32>
    %68 = arith.addf %65, %67 : vector<4x6x32xf32>
    %cst_24 = arith.constant dense<0.000000e+00> : vector<4x32xf32>
    %69 = vector.multi_reduction <add>, %68, %cst_24 [1] : vector<4x6x32xf32> to vector<4x32xf32>
    %cst_25 = arith.constant 6.000000e+00 : f32
    %70 = vector.broadcast %cst_25 : f32 to vector<4x32xf32>
    %71 = arith.divf %69, %70 : vector<4x32xf32>
    %cst_26 = arith.constant dense<0.000000e+00> : vector<4x32xf32>
    %72 = tpu.matmul %2, %71, %cst_26 {dimension_numbers = #tpu.dot_dimension_numbers<[1], [0], [0], [1], [0, 0, 1, 1], [], []>} : vector<4x4xf32>, vector<4x32xf32>, vector<4x32xf32> -> vector<4x32xf32>
    %73 = vector.broadcast %3 : vector<4x1xf32> to vector<4x32xf32>
    %74 = arith.addf %72, %73 : vector<4x32xf32>
    %cst_27 = arith.constant dense<0xFF800000> : vector<32xf32>
    %75 = vector.multi_reduction <maximumf>, %74, %cst_27 [0] : vector<4x32xf32> to vector<32xf32>
    %76 = vector.shape_cast %75 : vector<32xf32> to vector<1x32xf32>
    %77 = vector.broadcast %76 : vector<1x32xf32> to vector<4x32xf32>
    %78 = arith.subf %74, %77 : vector<4x32xf32>
    %79 = math.exp %78 : vector<4x32xf32>
    %cst_28 = arith.constant dense<0.000000e+00> : vector<32xf32>
    %80 = vector.multi_reduction <add>, %79, %cst_28 [0] : vector<4x32xf32> to vector<32xf32>
    %81 = vector.shape_cast %80 : vector<32xf32> to vector<1x32xf32>
    %82 = tpu.reciprocal %81 {approx = true} : vector<1x32xf32> -> vector<1x32xf32>
    %83 = vector.broadcast %82 : vector<1x32xf32> to vector<4x32xf32>
    %84 = arith.mulf %79, %83 : vector<4x32xf32>
    %85 = vector.shape_cast %84 : vector<4x32xf32> to vector<4x1x32xf32>
    %86 = vector.broadcast %85 : vector<4x1x32xf32> to vector<4x6x32xf32>
    %87 = arith.mulf %68, %86 : vector<4x6x32xf32>
    %cst_29 = arith.constant dense<0.000000e+00> : vector<6x32xf32>
    %88 = vector.multi_reduction <add>, %87, %cst_29 [0] : vector<4x6x32xf32> to vector<6x32xf32>
    %cst_30 = arith.constant 4.000000e+00 : f32
    %89 = vector.broadcast %cst_30 : f32 to vector<6x32xf32>
    %90 = arith.divf %88, %89 : vector<6x32xf32>
    %c0_31 = arith.constant 0 : index
    %c0_32 = arith.constant 0 : index
    %c0_33 = arith.constant 0 : index
    %c0_34 = arith.constant 0 : index
    %91 = vector.load %arg2[%c0_31, %c0_32, %c0_33, %c0_34] : memref<2x3x2x8xf32, #tpu.memory_space<vmem>>, vector<1x3x2x8xf32>
    %92 = vector.shape_cast %91 : vector<1x3x2x8xf32> to vector<3x2x8xf32>
    %cst_35 = arith.constant 0.000000e+00 : f32
    %93 = vector.broadcast %cst_35 : f32 to vector<3x6x32xf32>
    %94 = vector.extract_strided_slice %92 {offsets = [0, 0, 0], sizes = [3, 1, 6], strides = [1, 1, 1]} : vector<3x2x8xf32> to vector<3x1x6xf32>
    %95 = vector.shape_cast %94 : vector<3x1x6xf32> to vector<3x6xf32>
    %96 = vector.shape_cast %95 : vector<3x6xf32> to vector<3x6x1xf32>
    %97 = vector.extract_strided_slice %4 {offsets = [0, 0], sizes = [1, 32], strides = [1, 1]} : vector<5x32xf32> to vector<1x32xf32>
    %98 = vector.shape_cast %97 : vector<1x32xf32> to vector<32xf32>
    %99 = vector.shape_cast %98 : vector<32xf32> to vector<1x1x32xf32>
    %100 = vector.broadcast %96 : vector<3x6x1xf32> to vector<3x6x32xf32>
    %101 = vector.broadcast %99 : vector<1x1x32xf32> to vector<3x6x32xf32>
    %102 = arith.mulf %100, %101 : vector<3x6x32xf32>
    %103 = arith.addf %93, %102 : vector<3x6x32xf32>
    %104 = vector.extract_strided_slice %92 {offsets = [0, 1, 0], sizes = [3, 1, 6], strides = [1, 1, 1]} : vector<3x2x8xf32> to vector<3x1x6xf32>
    %105 = vector.shape_cast %104 : vector<3x1x6xf32> to vector<3x6xf32>
    %106 = vector.shape_cast %105 : vector<3x6xf32> to vector<3x6x1xf32>
    %107 = vector.extract_strided_slice %4 {offsets = [1, 0], sizes = [1, 32], strides = [1, 1]} : vector<5x32xf32> to vector<1x32xf32>
    %108 = vector.shape_cast %107 : vector<1x32xf32> to vector<32xf32>
    %109 = vector.shape_cast %108 : vector<32xf32> to vector<1x1x32xf32>
    %110 = vector.broadcast %106 : vector<3x6x1xf32> to vector<3x6x32xf32>
    %111 = vector.broadcast %109 : vector<1x1x32xf32> to vector<3x6x32xf32>
    %112 = arith.mulf %110, %111 : vector<3x6x32xf32>
    %113 = arith.addf %103, %112 : vector<3x6x32xf32>
    %114 = vector.extract_strided_slice %92 {offsets = [0, 0, 1], sizes = [3, 1, 6], strides = [1, 1, 1]} : vector<3x2x8xf32> to vector<3x1x6xf32>
    %115 = vector.shape_cast %114 : vector<3x1x6xf32> to vector<3x6xf32>
    %116 = vector.shape_cast %115 : vector<3x6xf32> to vector<3x6x1xf32>
    %117 = vector.extract_strided_slice %4 {offsets = [2, 0], sizes = [1, 32], strides = [1, 1]} : vector<5x32xf32> to vector<1x32xf32>
    %118 = vector.shape_cast %117 : vector<1x32xf32> to vector<32xf32>
    %119 = vector.shape_cast %118 : vector<32xf32> to vector<1x1x32xf32>
    %120 = vector.broadcast %116 : vector<3x6x1xf32> to vector<3x6x32xf32>
    %121 = vector.broadcast %119 : vector<1x1x32xf32> to vector<3x6x32xf32>
    %122 = arith.mulf %120, %121 : vector<3x6x32xf32>
    %123 = arith.addf %113, %122 : vector<3x6x32xf32>
    %124 = vector.extract_strided_slice %92 {offsets = [0, 1, 1], sizes = [3, 1, 6], strides = [1, 1, 1]} : vector<3x2x8xf32> to vector<3x1x6xf32>
    %125 = vector.shape_cast %124 : vector<3x1x6xf32> to vector<3x6xf32>
    %126 = vector.shape_cast %125 : vector<3x6xf32> to vector<3x6x1xf32>
    %127 = vector.extract_strided_slice %4 {offsets = [3, 0], sizes = [1, 32], strides = [1, 1]} : vector<5x32xf32> to vector<1x32xf32>
    %128 = vector.shape_cast %127 : vector<1x32xf32> to vector<32xf32>
    %129 = vector.shape_cast %128 : vector<32xf32> to vector<1x1x32xf32>
    %130 = vector.broadcast %126 : vector<3x6x1xf32> to vector<3x6x32xf32>
    %131 = vector.broadcast %129 : vector<1x1x32xf32> to vector<3x6x32xf32>
    %132 = arith.mulf %130, %131 : vector<3x6x32xf32>
    %133 = arith.addf %123, %132 : vector<3x6x32xf32>
    %134 = vector.extract_strided_slice %92 {offsets = [0, 0, 2], sizes = [3, 1, 6], strides = [1, 1, 1]} : vector<3x2x8xf32> to vector<3x1x6xf32>
    %135 = vector.shape_cast %134 : vector<3x1x6xf32> to vector<3x6xf32>
    %136 = vector.shape_cast %135 : vector<3x6xf32> to vector<3x6x1xf32>
    %137 = vector.extract_strided_slice %4 {offsets = [4, 0], sizes = [1, 32], strides = [1, 1]} : vector<5x32xf32> to vector<1x32xf32>
    %138 = vector.shape_cast %137 : vector<1x32xf32> to vector<32xf32>
    %139 = vector.shape_cast %138 : vector<32xf32> to vector<1x1x32xf32>
    %140 = vector.broadcast %136 : vector<3x6x1xf32> to vector<3x6x32xf32>
    %141 = vector.broadcast %139 : vector<1x1x32xf32> to vector<3x6x32xf32>
    %142 = arith.mulf %140, %141 : vector<3x6x32xf32>
    %143 = arith.addf %133, %142 : vector<3x6x32xf32>
    %144 = vector.shape_cast %5 : vector<1x32xf32> to vector<1x1x32xf32>
    %145 = vector.broadcast %144 : vector<1x1x32xf32> to vector<3x6x32xf32>
    %146 = arith.addf %143, %145 : vector<3x6x32xf32>
    %cst_36 = arith.constant dense<0.000000e+00> : vector<3x32xf32>
    %147 = vector.multi_reduction <add>, %146, %cst_36 [1] : vector<3x6x32xf32> to vector<3x32xf32>
    %cst_37 = arith.constant 6.000000e+00 : f32
    %148 = vector.broadcast %cst_37 : f32 to vector<3x32xf32>
    %149 = arith.divf %147, %148 : vector<3x32xf32>
    %cst_38 = arith.constant dense<0.000000e+00> : vector<3x32xf32>
    %150 = tpu.matmul %6, %149, %cst_38 {dimension_numbers = #tpu.dot_dimension_numbers<[1], [0], [0], [1], [0, 0, 1, 1], [], []>} : vector<3x3xf32>, vector<3x32xf32>, vector<3x32xf32> -> vector<3x32xf32>
    %151 = vector.broadcast %7 : vector<3x1xf32> to vector<3x32xf32>
    %152 = arith.addf %150, %151 : vector<3x32xf32>
    %cst_39 = arith.constant dense<0xFF800000> : vector<32xf32>
    %153 = vector.multi_reduction <maximumf>, %152, %cst_39 [0] : vector<3x32xf32> to vector<32xf32>
    %154 = vector.shape_cast %153 : vector<32xf32> to vector<1x32xf32>
    %155 = vector.broadcast %154 : vector<1x32xf32> to vector<3x32xf32>
    %156 = arith.subf %152, %155 : vector<3x32xf32>
    %157 = math.exp %156 : vector<3x32xf32>
    %cst_40 = arith.constant dense<0.000000e+00> : vector<32xf32>
    %158 = vector.multi_reduction <add>, %157, %cst_40 [0] : vector<3x32xf32> to vector<32xf32>
    %159 = vector.shape_cast %158 : vector<32xf32> to vector<1x32xf32>
    %160 = tpu.reciprocal %159 {approx = true} : vector<1x32xf32> -> vector<1x32xf32>
    %161 = vector.broadcast %160 : vector<1x32xf32> to vector<3x32xf32>
    %162 = arith.mulf %157, %161 : vector<3x32xf32>
    %163 = vector.shape_cast %162 : vector<3x32xf32> to vector<3x1x32xf32>
    %164 = vector.broadcast %163 : vector<3x1x32xf32> to vector<3x6x32xf32>
    %165 = arith.mulf %146, %164 : vector<3x6x32xf32>
    %cst_41 = arith.constant dense<0.000000e+00> : vector<6x32xf32>
    %166 = vector.multi_reduction <add>, %165, %cst_41 [0] : vector<3x6x32xf32> to vector<6x32xf32>
    %cst_42 = arith.constant 3.000000e+00 : f32
    %167 = vector.broadcast %cst_42 : f32 to vector<6x32xf32>
    %168 = arith.divf %166, %167 : vector<6x32xf32>
    %169 = tpu.concatenate %12, %90, %168, %12 in 0 : vector<1x32xf32>, vector<6x32xf32>, vector<6x32xf32>, vector<1x32xf32> -> vector<14x32xf32>
    %170 = arith.truncf %169 : vector<14x32xf32> to vector<14x32xbf16>
    %171 = vector.extract_strided_slice %170 {offsets = [0, 0], sizes = [12, 32], strides = [1, 1]} : vector<14x32xbf16> to vector<12x32xbf16>
    %c0_43 = arith.constant 0 : index
    %c0_44 = arith.constant 0 : index
    %c0_45 = arith.constant 0 : index
    %172 = vector.load %arg12[%c0_43, %c0_44, %c0_45] : memref<3x32x32xbf16, #tpu.memory_space<vmem>>, vector<1x32x32xbf16>
    %173 = vector.shape_cast %172 : vector<1x32x32xbf16> to vector<32x32xbf16>
    %cst_46 = arith.constant dense<0.000000e+00> : vector<12x32xf32>
    %174 = tpu.matmul %171, %173, %cst_46 {dimension_numbers = #tpu.dot_dimension_numbers<[1], [0], [0], [1], [0, 0, 1, 1], [], []>} : vector<12x32xbf16>, vector<32x32xbf16>, vector<12x32xf32> -> vector<12x32xf32>
    %175 = arith.addf %11, %174 : vector<12x32xf32>
    %176 = vector.extract_strided_slice %170 {offsets = [1, 0], sizes = [12, 32], strides = [1, 1]} : vector<14x32xbf16> to vector<12x32xbf16>
    %c1 = arith.constant 1 : index
    %c0_47 = arith.constant 0 : index
    %c0_48 = arith.constant 0 : index
    %177 = vector.load %arg12[%c1, %c0_47, %c0_48] : memref<3x32x32xbf16, #tpu.memory_space<vmem>>, vector<1x32x32xbf16>
    %178 = vector.shape_cast %177 : vector<1x32x32xbf16> to vector<32x32xbf16>
    %cst_49 = arith.constant dense<0.000000e+00> : vector<12x32xf32>
    %179 = tpu.matmul %176, %178, %cst_49 {dimension_numbers = #tpu.dot_dimension_numbers<[1], [0], [0], [1], [0, 0, 1, 1], [], []>} : vector<12x32xbf16>, vector<32x32xbf16>, vector<12x32xf32> -> vector<12x32xf32>
    %180 = arith.addf %175, %179 : vector<12x32xf32>
    %181 = vector.extract_strided_slice %170 {offsets = [2, 0], sizes = [12, 32], strides = [1, 1]} : vector<14x32xbf16> to vector<12x32xbf16>
    %c2 = arith.constant 2 : index
    %c0_50 = arith.constant 0 : index
    %c0_51 = arith.constant 0 : index
    %182 = vector.load %arg12[%c2, %c0_50, %c0_51] : memref<3x32x32xbf16, #tpu.memory_space<vmem>>, vector<1x32x32xbf16>
    %183 = vector.shape_cast %182 : vector<1x32x32xbf16> to vector<32x32xbf16>
    %cst_52 = arith.constant dense<0.000000e+00> : vector<12x32xf32>
    %184 = tpu.matmul %181, %183, %cst_52 {dimension_numbers = #tpu.dot_dimension_numbers<[1], [0], [0], [1], [0, 0, 1, 1], [], []>} : vector<12x32xbf16>, vector<32x32xbf16>, vector<12x32xf32> -> vector<12x32xf32>
    %185 = arith.addf %180, %184 : vector<12x32xf32>
    %c1_53 = arith.constant 1 : index
    %c0_54 = arith.constant 0 : index
    %c0_55 = arith.constant 0 : index
    %c0_56 = arith.constant 0 : index
    %186 = vector.load %arg1[%c1_53, %c0_54, %c0_55, %c0_56] : memref<2x4x2x8xf32, #tpu.memory_space<vmem>>, vector<1x4x2x8xf32>
    %187 = vector.shape_cast %186 : vector<1x4x2x8xf32> to vector<4x2x8xf32>
    %cst_57 = arith.constant 0.000000e+00 : f32
    %188 = vector.broadcast %cst_57 : f32 to vector<4x6x32xf32>
    %189 = vector.extract_strided_slice %187 {offsets = [0, 0, 0], sizes = [4, 1, 6], strides = [1, 1, 1]} : vector<4x2x8xf32> to vector<4x1x6xf32>
    %190 = vector.shape_cast %189 : vector<4x1x6xf32> to vector<4x6xf32>
    %191 = vector.shape_cast %190 : vector<4x6xf32> to vector<4x6x1xf32>
    %192 = vector.extract_strided_slice %0 {offsets = [0, 0], sizes = [1, 32], strides = [1, 1]} : vector<5x32xf32> to vector<1x32xf32>
    %193 = vector.shape_cast %192 : vector<1x32xf32> to vector<32xf32>
    %194 = vector.shape_cast %193 : vector<32xf32> to vector<1x1x32xf32>
    %195 = vector.broadcast %191 : vector<4x6x1xf32> to vector<4x6x32xf32>
    %196 = vector.broadcast %194 : vector<1x1x32xf32> to vector<4x6x32xf32>
    %197 = arith.mulf %195, %196 : vector<4x6x32xf32>
    %198 = arith.addf %188, %197 : vector<4x6x32xf32>
    %199 = vector.extract_strided_slice %187 {offsets = [0, 1, 0], sizes = [4, 1, 6], strides = [1, 1, 1]} : vector<4x2x8xf32> to vector<4x1x6xf32>
    %200 = vector.shape_cast %199 : vector<4x1x6xf32> to vector<4x6xf32>
    %201 = vector.shape_cast %200 : vector<4x6xf32> to vector<4x6x1xf32>
    %202 = vector.extract_strided_slice %0 {offsets = [1, 0], sizes = [1, 32], strides = [1, 1]} : vector<5x32xf32> to vector<1x32xf32>
    %203 = vector.shape_cast %202 : vector<1x32xf32> to vector<32xf32>
    %204 = vector.shape_cast %203 : vector<32xf32> to vector<1x1x32xf32>
    %205 = vector.broadcast %201 : vector<4x6x1xf32> to vector<4x6x32xf32>
    %206 = vector.broadcast %204 : vector<1x1x32xf32> to vector<4x6x32xf32>
    %207 = arith.mulf %205, %206 : vector<4x6x32xf32>
    %208 = arith.addf %198, %207 : vector<4x6x32xf32>
    %209 = vector.extract_strided_slice %187 {offsets = [0, 0, 1], sizes = [4, 1, 6], strides = [1, 1, 1]} : vector<4x2x8xf32> to vector<4x1x6xf32>
    %210 = vector.shape_cast %209 : vector<4x1x6xf32> to vector<4x6xf32>
    %211 = vector.shape_cast %210 : vector<4x6xf32> to vector<4x6x1xf32>
    %212 = vector.extract_strided_slice %0 {offsets = [2, 0], sizes = [1, 32], strides = [1, 1]} : vector<5x32xf32> to vector<1x32xf32>
    %213 = vector.shape_cast %212 : vector<1x32xf32> to vector<32xf32>
    %214 = vector.shape_cast %213 : vector<32xf32> to vector<1x1x32xf32>
    %215 = vector.broadcast %211 : vector<4x6x1xf32> to vector<4x6x32xf32>
    %216 = vector.broadcast %214 : vector<1x1x32xf32> to vector<4x6x32xf32>
    %217 = arith.mulf %215, %216 : vector<4x6x32xf32>
    %218 = arith.addf %208, %217 : vector<4x6x32xf32>
    %219 = vector.extract_strided_slice %187 {offsets = [0, 1, 1], sizes = [4, 1, 6], strides = [1, 1, 1]} : vector<4x2x8xf32> to vector<4x1x6xf32>
    %220 = vector.shape_cast %219 : vector<4x1x6xf32> to vector<4x6xf32>
    %221 = vector.shape_cast %220 : vector<4x6xf32> to vector<4x6x1xf32>
    %222 = vector.extract_strided_slice %0 {offsets = [3, 0], sizes = [1, 32], strides = [1, 1]} : vector<5x32xf32> to vector<1x32xf32>
    %223 = vector.shape_cast %222 : vector<1x32xf32> to vector<32xf32>
    %224 = vector.shape_cast %223 : vector<32xf32> to vector<1x1x32xf32>
    %225 = vector.broadcast %221 : vector<4x6x1xf32> to vector<4x6x32xf32>
    %226 = vector.broadcast %224 : vector<1x1x32xf32> to vector<4x6x32xf32>
    %227 = arith.mulf %225, %226 : vector<4x6x32xf32>
    %228 = arith.addf %218, %227 : vector<4x6x32xf32>
    %229 = vector.extract_strided_slice %187 {offsets = [0, 0, 2], sizes = [4, 1, 6], strides = [1, 1, 1]} : vector<4x2x8xf32> to vector<4x1x6xf32>
    %230 = vector.shape_cast %229 : vector<4x1x6xf32> to vector<4x6xf32>
    %231 = vector.shape_cast %230 : vector<4x6xf32> to vector<4x6x1xf32>
    %232 = vector.extract_strided_slice %0 {offsets = [4, 0], sizes = [1, 32], strides = [1, 1]} : vector<5x32xf32> to vector<1x32xf32>
    %233 = vector.shape_cast %232 : vector<1x32xf32> to vector<32xf32>
    %234 = vector.shape_cast %233 : vector<32xf32> to vector<1x1x32xf32>
    %235 = vector.broadcast %231 : vector<4x6x1xf32> to vector<4x6x32xf32>
    %236 = vector.broadcast %234 : vector<1x1x32xf32> to vector<4x6x32xf32>
    %237 = arith.mulf %235, %236 : vector<4x6x32xf32>
    %238 = arith.addf %228, %237 : vector<4x6x32xf32>
    %239 = vector.shape_cast %1 : vector<1x32xf32> to vector<1x1x32xf32>
    %240 = vector.broadcast %239 : vector<1x1x32xf32> to vector<4x6x32xf32>
    %241 = arith.addf %238, %240 : vector<4x6x32xf32>
    %cst_58 = arith.constant dense<0.000000e+00> : vector<4x32xf32>
    %242 = vector.multi_reduction <add>, %241, %cst_58 [1] : vector<4x6x32xf32> to vector<4x32xf32>
    %cst_59 = arith.constant 6.000000e+00 : f32
    %243 = vector.broadcast %cst_59 : f32 to vector<4x32xf32>
    %244 = arith.divf %242, %243 : vector<4x32xf32>
    %cst_60 = arith.constant dense<0.000000e+00> : vector<4x32xf32>
    %245 = tpu.matmul %2, %244, %cst_60 {dimension_numbers = #tpu.dot_dimension_numbers<[1], [0], [0], [1], [0, 0, 1, 1], [], []>} : vector<4x4xf32>, vector<4x32xf32>, vector<4x32xf32> -> vector<4x32xf32>
    %246 = vector.broadcast %3 : vector<4x1xf32> to vector<4x32xf32>
    %247 = arith.addf %245, %246 : vector<4x32xf32>
    %cst_61 = arith.constant dense<0xFF800000> : vector<32xf32>
    %248 = vector.multi_reduction <maximumf>, %247, %cst_61 [0] : vector<4x32xf32> to vector<32xf32>
    %249 = vector.shape_cast %248 : vector<32xf32> to vector<1x32xf32>
    %250 = vector.broadcast %249 : vector<1x32xf32> to vector<4x32xf32>
    %251 = arith.subf %247, %250 : vector<4x32xf32>
    %252 = math.exp %251 : vector<4x32xf32>
    %cst_62 = arith.constant dense<0.000000e+00> : vector<32xf32>
    %253 = vector.multi_reduction <add>, %252, %cst_62 [0] : vector<4x32xf32> to vector<32xf32>
    %254 = vector.shape_cast %253 : vector<32xf32> to vector<1x32xf32>
    %255 = tpu.reciprocal %254 {approx = true} : vector<1x32xf32> -> vector<1x32xf32>
    %256 = vector.broadcast %255 : vector<1x32xf32> to vector<4x32xf32>
    %257 = arith.mulf %252, %256 : vector<4x32xf32>
    %258 = vector.shape_cast %257 : vector<4x32xf32> to vector<4x1x32xf32>
    %259 = vector.broadcast %258 : vector<4x1x32xf32> to vector<4x6x32xf32>
    %260 = arith.mulf %241, %259 : vector<4x6x32xf32>
    %cst_63 = arith.constant dense<0.000000e+00> : vector<6x32xf32>
    %261 = vector.multi_reduction <add>, %260, %cst_63 [0] : vector<4x6x32xf32> to vector<6x32xf32>
    %cst_64 = arith.constant 4.000000e+00 : f32
    %262 = vector.broadcast %cst_64 : f32 to vector<6x32xf32>
    %263 = arith.divf %261, %262 : vector<6x32xf32>
    %c1_65 = arith.constant 1 : index
    %c0_66 = arith.constant 0 : index
    %c0_67 = arith.constant 0 : index
    %c0_68 = arith.constant 0 : index
    %264 = vector.load %arg2[%c1_65, %c0_66, %c0_67, %c0_68] : memref<2x3x2x8xf32, #tpu.memory_space<vmem>>, vector<1x3x2x8xf32>
    %265 = vector.shape_cast %264 : vector<1x3x2x8xf32> to vector<3x2x8xf32>
    %cst_69 = arith.constant 0.000000e+00 : f32
    %266 = vector.broadcast %cst_69 : f32 to vector<3x6x32xf32>
    %267 = vector.extract_strided_slice %265 {offsets = [0, 0, 0], sizes = [3, 1, 6], strides = [1, 1, 1]} : vector<3x2x8xf32> to vector<3x1x6xf32>
    %268 = vector.shape_cast %267 : vector<3x1x6xf32> to vector<3x6xf32>
    %269 = vector.shape_cast %268 : vector<3x6xf32> to vector<3x6x1xf32>
    %270 = vector.extract_strided_slice %4 {offsets = [0, 0], sizes = [1, 32], strides = [1, 1]} : vector<5x32xf32> to vector<1x32xf32>
    %271 = vector.shape_cast %270 : vector<1x32xf32> to vector<32xf32>
    %272 = vector.shape_cast %271 : vector<32xf32> to vector<1x1x32xf32>
    %273 = vector.broadcast %269 : vector<3x6x1xf32> to vector<3x6x32xf32>
    %274 = vector.broadcast %272 : vector<1x1x32xf32> to vector<3x6x32xf32>
    %275 = arith.mulf %273, %274 : vector<3x6x32xf32>
    %276 = arith.addf %266, %275 : vector<3x6x32xf32>
    %277 = vector.extract_strided_slice %265 {offsets = [0, 1, 0], sizes = [3, 1, 6], strides = [1, 1, 1]} : vector<3x2x8xf32> to vector<3x1x6xf32>
    %278 = vector.shape_cast %277 : vector<3x1x6xf32> to vector<3x6xf32>
    %279 = vector.shape_cast %278 : vector<3x6xf32> to vector<3x6x1xf32>
    %280 = vector.extract_strided_slice %4 {offsets = [1, 0], sizes = [1, 32], strides = [1, 1]} : vector<5x32xf32> to vector<1x32xf32>
    %281 = vector.shape_cast %280 : vector<1x32xf32> to vector<32xf32>
    %282 = vector.shape_cast %281 : vector<32xf32> to vector<1x1x32xf32>
    %283 = vector.broadcast %279 : vector<3x6x1xf32> to vector<3x6x32xf32>
    %284 = vector.broadcast %282 : vector<1x1x32xf32> to vector<3x6x32xf32>
    %285 = arith.mulf %283, %284 : vector<3x6x32xf32>
    %286 = arith.addf %276, %285 : vector<3x6x32xf32>
    %287 = vector.extract_strided_slice %265 {offsets = [0, 0, 1], sizes = [3, 1, 6], strides = [1, 1, 1]} : vector<3x2x8xf32> to vector<3x1x6xf32>
    %288 = vector.shape_cast %287 : vector<3x1x6xf32> to vector<3x6xf32>
    %289 = vector.shape_cast %288 : vector<3x6xf32> to vector<3x6x1xf32>
    %290 = vector.extract_strided_slice %4 {offsets = [2, 0], sizes = [1, 32], strides = [1, 1]} : vector<5x32xf32> to vector<1x32xf32>
    %291 = vector.shape_cast %290 : vector<1x32xf32> to vector<32xf32>
    %292 = vector.shape_cast %291 : vector<32xf32> to vector<1x1x32xf32>
    %293 = vector.broadcast %289 : vector<3x6x1xf32> to vector<3x6x32xf32>
    %294 = vector.broadcast %292 : vector<1x1x32xf32> to vector<3x6x32xf32>
    %295 = arith.mulf %293, %294 : vector<3x6x32xf32>
    %296 = arith.addf %286, %295 : vector<3x6x32xf32>
    %297 = vector.extract_strided_slice %265 {offsets = [0, 1, 1], sizes = [3, 1, 6], strides = [1, 1, 1]} : vector<3x2x8xf32> to vector<3x1x6xf32>
    %298 = vector.shape_cast %297 : vector<3x1x6xf32> to vector<3x6xf32>
    %299 = vector.shape_cast %298 : vector<3x6xf32> to vector<3x6x1xf32>
    %300 = vector.extract_strided_slice %4 {offsets = [3, 0], sizes = [1, 32], strides = [1, 1]} : vector<5x32xf32> to vector<1x32xf32>
    %301 = vector.shape_cast %300 : vector<1x32xf32> to vector<32xf32>
    %302 = vector.shape_cast %301 : vector<32xf32> to vector<1x1x32xf32>
    %303 = vector.broadcast %299 : vector<3x6x1xf32> to vector<3x6x32xf32>
    %304 = vector.broadcast %302 : vector<1x1x32xf32> to vector<3x6x32xf32>
    %305 = arith.mulf %303, %304 : vector<3x6x32xf32>
    %306 = arith.addf %296, %305 : vector<3x6x32xf32>
    %307 = vector.extract_strided_slice %265 {offsets = [0, 0, 2], sizes = [3, 1, 6], strides = [1, 1, 1]} : vector<3x2x8xf32> to vector<3x1x6xf32>
    %308 = vector.shape_cast %307 : vector<3x1x6xf32> to vector<3x6xf32>
    %309 = vector.shape_cast %308 : vector<3x6xf32> to vector<3x6x1xf32>
    %310 = vector.extract_strided_slice %4 {offsets = [4, 0], sizes = [1, 32], strides = [1, 1]} : vector<5x32xf32> to vector<1x32xf32>
    %311 = vector.shape_cast %310 : vector<1x32xf32> to vector<32xf32>
    %312 = vector.shape_cast %311 : vector<32xf32> to vector<1x1x32xf32>
    %313 = vector.broadcast %309 : vector<3x6x1xf32> to vector<3x6x32xf32>
    %314 = vector.broadcast %312 : vector<1x1x32xf32> to vector<3x6x32xf32>
    %315 = arith.mulf %313, %314 : vector<3x6x32xf32>
    %316 = arith.addf %306, %315 : vector<3x6x32xf32>
    %317 = vector.shape_cast %5 : vector<1x32xf32> to vector<1x1x32xf32>
    %318 = vector.broadcast %317 : vector<1x1x32xf32> to vector<3x6x32xf32>
    %319 = arith.addf %316, %318 : vector<3x6x32xf32>
    %cst_70 = arith.constant dense<0.000000e+00> : vector<3x32xf32>
    %320 = vector.multi_reduction <add>, %319, %cst_70 [1] : vector<3x6x32xf32> to vector<3x32xf32>
    %cst_71 = arith.constant 6.000000e+00 : f32
    %321 = vector.broadcast %cst_71 : f32 to vector<3x32xf32>
    %322 = arith.divf %320, %321 : vector<3x32xf32>
    %cst_72 = arith.constant dense<0.000000e+00> : vector<3x32xf32>
    %323 = tpu.matmul %6, %322, %cst_72 {dimension_numbers = #tpu.dot_dimension_numbers<[1], [0], [0], [1], [0, 0, 1, 1], [], []>} : vector<3x3xf32>, vector<3x32xf32>, vector<3x32xf32> -> vector<3x32xf32>
    %324 = vector.broadcast %7 : vector<3x1xf32> to vector<3x32xf32>
    %325 = arith.addf %323, %324 : vector<3x32xf32>
    %cst_73 = arith.constant dense<0xFF800000> : vector<32xf32>
    %326 = vector.multi_reduction <maximumf>, %325, %cst_73 [0] : vector<3x32xf32> to vector<32xf32>
    %327 = vector.shape_cast %326 : vector<32xf32> to vector<1x32xf32>
    %328 = vector.broadcast %327 : vector<1x32xf32> to vector<3x32xf32>
    %329 = arith.subf %325, %328 : vector<3x32xf32>
    %330 = math.exp %329 : vector<3x32xf32>
    %cst_74 = arith.constant dense<0.000000e+00> : vector<32xf32>
    %331 = vector.multi_reduction <add>, %330, %cst_74 [0] : vector<3x32xf32> to vector<32xf32>
    %332 = vector.shape_cast %331 : vector<32xf32> to vector<1x32xf32>
    %333 = tpu.reciprocal %332 {approx = true} : vector<1x32xf32> -> vector<1x32xf32>
    %334 = vector.broadcast %333 : vector<1x32xf32> to vector<3x32xf32>
    %335 = arith.mulf %330, %334 : vector<3x32xf32>
    %336 = vector.shape_cast %335 : vector<3x32xf32> to vector<3x1x32xf32>
    %337 = vector.broadcast %336 : vector<3x1x32xf32> to vector<3x6x32xf32>
    %338 = arith.mulf %319, %337 : vector<3x6x32xf32>
    %cst_75 = arith.constant dense<0.000000e+00> : vector<6x32xf32>
    %339 = vector.multi_reduction <add>, %338, %cst_75 [0] : vector<3x6x32xf32> to vector<6x32xf32>
    %cst_76 = arith.constant 3.000000e+00 : f32
    %340 = vector.broadcast %cst_76 : f32 to vector<6x32xf32>
    %341 = arith.divf %339, %340 : vector<6x32xf32>
    %342 = tpu.concatenate %12, %263, %341, %12 in 0 : vector<1x32xf32>, vector<6x32xf32>, vector<6x32xf32>, vector<1x32xf32> -> vector<14x32xf32>
    %343 = arith.truncf %342 : vector<14x32xf32> to vector<14x32xbf16>
    %344 = vector.extract_strided_slice %343 {offsets = [0, 0], sizes = [12, 32], strides = [1, 1]} : vector<14x32xbf16> to vector<12x32xbf16>
    %c0_77 = arith.constant 0 : index
    %c0_78 = arith.constant 0 : index
    %c0_79 = arith.constant 0 : index
    %345 = vector.load %arg12[%c0_77, %c0_78, %c0_79] : memref<3x32x32xbf16, #tpu.memory_space<vmem>>, vector<1x32x32xbf16>
    %346 = vector.shape_cast %345 : vector<1x32x32xbf16> to vector<32x32xbf16>
    %cst_80 = arith.constant dense<0.000000e+00> : vector<12x32xf32>
    %347 = tpu.matmul %344, %346, %cst_80 {dimension_numbers = #tpu.dot_dimension_numbers<[1], [0], [0], [1], [0, 0, 1, 1], [], []>} : vector<12x32xbf16>, vector<32x32xbf16>, vector<12x32xf32> -> vector<12x32xf32>
    %348 = arith.addf %11, %347 : vector<12x32xf32>
    %349 = vector.extract_strided_slice %343 {offsets = [1, 0], sizes = [12, 32], strides = [1, 1]} : vector<14x32xbf16> to vector<12x32xbf16>
    %c1_81 = arith.constant 1 : index
    %c0_82 = arith.constant 0 : index
    %c0_83 = arith.constant 0 : index
    %350 = vector.load %arg12[%c1_81, %c0_82, %c0_83] : memref<3x32x32xbf16, #tpu.memory_space<vmem>>, vector<1x32x32xbf16>
    %351 = vector.shape_cast %350 : vector<1x32x32xbf16> to vector<32x32xbf16>
    %cst_84 = arith.constant dense<0.000000e+00> : vector<12x32xf32>
    %352 = tpu.matmul %349, %351, %cst_84 {dimension_numbers = #tpu.dot_dimension_numbers<[1], [0], [0], [1], [0, 0, 1, 1], [], []>} : vector<12x32xbf16>, vector<32x32xbf16>, vector<12x32xf32> -> vector<12x32xf32>
    %353 = arith.addf %348, %352 : vector<12x32xf32>
    %354 = vector.extract_strided_slice %343 {offsets = [2, 0], sizes = [12, 32], strides = [1, 1]} : vector<14x32xbf16> to vector<12x32xbf16>
    %c2_85 = arith.constant 2 : index
    %c0_86 = arith.constant 0 : index
    %c0_87 = arith.constant 0 : index
    %355 = vector.load %arg12[%c2_85, %c0_86, %c0_87] : memref<3x32x32xbf16, #tpu.memory_space<vmem>>, vector<1x32x32xbf16>
    %356 = vector.shape_cast %355 : vector<1x32x32xbf16> to vector<32x32xbf16>
    %cst_88 = arith.constant dense<0.000000e+00> : vector<12x32xf32>
    %357 = tpu.matmul %354, %356, %cst_88 {dimension_numbers = #tpu.dot_dimension_numbers<[1], [0], [0], [1], [0, 0, 1, 1], [], []>} : vector<12x32xbf16>, vector<32x32xbf16>, vector<12x32xf32> -> vector<12x32xf32>
    %358 = arith.addf %353, %357 : vector<12x32xf32>
    %359 = tpu.concatenate %185, %358 in 0 : vector<12x32xf32>, vector<12x32xf32> -> vector<24x32xf32>
    %c0_89 = arith.constant 0 : index
    %c0_90 = arith.constant 0 : index
    %360 = vector.load %arg3[%c0_89, %c0_90] : memref<24x24xf32, #tpu.memory_space<vmem>>, vector<24x24xf32>
    %c0_i32 = arith.constant 0 : i32
    %c2_i32 = arith.constant 2 : i32
    %361 = arith.addi %c0_i32, %c2_i32 : i32
    %c1_i32 = arith.constant 1 : i32
    %362 = scf.for %arg34 = %c0_i32 to %361 step %c1_i32 iter_args(%arg35 = %359) -> (vector<24x32xf32>)  : i32 {
      %463 = arith.truncf %arg35 : vector<24x32xf32> to vector<24x32xbf16>
      %464 = arith.index_cast %arg34 : i32 to index
      %c0_138 = arith.constant 0 : index
      %c0_139 = arith.constant 0 : index
      %465 = vector.load %arg15[%464, %c0_138, %c0_139] : memref<2x32x32xbf16, #tpu.memory_space<vmem>>, vector<1x32x32xbf16>
      %466 = vector.shape_cast %465 : vector<1x32x32xbf16> to vector<32x32xbf16>
      %cst_140 = arith.constant dense<0.000000e+00> : vector<24x32xf32>
      %467 = tpu.matmul %463, %466, %cst_140 {dimension_numbers = #tpu.dot_dimension_numbers<[1], [0], [0], [1], [0, 0, 1, 1], [], []>} : vector<24x32xbf16>, vector<32x32xbf16>, vector<24x32xf32> -> vector<24x32xf32>
      %468 = arith.index_cast %arg34 : i32 to index
      %c0_141 = arith.constant 0 : index
      %c0_142 = arith.constant 0 : index
      %469 = vector.load %arg16[%468, %c0_141, %c0_142] : memref<2x1x32xf32, #tpu.memory_space<vmem>>, vector<1x1x32xf32>
      %470 = vector.shape_cast %469 : vector<1x1x32xf32> to vector<1x32xf32>
      %471 = vector.broadcast %470 : vector<1x32xf32> to vector<24x32xf32>
      %472 = arith.addf %467, %471 : vector<24x32xf32>
      %473 = arith.index_cast %arg34 : i32 to index
      %c0_143 = arith.constant 0 : index
      %c0_144 = arith.constant 0 : index
      %474 = vector.load %arg17[%473, %c0_143, %c0_144] : memref<2x32x32xbf16, #tpu.memory_space<vmem>>, vector<1x32x32xbf16>
      %475 = vector.shape_cast %474 : vector<1x32x32xbf16> to vector<32x32xbf16>
      %cst_145 = arith.constant dense<0.000000e+00> : vector<24x32xf32>
      %476 = tpu.matmul %463, %475, %cst_145 {dimension_numbers = #tpu.dot_dimension_numbers<[1], [0], [0], [1], [0, 0, 1, 1], [], []>} : vector<24x32xbf16>, vector<32x32xbf16>, vector<24x32xf32> -> vector<24x32xf32>
      %477 = arith.index_cast %arg34 : i32 to index
      %c0_146 = arith.constant 0 : index
      %c0_147 = arith.constant 0 : index
      %478 = vector.load %arg18[%477, %c0_146, %c0_147] : memref<2x1x32xf32, #tpu.memory_space<vmem>>, vector<1x1x32xf32>
      %479 = vector.shape_cast %478 : vector<1x1x32xf32> to vector<1x32xf32>
      %480 = vector.broadcast %479 : vector<1x32xf32> to vector<24x32xf32>
      %481 = arith.addf %476, %480 : vector<24x32xf32>
      %482 = arith.index_cast %arg34 : i32 to index
      %c0_148 = arith.constant 0 : index
      %c0_149 = arith.constant 0 : index
      %483 = vector.load %arg19[%482, %c0_148, %c0_149] : memref<2x32x32xbf16, #tpu.memory_space<vmem>>, vector<1x32x32xbf16>
      %484 = vector.shape_cast %483 : vector<1x32x32xbf16> to vector<32x32xbf16>
      %cst_150 = arith.constant dense<0.000000e+00> : vector<24x32xf32>
      %485 = tpu.matmul %463, %484, %cst_150 {dimension_numbers = #tpu.dot_dimension_numbers<[1], [0], [0], [1], [0, 0, 1, 1], [], []>} : vector<24x32xbf16>, vector<32x32xbf16>, vector<24x32xf32> -> vector<24x32xf32>
      %486 = arith.index_cast %arg34 : i32 to index
      %c0_151 = arith.constant 0 : index
      %c0_152 = arith.constant 0 : index
      %487 = vector.load %arg20[%486, %c0_151, %c0_152] : memref<2x1x32xf32, #tpu.memory_space<vmem>>, vector<1x1x32xf32>
      %488 = vector.shape_cast %487 : vector<1x1x32xf32> to vector<1x32xf32>
      %489 = vector.broadcast %488 : vector<1x32xf32> to vector<24x32xf32>
      %490 = arith.addf %485, %489 : vector<24x32xf32>
      %491 = vector.extract_strided_slice %472 {offsets = [0, 0], sizes = [24, 8], strides = [1, 1]} : vector<24x32xf32> to vector<24x8xf32>
      %492 = arith.truncf %491 : vector<24x8xf32> to vector<24x8xbf16>
      %493 = vector.extract_strided_slice %481 {offsets = [0, 0], sizes = [24, 8], strides = [1, 1]} : vector<24x32xf32> to vector<24x8xf32>
      %494 = arith.truncf %493 : vector<24x8xf32> to vector<24x8xbf16>
      %cst_153 = arith.constant dense<0.000000e+00> : vector<24x24xf32>
      %495 = tpu.matmul %492, %494, %cst_153 {dimension_numbers = #tpu.dot_dimension_numbers<[1], [1], [0], [0], [0, 0, 1, 0], [], []>} : vector<24x8xbf16>, vector<24x8xbf16>, vector<24x24xf32> -> vector<24x24xf32>
      %cst_154 = arith.constant 0.353553385 : f32
      %496 = vector.broadcast %cst_154 : f32 to vector<24x24xf32>
      %497 = arith.mulf %495, %496 : vector<24x24xf32>
      %498 = arith.addf %497, %360 : vector<24x24xf32>
      %cst_155 = arith.constant dense<0xFF800000> : vector<24xf32>
      %499 = vector.multi_reduction <maximumf>, %498, %cst_155 [1] : vector<24x24xf32> to vector<24xf32>
      %500 = vector.shape_cast %499 : vector<24xf32> to vector<24x1xf32>
      %501 = vector.broadcast %500 : vector<24x1xf32> to vector<24x24xf32>
      %502 = arith.subf %498, %501 : vector<24x24xf32>
      %503 = math.exp %502 : vector<24x24xf32>
      %cst_156 = arith.constant dense<0.000000e+00> : vector<24xf32>
      %504 = vector.multi_reduction <add>, %503, %cst_156 [1] : vector<24x24xf32> to vector<24xf32>
      %505 = vector.shape_cast %504 : vector<24xf32> to vector<24x1xf32>
      %506 = tpu.reciprocal %505 {approx = true} : vector<24x1xf32> -> vector<24x1xf32>
      %507 = vector.broadcast %506 : vector<24x1xf32> to vector<24x24xf32>
      %508 = arith.mulf %503, %507 : vector<24x24xf32>
      %509 = arith.truncf %508 : vector<24x24xf32> to vector<24x24xbf16>
      %510 = vector.extract_strided_slice %490 {offsets = [0, 0], sizes = [24, 8], strides = [1, 1]} : vector<24x32xf32> to vector<24x8xf32>
      %511 = arith.truncf %510 : vector<24x8xf32> to vector<24x8xbf16>
      %cst_157 = arith.constant dense<0.000000e+00> : vector<24x8xf32>
      %512 = tpu.matmul %509, %511, %cst_157 {dimension_numbers = #tpu.dot_dimension_numbers<[1], [0], [0], [1], [0, 0, 1, 1], [], []>} : vector<24x24xbf16>, vector<24x8xbf16>, vector<24x8xf32> -> vector<24x8xf32>
      %513 = vector.extract_strided_slice %472 {offsets = [0, 8], sizes = [24, 8], strides = [1, 1]} : vector<24x32xf32> to vector<24x8xf32>
      %514 = arith.truncf %513 : vector<24x8xf32> to vector<24x8xbf16>
      %515 = vector.extract_strided_slice %481 {offsets = [0, 8], sizes = [24, 8], strides = [1, 1]} : vector<24x32xf32> to vector<24x8xf32>
      %516 = arith.truncf %515 : vector<24x8xf32> to vector<24x8xbf16>
      %cst_158 = arith.constant dense<0.000000e+00> : vector<24x24xf32>
      %517 = tpu.matmul %514, %516, %cst_158 {dimension_numbers = #tpu.dot_dimension_numbers<[1], [1], [0], [0], [0, 0, 1, 0], [], []>} : vector<24x8xbf16>, vector<24x8xbf16>, vector<24x24xf32> -> vector<24x24xf32>
      %cst_159 = arith.constant 0.353553385 : f32
      %518 = vector.broadcast %cst_159 : f32 to vector<24x24xf32>
      %519 = arith.mulf %517, %518 : vector<24x24xf32>
      %520 = arith.addf %519, %360 : vector<24x24xf32>
      %cst_160 = arith.constant dense<0xFF800000> : vector<24xf32>
      %521 = vector.multi_reduction <maximumf>, %520, %cst_160 [1] : vector<24x24xf32> to vector<24xf32>
      %522 = vector.shape_cast %521 : vector<24xf32> to vector<24x1xf32>
      %523 = vector.broadcast %522 : vector<24x1xf32> to vector<24x24xf32>
      %524 = arith.subf %520, %523 : vector<24x24xf32>
      %525 = math.exp %524 : vector<24x24xf32>
      %cst_161 = arith.constant dense<0.000000e+00> : vector<24xf32>
      %526 = vector.multi_reduction <add>, %525, %cst_161 [1] : vector<24x24xf32> to vector<24xf32>
      %527 = vector.shape_cast %526 : vector<24xf32> to vector<24x1xf32>
      %528 = tpu.reciprocal %527 {approx = true} : vector<24x1xf32> -> vector<24x1xf32>
      %529 = vector.broadcast %528 : vector<24x1xf32> to vector<24x24xf32>
      %530 = arith.mulf %525, %529 : vector<24x24xf32>
      %531 = arith.truncf %530 : vector<24x24xf32> to vector<24x24xbf16>
      %532 = vector.extract_strided_slice %490 {offsets = [0, 8], sizes = [24, 8], strides = [1, 1]} : vector<24x32xf32> to vector<24x8xf32>
      %533 = arith.truncf %532 : vector<24x8xf32> to vector<24x8xbf16>
      %cst_162 = arith.constant dense<0.000000e+00> : vector<24x8xf32>
      %534 = tpu.matmul %531, %533, %cst_162 {dimension_numbers = #tpu.dot_dimension_numbers<[1], [0], [0], [1], [0, 0, 1, 1], [], []>} : vector<24x24xbf16>, vector<24x8xbf16>, vector<24x8xf32> -> vector<24x8xf32>
      %535 = vector.extract_strided_slice %472 {offsets = [0, 16], sizes = [24, 8], strides = [1, 1]} : vector<24x32xf32> to vector<24x8xf32>
      %536 = arith.truncf %535 : vector<24x8xf32> to vector<24x8xbf16>
      %537 = vector.extract_strided_slice %481 {offsets = [0, 16], sizes = [24, 8], strides = [1, 1]} : vector<24x32xf32> to vector<24x8xf32>
      %538 = arith.truncf %537 : vector<24x8xf32> to vector<24x8xbf16>
      %cst_163 = arith.constant dense<0.000000e+00> : vector<24x24xf32>
      %539 = tpu.matmul %536, %538, %cst_163 {dimension_numbers = #tpu.dot_dimension_numbers<[1], [1], [0], [0], [0, 0, 1, 0], [], []>} : vector<24x8xbf16>, vector<24x8xbf16>, vector<24x24xf32> -> vector<24x24xf32>
      %cst_164 = arith.constant 0.353553385 : f32
      %540 = vector.broadcast %cst_164 : f32 to vector<24x24xf32>
      %541 = arith.mulf %539, %540 : vector<24x24xf32>
      %542 = arith.addf %541, %360 : vector<24x24xf32>
      %cst_165 = arith.constant dense<0xFF800000> : vector<24xf32>
      %543 = vector.multi_reduction <maximumf>, %542, %cst_165 [1] : vector<24x24xf32> to vector<24xf32>
      %544 = vector.shape_cast %543 : vector<24xf32> to vector<24x1xf32>
      %545 = vector.broadcast %544 : vector<24x1xf32> to vector<24x24xf32>
      %546 = arith.subf %542, %545 : vector<24x24xf32>
      %547 = math.exp %546 : vector<24x24xf32>
      %cst_166 = arith.constant dense<0.000000e+00> : vector<24xf32>
      %548 = vector.multi_reduction <add>, %547, %cst_166 [1] : vector<24x24xf32> to vector<24xf32>
      %549 = vector.shape_cast %548 : vector<24xf32> to vector<24x1xf32>
      %550 = tpu.reciprocal %549 {approx = true} : vector<24x1xf32> -> vector<24x1xf32>
      %551 = vector.broadcast %550 : vector<24x1xf32> to vector<24x24xf32>
      %552 = arith.mulf %547, %551 : vector<24x24xf32>
      %553 = arith.truncf %552 : vector<24x24xf32> to vector<24x24xbf16>
      %554 = vector.extract_strided_slice %490 {offsets = [0, 16], sizes = [24, 8], strides = [1, 1]} : vector<24x32xf32> to vector<24x8xf32>
      %555 = arith.truncf %554 : vector<24x8xf32> to vector<24x8xbf16>
      %cst_167 = arith.constant dense<0.000000e+00> : vector<24x8xf32>
      %556 = tpu.matmul %553, %555, %cst_167 {dimension_numbers = #tpu.dot_dimension_numbers<[1], [0], [0], [1], [0, 0, 1, 1], [], []>} : vector<24x24xbf16>, vector<24x8xbf16>, vector<24x8xf32> -> vector<24x8xf32>
      %557 = vector.extract_strided_slice %472 {offsets = [0, 24], sizes = [24, 8], strides = [1, 1]} : vector<24x32xf32> to vector<24x8xf32>
      %558 = arith.truncf %557 : vector<24x8xf32> to vector<24x8xbf16>
      %559 = vector.extract_strided_slice %481 {offsets = [0, 24], sizes = [24, 8], strides = [1, 1]} : vector<24x32xf32> to vector<24x8xf32>
      %560 = arith.truncf %559 : vector<24x8xf32> to vector<24x8xbf16>
      %cst_168 = arith.constant dense<0.000000e+00> : vector<24x24xf32>
      %561 = tpu.matmul %558, %560, %cst_168 {dimension_numbers = #tpu.dot_dimension_numbers<[1], [1], [0], [0], [0, 0, 1, 0], [], []>} : vector<24x8xbf16>, vector<24x8xbf16>, vector<24x24xf32> -> vector<24x24xf32>
      %cst_169 = arith.constant 0.353553385 : f32
      %562 = vector.broadcast %cst_169 : f32 to vector<24x24xf32>
      %563 = arith.mulf %561, %562 : vector<24x24xf32>
      %564 = arith.addf %563, %360 : vector<24x24xf32>
      %cst_170 = arith.constant dense<0xFF800000> : vector<24xf32>
      %565 = vector.multi_reduction <maximumf>, %564, %cst_170 [1] : vector<24x24xf32> to vector<24xf32>
      %566 = vector.shape_cast %565 : vector<24xf32> to vector<24x1xf32>
      %567 = vector.broadcast %566 : vector<24x1xf32> to vector<24x24xf32>
      %568 = arith.subf %564, %567 : vector<24x24xf32>
      %569 = math.exp %568 : vector<24x24xf32>
      %cst_171 = arith.constant dense<0.000000e+00> : vector<24xf32>
      %570 = vector.multi_reduction <add>, %569, %cst_171 [1] : vector<24x24xf32> to vector<24xf32>
      %571 = vector.shape_cast %570 : vector<24xf32> to vector<24x1xf32>
      %572 = tpu.reciprocal %571 {approx = true} : vector<24x1xf32> -> vector<24x1xf32>
      %573 = vector.broadcast %572 : vector<24x1xf32> to vector<24x24xf32>
      %574 = arith.mulf %569, %573 : vector<24x24xf32>
      %575 = arith.truncf %574 : vector<24x24xf32> to vector<24x24xbf16>
      %576 = vector.extract_strided_slice %490 {offsets = [0, 24], sizes = [24, 8], strides = [1, 1]} : vector<24x32xf32> to vector<24x8xf32>
      %577 = arith.truncf %576 : vector<24x8xf32> to vector<24x8xbf16>
      %cst_172 = arith.constant dense<0.000000e+00> : vector<24x8xf32>
      %578 = tpu.matmul %575, %577, %cst_172 {dimension_numbers = #tpu.dot_dimension_numbers<[1], [0], [0], [1], [0, 0, 1, 1], [], []>} : vector<24x24xbf16>, vector<24x8xbf16>, vector<24x8xf32> -> vector<24x8xf32>
      %579 = tpu.concatenate %512, %534, %556, %578 in 1 : vector<24x8xf32>, vector<24x8xf32>, vector<24x8xf32>, vector<24x8xf32> -> vector<24x32xf32>
      %580 = arith.truncf %579 : vector<24x32xf32> to vector<24x32xbf16>
      %581 = arith.index_cast %arg34 : i32 to index
      %c0_173 = arith.constant 0 : index
      %c0_174 = arith.constant 0 : index
      %582 = vector.load %arg21[%581, %c0_173, %c0_174] : memref<2x32x32xbf16, #tpu.memory_space<vmem>>, vector<1x32x32xbf16>
      %583 = vector.shape_cast %582 : vector<1x32x32xbf16> to vector<32x32xbf16>
      %cst_175 = arith.constant dense<0.000000e+00> : vector<24x32xf32>
      %584 = tpu.matmul %580, %583, %cst_175 {dimension_numbers = #tpu.dot_dimension_numbers<[1], [0], [0], [1], [0, 0, 1, 1], [], []>} : vector<24x32xbf16>, vector<32x32xbf16>, vector<24x32xf32> -> vector<24x32xf32>
      %585 = arith.index_cast %arg34 : i32 to index
      %c0_176 = arith.constant 0 : index
      %c0_177 = arith.constant 0 : index
      %586 = vector.load %arg22[%585, %c0_176, %c0_177] : memref<2x1x32xf32, #tpu.memory_space<vmem>>, vector<1x1x32xf32>
      %587 = vector.shape_cast %586 : vector<1x1x32xf32> to vector<1x32xf32>
      %588 = vector.broadcast %587 : vector<1x32xf32> to vector<24x32xf32>
      %589 = arith.addf %584, %588 : vector<24x32xf32>
      %590 = arith.addf %arg35, %589 : vector<24x32xf32>
      %591 = arith.index_cast %arg34 : i32 to index
      %c0_178 = arith.constant 0 : index
      %c0_179 = arith.constant 0 : index
      %592 = vector.load %arg23[%591, %c0_178, %c0_179] : memref<2x1x32xf32, #tpu.memory_space<vmem>>, vector<1x1x32xf32>
      %593 = vector.shape_cast %592 : vector<1x1x32xf32> to vector<1x32xf32>
      %594 = arith.index_cast %arg34 : i32 to index
      %c0_180 = arith.constant 0 : index
      %c0_181 = arith.constant 0 : index
      %595 = vector.load %arg24[%594, %c0_180, %c0_181] : memref<2x1x32xf32, #tpu.memory_space<vmem>>, vector<1x1x32xf32>
      %596 = vector.shape_cast %595 : vector<1x1x32xf32> to vector<1x32xf32>
      %cst_182 = arith.constant dense<0.000000e+00> : vector<24xf32>
      %597 = vector.multi_reduction <add>, %590, %cst_182 [1] : vector<24x32xf32> to vector<24xf32>
      %598 = vector.shape_cast %597 : vector<24xf32> to vector<24x1xf32>
      %cst_183 = arith.constant 3.200000e+01 : f32
      %599 = vector.broadcast %cst_183 : f32 to vector<24x1xf32>
      %600 = arith.divf %598, %599 : vector<24x1xf32>
      %601 = vector.broadcast %600 : vector<24x1xf32> to vector<24x32xf32>
      %602 = arith.subf %590, %601 : vector<24x32xf32>
      %603 = arith.mulf %602, %602 : vector<24x32xf32>
      %cst_184 = arith.constant dense<0.000000e+00> : vector<24xf32>
      %604 = vector.multi_reduction <add>, %603, %cst_184 [1] : vector<24x32xf32> to vector<24xf32>
      %605 = vector.shape_cast %604 : vector<24xf32> to vector<24x1xf32>
      %cst_185 = arith.constant 3.200000e+01 : f32
      %606 = vector.broadcast %cst_185 : f32 to vector<24x1xf32>
      %607 = arith.divf %605, %606 : vector<24x1xf32>
      %608 = vector.broadcast %600 : vector<24x1xf32> to vector<24x32xf32>
      %609 = arith.subf %590, %608 : vector<24x32xf32>
      %cst_186 = arith.constant 9.99999974E-6 : f32
      %610 = vector.broadcast %cst_186 : f32 to vector<24x1xf32>
      %611 = arith.addf %607, %610 : vector<24x1xf32>
      %612 = math.rsqrt %611 : vector<24x1xf32>
      %613 = vector.broadcast %612 : vector<24x1xf32> to vector<24x32xf32>
      %614 = arith.mulf %609, %613 : vector<24x32xf32>
      %615 = vector.broadcast %593 : vector<1x32xf32> to vector<24x32xf32>
      %616 = arith.mulf %614, %615 : vector<24x32xf32>
      %617 = vector.broadcast %596 : vector<1x32xf32> to vector<24x32xf32>
      %618 = arith.addf %616, %617 : vector<24x32xf32>
      %619 = arith.truncf %618 : vector<24x32xf32> to vector<24x32xbf16>
      %620 = arith.index_cast %arg34 : i32 to index
      %c0_187 = arith.constant 0 : index
      %c0_188 = arith.constant 0 : index
      %621 = vector.load %arg25[%620, %c0_187, %c0_188] : memref<2x32x128xbf16, #tpu.memory_space<vmem>>, vector<1x32x128xbf16>
      %622 = vector.shape_cast %621 : vector<1x32x128xbf16> to vector<32x128xbf16>
      %cst_189 = arith.constant dense<0.000000e+00> : vector<24x128xf32>
      %623 = tpu.matmul %619, %622, %cst_189 {dimension_numbers = #tpu.dot_dimension_numbers<[1], [0], [0], [1], [0, 0, 1, 1], [], []>} : vector<24x32xbf16>, vector<32x128xbf16>, vector<24x128xf32> -> vector<24x128xf32>
      %624 = arith.index_cast %arg34 : i32 to index
      %c0_190 = arith.constant 0 : index
      %c0_191 = arith.constant 0 : index
      %625 = vector.load %arg26[%624, %c0_190, %c0_191] : memref<2x1x128xf32, #tpu.memory_space<vmem>>, vector<1x1x128xf32>
      %626 = vector.shape_cast %625 : vector<1x1x128xf32> to vector<1x128xf32>
      %627 = vector.broadcast %626 : vector<1x128xf32> to vector<24x128xf32>
      %628 = arith.addf %623, %627 : vector<24x128xf32>
      %cst_192 = arith.constant 0.000000e+00 : f32
      %629 = vector.broadcast %cst_192 : f32 to vector<24x128xf32>
      %630 = arith.maximumf %628, %629 : vector<24x128xf32>
      %631 = arith.truncf %630 : vector<24x128xf32> to vector<24x128xbf16>
      %632 = arith.index_cast %arg34 : i32 to index
      %c0_193 = arith.constant 0 : index
      %c0_194 = arith.constant 0 : index
      %633 = vector.load %arg27[%632, %c0_193, %c0_194] : memref<2x128x32xbf16, #tpu.memory_space<vmem>>, vector<1x128x32xbf16>
      %634 = vector.shape_cast %633 : vector<1x128x32xbf16> to vector<128x32xbf16>
      %cst_195 = arith.constant dense<0.000000e+00> : vector<24x32xf32>
      %635 = tpu.matmul %631, %634, %cst_195 {dimension_numbers = #tpu.dot_dimension_numbers<[1], [0], [0], [1], [0, 0, 1, 1], [], []>} : vector<24x128xbf16>, vector<128x32xbf16>, vector<24x32xf32> -> vector<24x32xf32>
      %636 = arith.index_cast %arg34 : i32 to index
      %c0_196 = arith.constant 0 : index
      %c0_197 = arith.constant 0 : index
      %637 = vector.load %arg28[%636, %c0_196, %c0_197] : memref<2x1x32xf32, #tpu.memory_space<vmem>>, vector<1x1x32xf32>
      %638 = vector.shape_cast %637 : vector<1x1x32xf32> to vector<1x32xf32>
      %639 = vector.broadcast %638 : vector<1x32xf32> to vector<24x32xf32>
      %640 = arith.addf %635, %639 : vector<24x32xf32>
      %641 = arith.addf %618, %640 : vector<24x32xf32>
      %642 = arith.index_cast %arg34 : i32 to index
      %c0_198 = arith.constant 0 : index
      %c0_199 = arith.constant 0 : index
      %643 = vector.load %arg29[%642, %c0_198, %c0_199] : memref<2x1x32xf32, #tpu.memory_space<vmem>>, vector<1x1x32xf32>
      %644 = vector.shape_cast %643 : vector<1x1x32xf32> to vector<1x32xf32>
      %645 = arith.index_cast %arg34 : i32 to index
      %c0_200 = arith.constant 0 : index
      %c0_201 = arith.constant 0 : index
      %646 = vector.load %arg30[%645, %c0_200, %c0_201] : memref<2x1x32xf32, #tpu.memory_space<vmem>>, vector<1x1x32xf32>
      %647 = vector.shape_cast %646 : vector<1x1x32xf32> to vector<1x32xf32>
      %cst_202 = arith.constant dense<0.000000e+00> : vector<24xf32>
      %648 = vector.multi_reduction <add>, %641, %cst_202 [1] : vector<24x32xf32> to vector<24xf32>
      %649 = vector.shape_cast %648 : vector<24xf32> to vector<24x1xf32>
      %cst_203 = arith.constant 3.200000e+01 : f32
      %650 = vector.broadcast %cst_203 : f32 to vector<24x1xf32>
      %651 = arith.divf %649, %650 : vector<24x1xf32>
      %652 = vector.broadcast %651 : vector<24x1xf32> to vector<24x32xf32>
      %653 = arith.subf %641, %652 : vector<24x32xf32>
      %654 = arith.mulf %653, %653 : vector<24x32xf32>
      %cst_204 = arith.constant dense<0.000000e+00> : vector<24xf32>
      %655 = vector.multi_reduction <add>, %654, %cst_204 [1] : vector<24x32xf32> to vector<24xf32>
      %656 = vector.shape_cast %655 : vector<24xf32> to vector<24x1xf32>
      %cst_205 = arith.constant 3.200000e+01 : f32
      %657 = vector.broadcast %cst_205 : f32 to vector<24x1xf32>
      %658 = arith.divf %656, %657 : vector<24x1xf32>
      %659 = vector.broadcast %651 : vector<24x1xf32> to vector<24x32xf32>
      %660 = arith.subf %641, %659 : vector<24x32xf32>
      %cst_206 = arith.constant 9.99999974E-6 : f32
      %661 = vector.broadcast %cst_206 : f32 to vector<24x1xf32>
      %662 = arith.addf %658, %661 : vector<24x1xf32>
      %663 = math.rsqrt %662 : vector<24x1xf32>
      %664 = vector.broadcast %663 : vector<24x1xf32> to vector<24x32xf32>
      %665 = arith.mulf %660, %664 : vector<24x32xf32>
      %666 = vector.broadcast %644 : vector<1x32xf32> to vector<24x32xf32>
      %667 = arith.mulf %665, %666 : vector<24x32xf32>
      %668 = vector.broadcast %647 : vector<1x32xf32> to vector<24x32xf32>
      %669 = arith.addf %667, %668 : vector<24x32xf32>
      scf.yield %669 : vector<24x32xf32>
    }
    %c2_i32_91 = arith.constant 2 : i32
    %cst_92 = arith.constant 0.000000e+00 : f32
    %363 = vector.broadcast %cst_92 : f32 to vector<2x128xf32>
    %c0_93 = arith.constant 0 : index
    %c0_94 = arith.constant 0 : index
    %364 = vector.load %arg32[%c0_93, %c0_94] : memref<1x128xf32, #tpu.memory_space<vmem>>, vector<1x128xf32>
    %365 = vector.broadcast %364 : vector<1x128xf32> to vector<2x128xf32>
    %366 = arith.addf %363, %365 : vector<2x128xf32>
    %367 = vector.extract_strided_slice %362 {offsets = [0, 0], sizes = [1, 32], strides = [1, 1]} : vector<24x32xf32> to vector<1x32xf32>
    %368 = vector.extract_strided_slice %362 {offsets = [12, 0], sizes = [1, 32], strides = [1, 1]} : vector<24x32xf32> to vector<1x32xf32>
    %369 = tpu.concatenate %367, %368 in 0 : vector<1x32xf32>, vector<1x32xf32> -> vector<2x32xf32>
    %c0_95 = arith.constant 0 : index
    %c0_96 = arith.constant 0 : index
    %c0_97 = arith.constant 0 : index
    %370 = vector.load %arg31[%c0_95, %c0_96, %c0_97] : memref<12x32x128xf32, #tpu.memory_space<vmem>>, vector<1x32x128xf32>
    %371 = vector.shape_cast %370 : vector<1x32x128xf32> to vector<32x128xf32>
    %cst_98 = arith.constant dense<0.000000e+00> : vector<2x128xf32>
    %372 = tpu.matmul %369, %371, %cst_98 {dimension_numbers = #tpu.dot_dimension_numbers<[1], [0], [0], [1], [0, 0, 1, 1], [], []>} : vector<2x32xf32>, vector<32x128xf32>, vector<2x128xf32> -> vector<2x128xf32>
    %373 = arith.addf %366, %372 : vector<2x128xf32>
    %374 = vector.extract_strided_slice %362 {offsets = [1, 0], sizes = [1, 32], strides = [1, 1]} : vector<24x32xf32> to vector<1x32xf32>
    %375 = vector.extract_strided_slice %362 {offsets = [13, 0], sizes = [1, 32], strides = [1, 1]} : vector<24x32xf32> to vector<1x32xf32>
    %376 = tpu.concatenate %374, %375 in 0 : vector<1x32xf32>, vector<1x32xf32> -> vector<2x32xf32>
    %c1_99 = arith.constant 1 : index
    %c0_100 = arith.constant 0 : index
    %c0_101 = arith.constant 0 : index
    %377 = vector.load %arg31[%c1_99, %c0_100, %c0_101] : memref<12x32x128xf32, #tpu.memory_space<vmem>>, vector<1x32x128xf32>
    %378 = vector.shape_cast %377 : vector<1x32x128xf32> to vector<32x128xf32>
    %cst_102 = arith.constant dense<0.000000e+00> : vector<2x128xf32>
    %379 = tpu.matmul %376, %378, %cst_102 {dimension_numbers = #tpu.dot_dimension_numbers<[1], [0], [0], [1], [0, 0, 1, 1], [], []>} : vector<2x32xf32>, vector<32x128xf32>, vector<2x128xf32> -> vector<2x128xf32>
    %380 = arith.addf %373, %379 : vector<2x128xf32>
    %381 = vector.extract_strided_slice %362 {offsets = [2, 0], sizes = [1, 32], strides = [1, 1]} : vector<24x32xf32> to vector<1x32xf32>
    %382 = vector.extract_strided_slice %362 {offsets = [14, 0], sizes = [1, 32], strides = [1, 1]} : vector<24x32xf32> to vector<1x32xf32>
    %383 = tpu.concatenate %381, %382 in 0 : vector<1x32xf32>, vector<1x32xf32> -> vector<2x32xf32>
    %c2_103 = arith.constant 2 : index
    %c0_104 = arith.constant 0 : index
    %c0_105 = arith.constant 0 : index
    %384 = vector.load %arg31[%c2_103, %c0_104, %c0_105] : memref<12x32x128xf32, #tpu.memory_space<vmem>>, vector<1x32x128xf32>
    %385 = vector.shape_cast %384 : vector<1x32x128xf32> to vector<32x128xf32>
    %cst_106 = arith.constant dense<0.000000e+00> : vector<2x128xf32>
    %386 = tpu.matmul %383, %385, %cst_106 {dimension_numbers = #tpu.dot_dimension_numbers<[1], [0], [0], [1], [0, 0, 1, 1], [], []>} : vector<2x32xf32>, vector<32x128xf32>, vector<2x128xf32> -> vector<2x128xf32>
    %387 = arith.addf %380, %386 : vector<2x128xf32>
    %388 = vector.extract_strided_slice %362 {offsets = [3, 0], sizes = [1, 32], strides = [1, 1]} : vector<24x32xf32> to vector<1x32xf32>
    %389 = vector.extract_strided_slice %362 {offsets = [15, 0], sizes = [1, 32], strides = [1, 1]} : vector<24x32xf32> to vector<1x32xf32>
    %390 = tpu.concatenate %388, %389 in 0 : vector<1x32xf32>, vector<1x32xf32> -> vector<2x32xf32>
    %c3 = arith.constant 3 : index
    %c0_107 = arith.constant 0 : index
    %c0_108 = arith.constant 0 : index
    %391 = vector.load %arg31[%c3, %c0_107, %c0_108] : memref<12x32x128xf32, #tpu.memory_space<vmem>>, vector<1x32x128xf32>
    %392 = vector.shape_cast %391 : vector<1x32x128xf32> to vector<32x128xf32>
    %cst_109 = arith.constant dense<0.000000e+00> : vector<2x128xf32>
    %393 = tpu.matmul %390, %392, %cst_109 {dimension_numbers = #tpu.dot_dimension_numbers<[1], [0], [0], [1], [0, 0, 1, 1], [], []>} : vector<2x32xf32>, vector<32x128xf32>, vector<2x128xf32> -> vector<2x128xf32>
    %394 = arith.addf %387, %393 : vector<2x128xf32>
    %395 = vector.extract_strided_slice %362 {offsets = [4, 0], sizes = [1, 32], strides = [1, 1]} : vector<24x32xf32> to vector<1x32xf32>
    %396 = vector.extract_strided_slice %362 {offsets = [16, 0], sizes = [1, 32], strides = [1, 1]} : vector<24x32xf32> to vector<1x32xf32>
    %397 = tpu.concatenate %395, %396 in 0 : vector<1x32xf32>, vector<1x32xf32> -> vector<2x32xf32>
    %c4 = arith.constant 4 : index
    %c0_110 = arith.constant 0 : index
    %c0_111 = arith.constant 0 : index
    %398 = vector.load %arg31[%c4, %c0_110, %c0_111] : memref<12x32x128xf32, #tpu.memory_space<vmem>>, vector<1x32x128xf32>
    %399 = vector.shape_cast %398 : vector<1x32x128xf32> to vector<32x128xf32>
    %cst_112 = arith.constant dense<0.000000e+00> : vector<2x128xf32>
    %400 = tpu.matmul %397, %399, %cst_112 {dimension_numbers = #tpu.dot_dimension_numbers<[1], [0], [0], [1], [0, 0, 1, 1], [], []>} : vector<2x32xf32>, vector<32x128xf32>, vector<2x128xf32> -> vector<2x128xf32>
    %401 = arith.addf %394, %400 : vector<2x128xf32>
    %402 = vector.extract_strided_slice %362 {offsets = [5, 0], sizes = [1, 32], strides = [1, 1]} : vector<24x32xf32> to vector<1x32xf32>
    %403 = vector.extract_strided_slice %362 {offsets = [17, 0], sizes = [1, 32], strides = [1, 1]} : vector<24x32xf32> to vector<1x32xf32>
    %404 = tpu.concatenate %402, %403 in 0 : vector<1x32xf32>, vector<1x32xf32> -> vector<2x32xf32>
    %c5 = arith.constant 5 : index
    %c0_113 = arith.constant 0 : index
    %c0_114 = arith.constant 0 : index
    %405 = vector.load %arg31[%c5, %c0_113, %c0_114] : memref<12x32x128xf32, #tpu.memory_space<vmem>>, vector<1x32x128xf32>
    %406 = vector.shape_cast %405 : vector<1x32x128xf32> to vector<32x128xf32>
    %cst_115 = arith.constant dense<0.000000e+00> : vector<2x128xf32>
    %407 = tpu.matmul %404, %406, %cst_115 {dimension_numbers = #tpu.dot_dimension_numbers<[1], [0], [0], [1], [0, 0, 1, 1], [], []>} : vector<2x32xf32>, vector<32x128xf32>, vector<2x128xf32> -> vector<2x128xf32>
    %408 = arith.addf %401, %407 : vector<2x128xf32>
    %409 = vector.extract_strided_slice %362 {offsets = [6, 0], sizes = [1, 32], strides = [1, 1]} : vector<24x32xf32> to vector<1x32xf32>
    %410 = vector.extract_strided_slice %362 {offsets = [18, 0], sizes = [1, 32], strides = [1, 1]} : vector<24x32xf32> to vector<1x32xf32>
    %411 = tpu.concatenate %409, %410 in 0 : vector<1x32xf32>, vector<1x32xf32> -> vector<2x32xf32>
    %c6 = arith.constant 6 : index
    %c0_116 = arith.constant 0 : index
    %c0_117 = arith.constant 0 : index
    %412 = vector.load %arg31[%c6, %c0_116, %c0_117] : memref<12x32x128xf32, #tpu.memory_space<vmem>>, vector<1x32x128xf32>
    %413 = vector.shape_cast %412 : vector<1x32x128xf32> to vector<32x128xf32>
    %cst_118 = arith.constant dense<0.000000e+00> : vector<2x128xf32>
    %414 = tpu.matmul %411, %413, %cst_118 {dimension_numbers = #tpu.dot_dimension_numbers<[1], [0], [0], [1], [0, 0, 1, 1], [], []>} : vector<2x32xf32>, vector<32x128xf32>, vector<2x128xf32> -> vector<2x128xf32>
    %415 = arith.addf %408, %414 : vector<2x128xf32>
    %416 = vector.extract_strided_slice %362 {offsets = [7, 0], sizes = [1, 32], strides = [1, 1]} : vector<24x32xf32> to vector<1x32xf32>
    %417 = vector.extract_strided_slice %362 {offsets = [19, 0], sizes = [1, 32], strides = [1, 1]} : vector<24x32xf32> to vector<1x32xf32>
    %418 = tpu.concatenate %416, %417 in 0 : vector<1x32xf32>, vector<1x32xf32> -> vector<2x32xf32>
    %c7 = arith.constant 7 : index
    %c0_119 = arith.constant 0 : index
    %c0_120 = arith.constant 0 : index
    %419 = vector.load %arg31[%c7, %c0_119, %c0_120] : memref<12x32x128xf32, #tpu.memory_space<vmem>>, vector<1x32x128xf32>
    %420 = vector.shape_cast %419 : vector<1x32x128xf32> to vector<32x128xf32>
    %cst_121 = arith.constant dense<0.000000e+00> : vector<2x128xf32>
    %421 = tpu.matmul %418, %420, %cst_121 {dimension_numbers = #tpu.dot_dimension_numbers<[1], [0], [0], [1], [0, 0, 1, 1], [], []>} : vector<2x32xf32>, vector<32x128xf32>, vector<2x128xf32> -> vector<2x128xf32>
    %422 = arith.addf %415, %421 : vector<2x128xf32>
    %423 = vector.extract_strided_slice %362 {offsets = [8, 0], sizes = [1, 32], strides = [1, 1]} : vector<24x32xf32> to vector<1x32xf32>
    %424 = vector.extract_strided_slice %362 {offsets = [20, 0], sizes = [1, 32], strides = [1, 1]} : vector<24x32xf32> to vector<1x32xf32>
    %425 = tpu.concatenate %423, %424 in 0 : vector<1x32xf32>, vector<1x32xf32> -> vector<2x32xf32>
    %c8 = arith.constant 8 : index
    %c0_122 = arith.constant 0 : index
    %c0_123 = arith.constant 0 : index
    %426 = vector.load %arg31[%c8, %c0_122, %c0_123] : memref<12x32x128xf32, #tpu.memory_space<vmem>>, vector<1x32x128xf32>
    %427 = vector.shape_cast %426 : vector<1x32x128xf32> to vector<32x128xf32>
    %cst_124 = arith.constant dense<0.000000e+00> : vector<2x128xf32>
    %428 = tpu.matmul %425, %427, %cst_124 {dimension_numbers = #tpu.dot_dimension_numbers<[1], [0], [0], [1], [0, 0, 1, 1], [], []>} : vector<2x32xf32>, vector<32x128xf32>, vector<2x128xf32> -> vector<2x128xf32>
    %429 = arith.addf %422, %428 : vector<2x128xf32>
    %430 = vector.extract_strided_slice %362 {offsets = [9, 0], sizes = [1, 32], strides = [1, 1]} : vector<24x32xf32> to vector<1x32xf32>
    %431 = vector.extract_strided_slice %362 {offsets = [21, 0], sizes = [1, 32], strides = [1, 1]} : vector<24x32xf32> to vector<1x32xf32>
    %432 = tpu.concatenate %430, %431 in 0 : vector<1x32xf32>, vector<1x32xf32> -> vector<2x32xf32>
    %c9 = arith.constant 9 : index
    %c0_125 = arith.constant 0 : index
    %c0_126 = arith.constant 0 : index
    %433 = vector.load %arg31[%c9, %c0_125, %c0_126] : memref<12x32x128xf32, #tpu.memory_space<vmem>>, vector<1x32x128xf32>
    %434 = vector.shape_cast %433 : vector<1x32x128xf32> to vector<32x128xf32>
    %cst_127 = arith.constant dense<0.000000e+00> : vector<2x128xf32>
    %435 = tpu.matmul %432, %434, %cst_127 {dimension_numbers = #tpu.dot_dimension_numbers<[1], [0], [0], [1], [0, 0, 1, 1], [], []>} : vector<2x32xf32>, vector<32x128xf32>, vector<2x128xf32> -> vector<2x128xf32>
    %436 = arith.addf %429, %435 : vector<2x128xf32>
    %437 = vector.extract_strided_slice %362 {offsets = [10, 0], sizes = [1, 32], strides = [1, 1]} : vector<24x32xf32> to vector<1x32xf32>
    %438 = vector.extract_strided_slice %362 {offsets = [22, 0], sizes = [1, 32], strides = [1, 1]} : vector<24x32xf32> to vector<1x32xf32>
    %439 = tpu.concatenate %437, %438 in 0 : vector<1x32xf32>, vector<1x32xf32> -> vector<2x32xf32>
    %c10 = arith.constant 10 : index
    %c0_128 = arith.constant 0 : index
    %c0_129 = arith.constant 0 : index
    %440 = vector.load %arg31[%c10, %c0_128, %c0_129] : memref<12x32x128xf32, #tpu.memory_space<vmem>>, vector<1x32x128xf32>
    %441 = vector.shape_cast %440 : vector<1x32x128xf32> to vector<32x128xf32>
    %cst_130 = arith.constant dense<0.000000e+00> : vector<2x128xf32>
    %442 = tpu.matmul %439, %441, %cst_130 {dimension_numbers = #tpu.dot_dimension_numbers<[1], [0], [0], [1], [0, 0, 1, 1], [], []>} : vector<2x32xf32>, vector<32x128xf32>, vector<2x128xf32> -> vector<2x128xf32>
    %443 = arith.addf %436, %442 : vector<2x128xf32>
    %444 = vector.extract_strided_slice %362 {offsets = [11, 0], sizes = [1, 32], strides = [1, 1]} : vector<24x32xf32> to vector<1x32xf32>
    %445 = vector.extract_strided_slice %362 {offsets = [23, 0], sizes = [1, 32], strides = [1, 1]} : vector<24x32xf32> to vector<1x32xf32>
    %446 = tpu.concatenate %444, %445 in 0 : vector<1x32xf32>, vector<1x32xf32> -> vector<2x32xf32>
    %c11 = arith.constant 11 : index
    %c0_131 = arith.constant 0 : index
    %c0_132 = arith.constant 0 : index
    %447 = vector.load %arg31[%c11, %c0_131, %c0_132] : memref<12x32x128xf32, #tpu.memory_space<vmem>>, vector<1x32x128xf32>
    %448 = vector.shape_cast %447 : vector<1x32x128xf32> to vector<32x128xf32>
    %cst_133 = arith.constant dense<0.000000e+00> : vector<2x128xf32>
    %449 = tpu.matmul %446, %448, %cst_133 {dimension_numbers = #tpu.dot_dimension_numbers<[1], [0], [0], [1], [0, 0, 1, 1], [], []>} : vector<2x32xf32>, vector<32x128xf32>, vector<2x128xf32> -> vector<2x128xf32>
    %450 = arith.addf %443, %449 : vector<2x128xf32>
    %cst_134 = arith.constant dense<0xFF800000> : vector<2xf32>
    %451 = vector.multi_reduction <maximumf>, %450, %cst_134 [1] : vector<2x128xf32> to vector<2xf32>
    %452 = vector.shape_cast %451 : vector<2xf32> to vector<2x1xf32>
    %453 = vector.broadcast %452 : vector<2x1xf32> to vector<2x128xf32>
    %454 = arith.subf %450, %453 : vector<2x128xf32>
    %455 = math.exp %454 : vector<2x128xf32>
    %cst_135 = arith.constant dense<0.000000e+00> : vector<2xf32>
    %456 = vector.multi_reduction <add>, %455, %cst_135 [1] : vector<2x128xf32> to vector<2xf32>
    %457 = vector.shape_cast %456 : vector<2xf32> to vector<2x1xf32>
    %458 = math.log %457 : vector<2x1xf32>
    %459 = arith.addf %452, %458 : vector<2x1xf32>
    %460 = vector.broadcast %459 : vector<2x1xf32> to vector<2x128xf32>
    %461 = arith.subf %450, %460 : vector<2x128xf32>
    %c0_136 = arith.constant 0 : index
    %c0_137 = arith.constant 0 : index
    %462 = vector.load %arg33[%c0_136, %c0_137] : memref<2x128xf32, #tpu.memory_space<vmem>>, vector<2x128xf32>
    tpu.vector_store %arg33[%c0_136, %c0_137], %461 {strides = array<i32>} : memref<2x128xf32, #tpu.memory_space<vmem>>, vector<2x128xf32>,
    return
  }
  func.func @transform_0(%arg0: i32) -> (i32, i32, i32, i32) {
    %c0_i32 = arith.constant 0 : i32
    %c0_i32_0 = arith.constant 0 : i32
    %c0_i32_1 = arith.constant 0 : i32
    %c0_i32_2 = arith.constant 0 : i32
    return %arg0, %c0_i32, %c0_i32_0, %c0_i32_1 : i32, i32, i32, i32
  }
  func.func @transform_1(%arg0: i32) -> (i32, i32, i32, i32) {
    %c0_i32 = arith.constant 0 : i32
    %c0_i32_0 = arith.constant 0 : i32
    %c0_i32_1 = arith.constant 0 : i32
    %c0_i32_2 = arith.constant 0 : i32
    return %arg0, %c0_i32, %c0_i32_0, %c0_i32_1 : i32, i32, i32, i32
  }
  func.func @transform_2(%arg0: i32) -> (i32, i32) {
    %c0_i32 = arith.constant 0 : i32
    %c0_i32_0 = arith.constant 0 : i32
    %c0_i32_1 = arith.constant 0 : i32
    return %c0_i32, %c0_i32_0 : i32, i32
  }
  func.func @transform_3(%arg0: i32) -> (i32, i32) {
    %c0_i32 = arith.constant 0 : i32
    %c0_i32_0 = arith.constant 0 : i32
    %c0_i32_1 = arith.constant 0 : i32
    return %c0_i32, %c0_i32_0 : i32, i32
  }
  func.func @transform_4(%arg0: i32) -> (i32, i32) {
    %c0_i32 = arith.constant 0 : i32
    %c0_i32_0 = arith.constant 0 : i32
    %c0_i32_1 = arith.constant 0 : i32
    return %c0_i32, %c0_i32_0 : i32, i32
  }
  func.func @transform_5(%arg0: i32) -> (i32, i32) {
    %c0_i32 = arith.constant 0 : i32
    %c0_i32_0 = arith.constant 0 : i32
    %c0_i32_1 = arith.constant 0 : i32
    return %c0_i32, %c0_i32_0 : i32, i32
  }
  func.func @transform_6(%arg0: i32) -> (i32, i32) {
    %c0_i32 = arith.constant 0 : i32
    %c0_i32_0 = arith.constant 0 : i32
    %c0_i32_1 = arith.constant 0 : i32
    return %c0_i32, %c0_i32_0 : i32, i32
  }
  func.func @transform_7(%arg0: i32) -> (i32, i32) {
    %c0_i32 = arith.constant 0 : i32
    %c0_i32_0 = arith.constant 0 : i32
    %c0_i32_1 = arith.constant 0 : i32
    return %c0_i32, %c0_i32_0 : i32, i32
  }
  func.func @transform_8(%arg0: i32) -> (i32, i32) {
    %c0_i32 = arith.constant 0 : i32
    %c0_i32_0 = arith.constant 0 : i32
    %c0_i32_1 = arith.constant 0 : i32
    return %c0_i32, %c0_i32_0 : i32, i32
  }
  func.func @transform_9(%arg0: i32) -> (i32, i32) {
    %c0_i32 = arith.constant 0 : i32
    %c0_i32_0 = arith.constant 0 : i32
    %c0_i32_1 = arith.constant 0 : i32
    return %c0_i32, %c0_i32_0 : i32, i32
  }
  func.func @transform_10(%arg0: i32) -> (i32, i32) {
    %c0_i32 = arith.constant 0 : i32
    %c0_i32_0 = arith.constant 0 : i32
    %c0_i32_1 = arith.constant 0 : i32
    return %c0_i32, %c0_i32_0 : i32, i32
  }
  func.func @transform_11(%arg0: i32) -> (i32, i32, i32) {
    %c0_i32 = arith.constant 0 : i32
    %c0_i32_0 = arith.constant 0 : i32
    %c0_i32_1 = arith.constant 0 : i32
    %c0_i32_2 = arith.constant 0 : i32
    return %c0_i32, %c0_i32_0, %c0_i32_1 : i32, i32, i32
  }
  func.func @transform_12(%arg0: i32) -> (i32, i32) {
    %c0_i32 = arith.constant 0 : i32
    %c0_i32_0 = arith.constant 0 : i32
    %c0_i32_1 = arith.constant 0 : i32
    return %c0_i32, %c0_i32_0 : i32, i32
  }
  func.func @transform_13(%arg0: i32) -> (i32, i32) {
    %c0_i32 = arith.constant 0 : i32
    %c0_i32_0 = arith.constant 0 : i32
    %c0_i32_1 = arith.constant 0 : i32
    return %c0_i32, %c0_i32_0 : i32, i32
  }
  func.func @transform_14(%arg0: i32) -> (i32, i32, i32) {
    %c0_i32 = arith.constant 0 : i32
    %c0_i32_0 = arith.constant 0 : i32
    %c0_i32_1 = arith.constant 0 : i32
    %c0_i32_2 = arith.constant 0 : i32
    return %c0_i32, %c0_i32_0, %c0_i32_1 : i32, i32, i32
  }
  func.func @transform_15(%arg0: i32) -> (i32, i32, i32) {
    %c0_i32 = arith.constant 0 : i32
    %c0_i32_0 = arith.constant 0 : i32
    %c0_i32_1 = arith.constant 0 : i32
    %c0_i32_2 = arith.constant 0 : i32
    return %c0_i32, %c0_i32_0, %c0_i32_1 : i32, i32, i32
  }
  func.func @transform_16(%arg0: i32) -> (i32, i32, i32) {
    %c0_i32 = arith.constant 0 : i32
    %c0_i32_0 = arith.constant 0 : i32
    %c0_i32_1 = arith.constant 0 : i32
    %c0_i32_2 = arith.constant 0 : i32
    return %c0_i32, %c0_i32_0, %c0_i32_1 : i32, i32, i32
  }
  func.func @transform_17(%arg0: i32) -> (i32, i32, i32) {
    %c0_i32 = arith.constant 0 : i32
    %c0_i32_0 = arith.constant 0 : i32
    %c0_i32_1 = arith.constant 0 : i32
    %c0_i32_2 = arith.constant 0 : i32
    return %c0_i32, %c0_i32_0, %c0_i32_1 : i32, i32, i32
  }
  func.func @transform_18(%arg0: i32) -> (i32, i32, i32) {
    %c0_i32 = arith.constant 0 : i32
    %c0_i32_0 = arith.constant 0 : i32
    %c0_i32_1 = arith.constant 0 : i32
    %c0_i32_2 = arith.constant 0 : i32
    return %c0_i32, %c0_i32_0, %c0_i32_1 : i32, i32, i32
  }
  func.func @transform_19(%arg0: i32) -> (i32, i32, i32) {
    %c0_i32 = arith.constant 0 : i32
    %c0_i32_0 = arith.constant 0 : i32
    %c0_i32_1 = arith.constant 0 : i32
    %c0_i32_2 = arith.constant 0 : i32
    return %c0_i32, %c0_i32_0, %c0_i32_1 : i32, i32, i32
  }
  func.func @transform_20(%arg0: i32) -> (i32, i32, i32) {
    %c0_i32 = arith.constant 0 : i32
    %c0_i32_0 = arith.constant 0 : i32
    %c0_i32_1 = arith.constant 0 : i32
    %c0_i32_2 = arith.constant 0 : i32
    return %c0_i32, %c0_i32_0, %c0_i32_1 : i32, i32, i32
  }
  func.func @transform_21(%arg0: i32) -> (i32, i32, i32) {
    %c0_i32 = arith.constant 0 : i32
    %c0_i32_0 = arith.constant 0 : i32
    %c0_i32_1 = arith.constant 0 : i32
    %c0_i32_2 = arith.constant 0 : i32
    return %c0_i32, %c0_i32_0, %c0_i32_1 : i32, i32, i32
  }
  func.func @transform_22(%arg0: i32) -> (i32, i32, i32) {
    %c0_i32 = arith.constant 0 : i32
    %c0_i32_0 = arith.constant 0 : i32
    %c0_i32_1 = arith.constant 0 : i32
    %c0_i32_2 = arith.constant 0 : i32
    return %c0_i32, %c0_i32_0, %c0_i32_1 : i32, i32, i32
  }
  func.func @transform_23(%arg0: i32) -> (i32, i32, i32) {
    %c0_i32 = arith.constant 0 : i32
    %c0_i32_0 = arith.constant 0 : i32
    %c0_i32_1 = arith.constant 0 : i32
    %c0_i32_2 = arith.constant 0 : i32
    return %c0_i32, %c0_i32_0, %c0_i32_1 : i32, i32, i32
  }
  func.func @transform_24(%arg0: i32) -> (i32, i32, i32) {
    %c0_i32 = arith.constant 0 : i32
    %c0_i32_0 = arith.constant 0 : i32
    %c0_i32_1 = arith.constant 0 : i32
    %c0_i32_2 = arith.constant 0 : i32
    return %c0_i32, %c0_i32_0, %c0_i32_1 : i32, i32, i32
  }
  func.func @transform_25(%arg0: i32) -> (i32, i32, i32) {
    %c0_i32 = arith.constant 0 : i32
    %c0_i32_0 = arith.constant 0 : i32
    %c0_i32_1 = arith.constant 0 : i32
    %c0_i32_2 = arith.constant 0 : i32
    return %c0_i32, %c0_i32_0, %c0_i32_1 : i32, i32, i32
  }
  func.func @transform_26(%arg0: i32) -> (i32, i32, i32) {
    %c0_i32 = arith.constant 0 : i32
    %c0_i32_0 = arith.constant 0 : i32
    %c0_i32_1 = arith.constant 0 : i32
    %c0_i32_2 = arith.constant 0 : i32
    return %c0_i32, %c0_i32_0, %c0_i32_1 : i32, i32, i32
  }
  func.func @transform_27(%arg0: i32) -> (i32, i32, i32) {
    %c0_i32 = arith.constant 0 : i32
    %c0_i32_0 = arith.constant 0 : i32
    %c0_i32_1 = arith.constant 0 : i32
    %c0_i32_2 = arith.constant 0 : i32
    return %c0_i32, %c0_i32_0, %c0_i32_1 : i32, i32, i32
  }
  func.func @transform_28(%arg0: i32) -> (i32, i32, i32) {
    %c0_i32 = arith.constant 0 : i32
    %c0_i32_0 = arith.constant 0 : i32
    %c0_i32_1 = arith.constant 0 : i32
    %c0_i32_2 = arith.constant 0 : i32
    return %c0_i32, %c0_i32_0, %c0_i32_1 : i32, i32, i32
  }
  func.func @transform_29(%arg0: i32) -> (i32, i32, i32) {
    %c0_i32 = arith.constant 0 : i32
    %c0_i32_0 = arith.constant 0 : i32
    %c0_i32_1 = arith.constant 0 : i32
    %c0_i32_2 = arith.constant 0 : i32
    return %c0_i32, %c0_i32_0, %c0_i32_1 : i32, i32, i32
  }
  func.func @transform_30(%arg0: i32) -> (i32, i32, i32) {
    %c0_i32 = arith.constant 0 : i32
    %c0_i32_0 = arith.constant 0 : i32
    %c0_i32_1 = arith.constant 0 : i32
    %c0_i32_2 = arith.constant 0 : i32
    return %c0_i32, %c0_i32_0, %c0_i32_1 : i32, i32, i32
  }
  func.func @transform_31(%arg0: i32) -> (i32, i32) {
    %c0_i32 = arith.constant 0 : i32
    %c0_i32_0 = arith.constant 0 : i32
    %c0_i32_1 = arith.constant 0 : i32
    return %c0_i32, %c0_i32_0 : i32, i32
  }
  func.func @transform_32(%arg0: i32) -> (i32, i32) {
    %c0_i32 = arith.constant 0 : i32
    %c0_i32_0 = arith.constant 0 : i32
    return %arg0, %c0_i32 : i32, i32
  }
}

</mosaic_0001>

<llo_original>
// kernel: tpu_custom_call.1
$region0: #{tpu_custom_call.1}
  #allocation0 [shape = 'u32[]', space=smem, size = 0x4, offset = 0x4, fixed_abs, tag = 'smem constant byte address 0x4 - core index']
  #allocation1 [shape = 'u32[72,128]{1,0:T(1,128)}', space=vmem, size = 0x9000, scoped, tag = 'internal scratch']
  %s0 = inlined_call_operand.smem [shape: u32[33], index: -1, kind: input, shape index: {}]
  %s1 = sld [smem:[%s0]]
  %s2 = scalar_lea.smem %s0, 1
  %s3 = sld [smem:[%s2]]
  %s4 = scalar_lea.smem %s0, 2
  %s5 = sld [smem:[%s4]]
  %s6 = scalar_lea.smem %s0, 3
  %s7 = sld [smem:[%s6]]
  %s8 = scalar_lea.smem %s0, 4
  %s9 = sld [smem:[%s8]]
  %s10 = scalar_lea.smem %s0, 5
  %s11 = sld [smem:[%s10]]
  %s12 = scalar_lea.smem %s0, 6
  %s13 = sld [smem:[%s12]]
  %s14 = scalar_lea.smem %s0, 7
  %s15 = sld [smem:[%s14]]
  %s16 = scalar_lea.smem %s0, 8
  %s17 = sld [smem:[%s16]]
  %s18 = scalar_lea.smem %s0, 9
  %s19 = sld [smem:[%s18]]
  %s20 = scalar_lea.smem %s0, 10
  %s21 = sld [smem:[%s20]]
  %s22 = scalar_lea.smem %s0, 11
  %s23 = sld [smem:[%s22]]
  %s24 = scalar_lea.smem %s0, 12
  %s25 = sld [smem:[%s24]]
  %s26 = scalar_lea.smem %s0, 13
  %s27 = sld [smem:[%s26]]
  %s28 = scalar_lea.smem %s0, 14
  %s29 = sld [smem:[%s28]]
  %s30 = scalar_lea.smem %s0, 15
  %s31 = sld [smem:[%s30]]
  %s32 = scalar_lea.smem %s0, 16
  %s33 = sld [smem:[%s32]]
  %s34 = scalar_lea.smem %s0, 17
  %s35 = sld [smem:[%s34]]
  %s36 = scalar_lea.smem %s0, 18
  %s37 = sld [smem:[%s36]]
  %s38 = scalar_lea.smem %s0, 19
  %s39 = sld [smem:[%s38]]
  %s40 = scalar_lea.smem %s0, 20
  %s41 = sld [smem:[%s40]]
  %s42 = scalar_lea.smem %s0, 21
  %s43 = sld [smem:[%s42]]
  %s44 = scalar_lea.smem %s0, 22
  %s45 = sld [smem:[%s44]]
  %s46 = scalar_lea.smem %s0, 23
  %s47 = sld [smem:[%s46]]
  %s48 = scalar_lea.smem %s0, 24
  %s49 = sld [smem:[%s48]]
  %s50 = scalar_lea.smem %s0, 25
  %s51 = sld [smem:[%s50]]
  %s52 = scalar_lea.smem %s0, 26
  %s53 = sld [smem:[%s52]]
  %s54 = scalar_lea.smem %s0, 27
  %s55 = sld [smem:[%s54]]
  %s56 = scalar_lea.smem %s0, 28
  %s57 = sld [smem:[%s56]]
  %s58 = scalar_lea.smem %s0, 29
  %s59 = sld [smem:[%s58]]
  %s60 = scalar_lea.smem %s0, 30
  %s61 = sld [smem:[%s60]]
  %s62 = scalar_lea.smem %s0, 31
  %s63 = sld [smem:[%s62]]
  %s64 = scalar_lea.smem %s0, 32
  %s65 = sld [smem:[%s64]]
  %s66 = sld [smem:[#allocation0]]
  $region233: #{tpu_custom_call.1} parent=0
    _
  %s68 = ssub.s32 1, %s66
  %s69 = scalar_select 0, %s68, %s66
  $region1: #{tpu_custom_call.1} parent=0
    #allocation2 [shape = 'u8[6144]{0}', space=vmem, size = 0x1800, scoped, tag = 'input window, operand 1, single buffered']
    #allocation3 [shape = 's32[1]{0}', space=sflag, size = 0x4, scoped, tag = 'scoped memory for tpu_custom_call.1']
    #allocation4 [shape = 's32[1]{0}', space=sflag, size = 0x4, scoped, tag = 'scoped memory for tpu_custom_call.1']
    #allocation5 [shape = 'u8[12288]{0}', space=vmem, size = 0x3000, scoped, tag = 'input window, operand 2, single buffered']
    #allocation6 [shape = 's32[1]{0}', space=sflag, size = 0x4, scoped, tag = 'scoped memory for tpu_custom_call.1']
    #allocation7 [shape = 'u8[4096]{0}', space=vmem, size = 0x1000, scoped, tag = 'input window, operand 3, single buffered']
    #allocation8 [shape = 'u8[512]{0}', space=vmem, size = 0x400, scoped, tag = 'input window, operand 4, single buffered']
    #allocation9 [shape = 's32[1]{0}', space=sflag, size = 0x4, scoped, tag = 'scoped memory for tpu_custom_call.1']
    #allocation10 [shape = 'u8[2048]{0}', space=vmem, size = 0x800, scoped, tag = 'input window, operand 5, single buffered']
    #allocation11 [shape = 'u8[4096]{0}', space=vmem, size = 0x1000, scoped, tag = 'input window, operand 7, single buffered']
    #allocation12 [shape = 's32[1]{0}', space=sflag, size = 0x4, scoped, tag = 'scoped memory for tpu_custom_call.1']
    #allocation13 [shape = 'u8[512]{0}', space=vmem, size = 0x400, scoped, tag = 'input window, operand 8, single buffered']
    #allocation14 [shape = 'u8[2048]{0}', space=vmem, size = 0x800, scoped, tag = 'input window, operand 9, single buffered']
    #allocation15 [shape = 's32[1]{0}', space=sflag, size = 0x4, scoped, tag = 'scoped memory for tpu_custom_call.1']
    #allocation16 [shape = 'u8[512]{0}', space=vmem, size = 0x400, scoped, tag = 'input window, operand 12, single buffered']
    #allocation17 [shape = 'u8[8192]{0}', space=vmem, size = 0x2000, scoped, tag = 'input window, operand 13, single buffered']
    #allocation18 [shape = 's32[1]{0}', space=sflag, size = 0x4, scoped, tag = 'scoped memory for tpu_custom_call.1']
    #allocation19 [shape = 'u8[1024]{0}', space=vmem, size = 0x400, scoped, tag = 'input window, operand 17, single buffered']
    #allocation20 [shape = 'u8[1024]{0}', space=vmem, size = 0x400, scoped, tag = 'input window, operand 19, single buffered']
    #allocation21 [shape = 's32[1]{0}', space=sflag, size = 0x4, scoped, tag = 'scoped memory for tpu_custom_call.1']
    #allocation22 [shape = 'u8[16384]{0}', space=vmem, size = 0x4000, scoped, tag = 'input window, operand 20, single buffered']
    #allocation23 [shape = 'u8[1024]{0}', space=vmem, size = 0x400, scoped, tag = 'input window, operand 21, single buffered']
    #allocation24 [shape = 's32[1]{0}', space=sflag, size = 0x4, scoped, tag = 'scoped memory for tpu_custom_call.1']
    #allocation25 [shape = 'u8[1024]{0}', space=vmem, size = 0x400, scoped, tag = 'input window, operand 22, single buffered']
    #allocation26 [shape = 'u8[1024]{0}', space=vmem, size = 0x400, scoped, tag = 'input window, operand 23, single buffered']
    #allocation27 [shape = 's32[1]{0}', space=sflag, size = 0x4, scoped, tag = 'scoped memory for tpu_custom_call.1']
    #allocation28 [shape = 'u8[16384]{0}', space=vmem, size = 0x4000, scoped, tag = 'input window, operand 24, single buffered']
    #allocation29 [shape = 'u8[1024]{0}', space=vmem, size = 0x400, scoped, tag = 'input window, operand 25, single buffered']
    #allocation30 [shape = 's32[1]{0}', space=sflag, size = 0x4, scoped, tag = 'scoped memory for tpu_custom_call.1']
    #allocation31 [shape = 'u8[1024]{0}', space=vmem, size = 0x400, scoped, tag = 'input window, operand 27, single buffered']
    #allocation32 [shape = 'u8[1024]{0}', space=vmem, size = 0x400, scoped, tag = 'input window, operand 28, single buffered']
    #allocation33 [shape = 's32[1]{0}', space=sflag, size = 0x4, scoped, tag = 'scoped memory for tpu_custom_call.1']
    #allocation34 [shape = 'u8[1024]{0}', space=vmem, size = 0x400, scoped, tag = 'input window, operand 29, single buffered']
    #allocation35 [shape = 'u8[196608]{0}', space=vmem, size = 0x30000, scoped, tag = 'input window, operand 30, single buffered']
    #allocation36 [shape = 's32[1]{0}', space=sflag, size = 0x4, scoped, tag = 'scoped memory for tpu_custom_call.1']
    #allocation37 [shape = 'u8[1024]{0}', space=vmem, size = 0x400, scoped, tag = 'output window, operand 0, single buffered']
    %70 = vsyncpa [#allocation3], 0
    %71 = vsyncpa [#allocation6], 0
    %72 = vsyncpa [#allocation9], 0
    %73 = vsyncpa [#allocation12], 0
    %74 = vsyncpa [#allocation15], 0
    %75 = vsyncpa [#allocation18], 0
    %76 = vsyncpa [#allocation21], 0
    %77 = vsyncpa [#allocation24], 0
    %78 = vsyncpa [#allocation27], 0
    %79 = vsyncpa [#allocation30], 0
    %80 = vsyncpa [#allocation33], 0
    %81 = vsyncpa [#allocation36], 0
    %82 = vsyncpa [#allocation4], 0
    // Predicated region
    $region2: #{tpu_custom_call.1} parent=1 // pred_check
      _
    $region3: #{tpu_custom_call.1} parent=1 // pred_check_branch
      %84 = sbr.rel (0) target = $region5
    $region4: #{tpu_custom_call.1} parent=1 // pred_region
      _
    $region5: #{tpu_custom_call.1} parent=1 // pred_fallthru
      _
    // Predicated region
    $region6: #{tpu_custom_call.1} parent=1 // pred_check
      _
    $region7: #{tpu_custom_call.1} parent=1 // pred_check_branch
      %86 = sbr.rel (0) target = $region9
    $region8: #{tpu_custom_call.1} parent=1 // pred_region
      %88 = vsyncadd [#allocation3], 0
      %s89 = sshll.u32 %s3, 4
      %s90 = int_to_ptr.hbm [resolvable:$true] %s89
      %s91 = sshll.u32 [#allocation2], 4
      %s92 = int_to_ptr.vmem [resolvable:$true] %s91
      %97 = dma.hbm_to_vmem [thread:$0]  %s90, 192, %s92, [#allocation3], 32, 32, 2
    $region9: #{tpu_custom_call.1} parent=1 // pred_fallthru
      _
    // Predicated region
    $region10: #{tpu_custom_call.1} parent=1 // pred_check
      _
    $region11: #{tpu_custom_call.1} parent=1 // pred_check_branch
      %99 = sbr.rel (0) target = $region13
    $region12: #{tpu_custom_call.1} parent=1 // pred_region
      %101 = vsyncadd [#allocation6], 0
      %s102 = sshll.u32 %s5, 4
      %s103 = int_to_ptr.hbm [resolvable:$true] %s102
      %s104 = sshll.u32 [#allocation5], 4
      %s105 = int_to_ptr.vmem [resolvable:$true] %s104
      %110 = dma.hbm_to_vmem [thread:$0]  %s103, 384, %s105, [#allocation6], 128, 128, 8
    $region13: #{tpu_custom_call.1} parent=1 // pred_fallthru
      _
    // Predicated region
    $region14: #{tpu_custom_call.1} parent=1 // pred_check
      _
    $region15: #{tpu_custom_call.1} parent=1 // pred_check_branch
      %112 = sbr.rel (0) target = $region17
    $region16: #{tpu_custom_call.1} parent=1 // pred_region
      %114 = vsyncadd [#allocation6], 0
      %s116 = sshll.u32 %s7, 4
      %s117 = int_to_ptr.hbm [resolvable:$true] %s116
      %s118 = sshll.u32 [#allocation7], 4
      %s119 = int_to_ptr.vmem [resolvable:$true] %s118
      %121 = dma.hbm_to_vmem [thread:$0]  %s117, 128, %s119, [#allocation6]
    $region17: #{tpu_custom_call.1} parent=1 // pred_fallthru
      _
    // Predicated region
    $region18: #{tpu_custom_call.1} parent=1 // pred_check
      _
    $region19: #{tpu_custom_call.1} parent=1 // pred_check_branch
      %123 = sbr.rel (0) target = $region21
    $region20: #{tpu_custom_call.1} parent=1 // pred_region
      %125 = vsyncadd [#allocation9], 0
      %s127 = sshll.u32 %s9, 4
      %s128 = int_to_ptr.hbm [resolvable:$true] %s127
      %s129 = sshll.u32 [#allocation8], 4
      %s130 = int_to_ptr.vmem [resolvable:$true] %s129
      %132 = dma.hbm_to_vmem [thread:$0]  %s128, 16, %s130, [#allocation9]
    $region21: #{tpu_custom_call.1} parent=1 // pred_fallthru
      _
    // Predicated region
    $region22: #{tpu_custom_call.1} parent=1 // pred_check
      _
    $region23: #{tpu_custom_call.1} parent=1 // pred_check_branch
      %134 = sbr.rel (0) target = $region25
    $region24: #{tpu_custom_call.1} parent=1 // pred_region
      %136 = vsyncadd [#allocation9], 0
      %s138 = sshll.u32 %s11, 4
      %s139 = int_to_ptr.hbm [resolvable:$true] %s138
      %s140 = sshll.u32 [#allocation10], 4
      %s141 = int_to_ptr.vmem [resolvable:$true] %s140
      %143 = dma.hbm_to_vmem [thread:$0]  %s139, 64, %s141, [#allocation9]
    $region25: #{tpu_custom_call.1} parent=1 // pred_fallthru
      _
    // Predicated region
    $region26: #{tpu_custom_call.1} parent=1 // pred_check
      _
    $region27: #{tpu_custom_call.1} parent=1 // pred_check_branch
      %145 = sbr.rel (0) target = $region29
    $region28: #{tpu_custom_call.1} parent=1 // pred_region
      _
    $region29: #{tpu_custom_call.1} parent=1 // pred_fallthru
      _
    // Predicated region
    $region30: #{tpu_custom_call.1} parent=1 // pred_check
      _
    $region31: #{tpu_custom_call.1} parent=1 // pred_check_branch
      %147 = sbr.rel (0) target = $region33
    $region32: #{tpu_custom_call.1} parent=1 // pred_region
      %149 = vsyncadd [#allocation12], 0
      %s151 = sshll.u32 %s15, 4
      %s152 = int_to_ptr.hbm [resolvable:$true] %s151
      %s153 = sshll.u32 [#allocation11], 4
      %s154 = int_to_ptr.vmem [resolvable:$true] %s153
      %156 = dma.hbm_to_vmem [thread:$0]  %s152, 128, %s154, [#allocation12]
    $region33: #{tpu_custom_call.1} parent=1 // pred_fallthru
      _
    // Predicated region
    $region34: #{tpu_custom_call.1} parent=1 // pred_check
      _
    $region35: #{tpu_custom_call.1} parent=1 // pred_check_branch
      %158 = sbr.rel (0) target = $region37
    $region36: #{tpu_custom_call.1} parent=1 // pred_region
      %160 = vsyncadd [#allocation12], 0
      %s162 = sshll.u32 %s17, 4
      %s163 = int_to_ptr.hbm [resolvable:$true] %s162
      %s164 = sshll.u32 [#allocation13], 4
      %s165 = int_to_ptr.vmem [resolvable:$true] %s164
      %167 = dma.hbm_to_vmem [thread:$0]  %s163, 16, %s165, [#allocation12]
    $region37: #{tpu_custom_call.1} parent=1 // pred_fallthru
      _
    // Predicated region
    $region38: #{tpu_custom_call.1} parent=1 // pred_check
      _
    $region39: #{tpu_custom_call.1} parent=1 // pred_check_branch
      %169 = sbr.rel (0) target = $region41
    $region40: #{tpu_custom_call.1} parent=1 // pred_region
      %171 = vsyncadd [#allocation15], 0
      %s173 = sshll.u32 %s19, 4
      %s174 = int_to_ptr.hbm [resolvable:$true] %s173
      %s175 = sshll.u32 [#allocation14], 4
      %s176 = int_to_ptr.vmem [resolvable:$true] %s175
      %178 = dma.hbm_to_vmem [thread:$0]  %s174, 64, %s176, [#allocation15]
    $region41: #{tpu_custom_call.1} parent=1 // pred_fallthru
      _
    // Predicated region
    $region42: #{tpu_custom_call.1} parent=1 // pred_check
      _
    $region43: #{tpu_custom_call.1} parent=1 // pred_check_branch
      %180 = sbr.rel (0) target = $region45
    $region44: #{tpu_custom_call.1} parent=1 // pred_region
      _
    $region45: #{tpu_custom_call.1} parent=1 // pred_fallthru
      _
    // Predicated region
    $region46: #{tpu_custom_call.1} parent=1 // pred_check
      _
    $region47: #{tpu_custom_call.1} parent=1 // pred_check_branch
      %182 = sbr.rel (0) target = $region49
    $region48: #{tpu_custom_call.1} parent=1 // pred_region
      _
    $region49: #{tpu_custom_call.1} parent=1 // pred_fallthru
      _
    // Predicated region
    $region50: #{tpu_custom_call.1} parent=1 // pred_check
      _
    $region51: #{tpu_custom_call.1} parent=1 // pred_check_branch
      %184 = sbr.rel (0) target = $region53
    $region52: #{tpu_custom_call.1} parent=1 // pred_region
      %186 = vsyncadd [#allocation15], 0
      %s188 = sshll.u32 %s25, 4
      %s189 = int_to_ptr.hbm [resolvable:$true] %s188
      %s190 = sshll.u32 [#allocation16], 4
      %s191 = int_to_ptr.vmem [resolvable:$true] %s190
      %193 = dma.hbm_to_vmem [thread:$0]  %s189, 16, %s191, [#allocation15]
    $region53: #{tpu_custom_call.1} parent=1 // pred_fallthru
      _
    // Predicated region
    $region54: #{tpu_custom_call.1} parent=1 // pred_check
      _
    $region55: #{tpu_custom_call.1} parent=1 // pred_check_branch
      %195 = sbr.rel (0) target = $region57
    $region56: #{tpu_custom_call.1} parent=1 // pred_region
      %197 = vsyncadd [#allocation18], 0
      %s198 = sshll.u32 %s27, 4
      %s199 = int_to_ptr.hbm [resolvable:$true] %s198
      %s200 = sshll.u32 [#allocation17], 4
      %s201 = int_to_ptr.vmem [resolvable:$true] %s200
      %206 = dma.hbm_to_vmem [thread:$0]  %s199, 256, %s201, [#allocation18], 128, 128, 8
    $region57: #{tpu_custom_call.1} parent=1 // pred_fallthru
      _
    // Predicated region
    $region58: #{tpu_custom_call.1} parent=1 // pred_check
      _
    $region59: #{tpu_custom_call.1} parent=1 // pred_check_branch
      %208 = sbr.rel (0) target = $region61
    $region60: #{tpu_custom_call.1} parent=1 // pred_region
      _
    $region61: #{tpu_custom_call.1} parent=1 // pred_fallthru
      _
    // Predicated region
    $region62: #{tpu_custom_call.1} parent=1 // pred_check
      _
    $region63: #{tpu_custom_call.1} parent=1 // pred_check_branch
      %210 = sbr.rel (0) target = $region65
    $region64: #{tpu_custom_call.1} parent=1 // pred_region
      _
    $region65: #{tpu_custom_call.1} parent=1 // pred_fallthru
      _
    // Predicated region
    $region66: #{tpu_custom_call.1} parent=1 // pred_check
      _
    $region67: #{tpu_custom_call.1} parent=1 // pred_check_branch
      %212 = sbr.rel (0) target = $region69
    $region68: #{tpu_custom_call.1} parent=1 // pred_region
      _
    $region69: #{tpu_custom_call.1} parent=1 // pred_fallthru
      _
    // Predicated region
    $region70: #{tpu_custom_call.1} parent=1 // pred_check
      _
    $region71: #{tpu_custom_call.1} parent=1 // pred_check_branch
      %214 = sbr.rel (0) target = $region73
    $region72: #{tpu_custom_call.1} parent=1 // pred_region
      %216 = vsyncadd [#allocation18], 0
      %s217 = sshll.u32 %s35, 4
      %s218 = int_to_ptr.hbm [resolvable:$true] %s217
      %s219 = sshll.u32 [#allocation19], 4
      %s220 = int_to_ptr.vmem [resolvable:$true] %s219
      %225 = dma.hbm_to_vmem [thread:$0]  %s218, 32, %s220, [#allocation18], 16, 16, 1
    $region73: #{tpu_custom_call.1} parent=1 // pred_fallthru
      _
    // Predicated region
    $region74: #{tpu_custom_call.1} parent=1 // pred_check
      _
    $region75: #{tpu_custom_call.1} parent=1 // pred_check_branch
      %227 = sbr.rel (0) target = $region77
    $region76: #{tpu_custom_call.1} parent=1 // pred_region
      _
    $region77: #{tpu_custom_call.1} parent=1 // pred_fallthru
      _
    // Predicated region
    $region78: #{tpu_custom_call.1} parent=1 // pred_check
      _
    $region79: #{tpu_custom_call.1} parent=1 // pred_check_branch
      %229 = sbr.rel (0) target = $region81
    $region80: #{tpu_custom_call.1} parent=1 // pred_region
      %231 = vsyncadd [#allocation21], 0
      %s232 = sshll.u32 %s39, 4
      %s233 = int_to_ptr.hbm [resolvable:$true] %s232
      %s234 = sshll.u32 [#allocation20], 4
      %s235 = int_to_ptr.vmem [resolvable:$true] %s234
      %240 = dma.hbm_to_vmem [thread:$0]  %s233, 32, %s235, [#allocation21], 16, 16, 1
    $region81: #{tpu_custom_call.1} parent=1 // pred_fallthru
      _
    // Predicated region
    $region82: #{tpu_custom_call.1} parent=1 // pred_check
      _
    $region83: #{tpu_custom_call.1} parent=1 // pred_check_branch
      %242 = sbr.rel (0) target = $region85
    $region84: #{tpu_custom_call.1} parent=1 // pred_region
      %244 = vsyncadd [#allocation21], 0
      %s245 = sshll.u32 %s41, 4
      %s246 = int_to_ptr.hbm [resolvable:$true] %s245
      %s247 = sshll.u32 [#allocation22], 4
      %s248 = int_to_ptr.vmem [resolvable:$true] %s247
      %253 = dma.hbm_to_vmem [thread:$0]  %s246, 512, %s248, [#allocation21], 64, 64, 4
    $region85: #{tpu_custom_call.1} parent=1 // pred_fallthru
      _
    // Predicated region
    $region86: #{tpu_custom_call.1} parent=1 // pred_check
      _
    $region87: #{tpu_custom_call.1} parent=1 // pred_check_branch
      %255 = sbr.rel (0) target = $region89
    $region88: #{tpu_custom_call.1} parent=1 // pred_region
      %257 = vsyncadd [#allocation24], 0
      %s258 = sshll.u32 %s43, 4
      %s259 = int_to_ptr.hbm [resolvable:$true] %s258
      %s260 = sshll.u32 [#allocation23], 4
      %s261 = int_to_ptr.vmem [resolvable:$true] %s260
      %266 = dma.hbm_to_vmem [thread:$0]  %s259, 32, %s261, [#allocation24], 16, 16, 1
    $region89: #{tpu_custom_call.1} parent=1 // pred_fallthru
      _
    // Predicated region
    $region90: #{tpu_custom_call.1} parent=1 // pred_check
      _
    $region91: #{tpu_custom_call.1} parent=1 // pred_check_branch
      %268 = sbr.rel (0) target = $region93
    $region92: #{tpu_custom_call.1} parent=1 // pred_region
      %270 = vsyncadd [#allocation24], 0
      %s271 = sshll.u32 %s45, 4
      %s272 = int_to_ptr.hbm [resolvable:$true] %s271
      %s273 = sshll.u32 [#allocation25], 4
      %s274 = int_to_ptr.vmem [resolvable:$true] %s273
      %279 = dma.hbm_to_vmem [thread:$0]  %s272, 32, %s274, [#allocation24], 16, 16, 1
    $region93: #{tpu_custom_call.1} parent=1 // pred_fallthru
      _
    // Predicated region
    $region94: #{tpu_custom_call.1} parent=1 // pred_check
      _
    $region95: #{tpu_custom_call.1} parent=1 // pred_check_branch
      %281 = sbr.rel (0) target = $region97
    $region96: #{tpu_custom_call.1} parent=1 // pred_region
      %283 = vsyncadd [#allocation27], 0
      %s284 = sshll.u32 %s47, 4
      %s285 = int_to_ptr.hbm [resolvable:$true] %s284
      %s286 = sshll.u32 [#allocation26], 4
      %s287 = int_to_ptr.vmem [resolvable:$true] %s286
      %292 = dma.hbm_to_vmem [thread:$0]  %s285, 32, %s287, [#allocation27], 16, 16, 1
    $region97: #{tpu_custom_call.1} parent=1 // pred_fallthru
      _
    // Predicated region
    $region98: #{tpu_custom_call.1} parent=1 // pred_check
      _
    $region99: #{tpu_custom_call.1} parent=1 // pred_check_branch
      %294 = sbr.rel (0) target = $region101
    $region100: #{tpu_custom_call.1} parent=1 // pred_region
      %296 = vsyncadd [#allocation27], 0
      %s297 = sshll.u32 %s49, 4
      %s298 = int_to_ptr.hbm [resolvable:$true] %s297
      %s299 = sshll.u32 [#allocation28], 4
      %s300 = int_to_ptr.vmem [resolvable:$true] %s299
      %305 = dma.hbm_to_vmem [thread:$0]  %s298, 512, %s300, [#allocation27], 64, 64, 4
    $region101: #{tpu_custom_call.1} parent=1 // pred_fallthru
      _
    // Predicated region
    $region102: #{tpu_custom_call.1} parent=1 // pred_check
      _
    $region103: #{tpu_custom_call.1} parent=1 // pred_check_branch
      %307 = sbr.rel (0) target = $region105
    $region104: #{tpu_custom_call.1} parent=1 // pred_region
      %309 = vsyncadd [#allocation30], 0
      %s310 = sshll.u32 %s51, 4
      %s311 = int_to_ptr.hbm [resolvable:$true] %s310
      %s312 = sshll.u32 [#allocation29], 4
      %s313 = int_to_ptr.vmem [resolvable:$true] %s312
      %318 = dma.hbm_to_vmem [thread:$0]  %s311, 32, %s313, [#allocation30], 16, 16, 1
    $region105: #{tpu_custom_call.1} parent=1 // pred_fallthru
      _
    // Predicated region
    $region106: #{tpu_custom_call.1} parent=1 // pred_check
      _
    $region107: #{tpu_custom_call.1} parent=1 // pred_check_branch
      %320 = sbr.rel (0) target = $region109
    $region108: #{tpu_custom_call.1} parent=1 // pred_region
      _
    $region109: #{tpu_custom_call.1} parent=1 // pred_fallthru
      _
    // Predicated region
    $region110: #{tpu_custom_call.1} parent=1 // pred_check
      _
    $region111: #{tpu_custom_call.1} parent=1 // pred_check_branch
      %322 = sbr.rel (0) target = $region113
    $region112: #{tpu_custom_call.1} parent=1 // pred_region
      %324 = vsyncadd [#allocation30], 0
      %s325 = sshll.u32 %s55, 4
      %s326 = int_to_ptr.hbm [resolvable:$true] %s325
      %s327 = sshll.u32 [#allocation31], 4
      %s328 = int_to_ptr.vmem [resolvable:$true] %s327
      %333 = dma.hbm_to_vmem [thread:$0]  %s326, 32, %s328, [#allocation30], 16, 16, 1
    $region113: #{tpu_custom_call.1} parent=1 // pred_fallthru
      _
    // Predicated region
    $region114: #{tpu_custom_call.1} parent=1 // pred_check
      _
    $region115: #{tpu_custom_call.1} parent=1 // pred_check_branch
      %335 = sbr.rel (0) target = $region117
    $region116: #{tpu_custom_call.1} parent=1 // pred_region
      %337 = vsyncadd [#allocation33], 0
      %s338 = sshll.u32 %s57, 4
      %s339 = int_to_ptr.hbm [resolvable:$true] %s338
      %s340 = sshll.u32 [#allocation32], 4
      %s341 = int_to_ptr.vmem [resolvable:$true] %s340
      %346 = dma.hbm_to_vmem [thread:$0]  %s339, 32, %s341, [#allocation33], 16, 16, 1
    $region117: #{tpu_custom_call.1} parent=1 // pred_fallthru
      _
    // Predicated region
    $region118: #{tpu_custom_call.1} parent=1 // pred_check
      _
    $region119: #{tpu_custom_call.1} parent=1 // pred_check_branch
      %348 = sbr.rel (0) target = $region121
    $region120: #{tpu_custom_call.1} parent=1 // pred_region
      %350 = vsyncadd [#allocation33], 0
      %s351 = sshll.u32 %s59, 4
      %s352 = int_to_ptr.hbm [resolvable:$true] %s351
      %s353 = sshll.u32 [#allocation34], 4
      %s354 = int_to_ptr.vmem [resolvable:$true] %s353
      %359 = dma.hbm_to_vmem [thread:$0]  %s352, 32, %s354, [#allocation33], 16, 16, 1
    $region121: #{tpu_custom_call.1} parent=1 // pred_fallthru
      _
    // Predicated region
    $region122: #{tpu_custom_call.1} parent=1 // pred_check
      _
    $region123: #{tpu_custom_call.1} parent=1 // pred_check_branch
      %361 = sbr.rel (0) target = $region125
    $region124: #{tpu_custom_call.1} parent=1 // pred_region
      %363 = vsyncadd [#allocation36], 0
      %s364 = sshll.u32 %s61, 4
      %s365 = int_to_ptr.hbm [resolvable:$true] %s364
      %s366 = sshll.u32 [#allocation35], 4
      %s367 = int_to_ptr.vmem [resolvable:$true] %s366
      %372 = dma.hbm_to_vmem [thread:$0]  %s365, 6144, %s367, [#allocation36], 128, 128, 8
    $region125: #{tpu_custom_call.1} parent=1 // pred_fallthru
      _
    // Predicated region
    $region126: #{tpu_custom_call.1} parent=1 // pred_check
      _
    $region127: #{tpu_custom_call.1} parent=1 // pred_check_branch
      %374 = sbr.rel (0) target = $region129
    $region128: #{tpu_custom_call.1} parent=1 // pred_region
      _
    $region129: #{tpu_custom_call.1} parent=1 // pred_fallthru
      _
    // Predicated region
    $region130: #{tpu_custom_call.1} parent=1 // pred_check
      _
    $region131: #{tpu_custom_call.1} parent=1 // pred_check_branch
      %376 = sbr.rel (0) target = $region133
    $region132: #{tpu_custom_call.1} parent=1 // pred_region
      %378 = dma.done [#allocation3], 192
    $region133: #{tpu_custom_call.1} parent=1 // pred_fallthru
      _
    // Predicated region
    $region134: #{tpu_custom_call.1} parent=1 // pred_check
      _
    $region135: #{tpu_custom_call.1} parent=1 // pred_check_branch
      %380 = sbr.rel (0) target = $region137
    $region136: #{tpu_custom_call.1} parent=1 // pred_region
      %382 = dma.done [#allocation6], 384
    $region137: #{tpu_custom_call.1} parent=1 // pred_fallthru
      _
    // Predicated region
    $region138: #{tpu_custom_call.1} parent=1 // pred_check
      _
    $region139: #{tpu_custom_call.1} parent=1 // pred_check_branch
      %384 = sbr.rel (0) target = $region141
    $region140: #{tpu_custom_call.1} parent=1 // pred_region
      %386 = dma.done [#allocation6], 128
    $region141: #{tpu_custom_call.1} parent=1 // pred_fallthru
      _
    // Predicated region
    $region142: #{tpu_custom_call.1} parent=1 // pred_check
      _
    $region143: #{tpu_custom_call.1} parent=1 // pred_check_branch
      %388 = sbr.rel (0) target = $region145
    $region144: #{tpu_custom_call.1} parent=1 // pred_region
      %390 = dma.done [#allocation9], 16
    $region145: #{tpu_custom_call.1} parent=1 // pred_fallthru
      _
    // Predicated region
    $region146: #{tpu_custom_call.1} parent=1 // pred_check
      _
    $region147: #{tpu_custom_call.1} parent=1 // pred_check_branch
      %392 = sbr.rel (0) target = $region149
    $region148: #{tpu_custom_call.1} parent=1 // pred_region
      %394 = dma.done [#allocation9], 64
    $region149: #{tpu_custom_call.1} parent=1 // pred_fallthru
      _
    // Predicated region
    $region150: #{tpu_custom_call.1} parent=1 // pred_check
      _
    $region151: #{tpu_custom_call.1} parent=1 // pred_check_branch
      %396 = sbr.rel (0) target = $region153
    $region152: #{tpu_custom_call.1} parent=1 // pred_region
      %398 = dma.done [#allocation12], 128
    $region153: #{tpu_custom_call.1} parent=1 // pred_fallthru
      _
    // Predicated region
    $region154: #{tpu_custom_call.1} parent=1 // pred_check
      _
    $region155: #{tpu_custom_call.1} parent=1 // pred_check_branch
      %400 = sbr.rel (0) target = $region157
    $region156: #{tpu_custom_call.1} parent=1 // pred_region
      %402 = dma.done [#allocation12], 16
    $region157: #{tpu_custom_call.1} parent=1 // pred_fallthru
      _
    // Predicated region
    $region158: #{tpu_custom_call.1} parent=1 // pred_check
      _
    $region159: #{tpu_custom_call.1} parent=1 // pred_check_branch
      %404 = sbr.rel (0) target = $region161
    $region160: #{tpu_custom_call.1} parent=1 // pred_region
      %406 = dma.done [#allocation15], 64
    $region161: #{tpu_custom_call.1} parent=1 // pred_fallthru
      _
    // Predicated region
    $region162: #{tpu_custom_call.1} parent=1 // pred_check
      _
    $region163: #{tpu_custom_call.1} parent=1 // pred_check_branch
      %408 = sbr.rel (0) target = $region165
    $region164: #{tpu_custom_call.1} parent=1 // pred_region
      %410 = dma.done [#allocation15], 16
    $region165: #{tpu_custom_call.1} parent=1 // pred_fallthru
      _
    // Predicated region
    $region166: #{tpu_custom_call.1} parent=1 // pred_check
      _
    $region167: #{tpu_custom_call.1} parent=1 // pred_check_branch
      %412 = sbr.rel (0) target = $region169
    $region168: #{tpu_custom_call.1} parent=1 // pred_region
      %414 = dma.done [#allocation18], 256
    $region169: #{tpu_custom_call.1} parent=1 // pred_fallthru
      _
    // Predicated region
    $region170: #{tpu_custom_call.1} parent=1 // pred_check
      _
    $region171: #{tpu_custom_call.1} parent=1 // pred_check_branch
      %416 = sbr.rel (0) target = $region173
    $region172: #{tpu_custom_call.1} parent=1 // pred_region
      %418 = dma.done [#allocation18], 32
    $region173: #{tpu_custom_call.1} parent=1 // pred_fallthru
      _
    // Predicated region
    $region174: #{tpu_custom_call.1} parent=1 // pred_check
      _
    $region175: #{tpu_custom_call.1} parent=1 // pred_check_branch
      %420 = sbr.rel (0) target = $region177
    $region176: #{tpu_custom_call.1} parent=1 // pred_region
      %422 = dma.done [#allocation21], 32
    $region177: #{tpu_custom_call.1} parent=1 // pred_fallthru
      _
    // Predicated region
    $region178: #{tpu_custom_call.1} parent=1 // pred_check
      _
    $region179: #{tpu_custom_call.1} parent=1 // pred_check_branch
      %424 = sbr.rel (0) target = $region181
    $region180: #{tpu_custom_call.1} parent=1 // pred_region
      %426 = dma.done [#allocation21], 512
    $region181: #{tpu_custom_call.1} parent=1 // pred_fallthru
      _
    // Predicated region
    $region182: #{tpu_custom_call.1} parent=1 // pred_check
      _
    $region183: #{tpu_custom_call.1} parent=1 // pred_check_branch
      %428 = sbr.rel (0) target = $region185
    $region184: #{tpu_custom_call.1} parent=1 // pred_region
      %430 = dma.done [#allocation24], 32
    $region185: #{tpu_custom_call.1} parent=1 // pred_fallthru
      _
    // Predicated region
    $region186: #{tpu_custom_call.1} parent=1 // pred_check
      _
    $region187: #{tpu_custom_call.1} parent=1 // pred_check_branch
      %432 = sbr.rel (0) target = $region189
    $region188: #{tpu_custom_call.1} parent=1 // pred_region
      %434 = dma.done [#allocation24], 32
    $region189: #{tpu_custom_call.1} parent=1 // pred_fallthru
      _
    // Predicated region
    $region190: #{tpu_custom_call.1} parent=1 // pred_check
      _
    $region191: #{tpu_custom_call.1} parent=1 // pred_check_branch
      %436 = sbr.rel (0) target = $region193
    $region192: #{tpu_custom_call.1} parent=1 // pred_region
      %438 = dma.done [#allocation27], 32
    $region193: #{tpu_custom_call.1} parent=1 // pred_fallthru
      _
    // Predicated region
    $region194: #{tpu_custom_call.1} parent=1 // pred_check
      _
    $region195: #{tpu_custom_call.1} parent=1 // pred_check_branch
      %440 = sbr.rel (0) target = $region197
    $region196: #{tpu_custom_call.1} parent=1 // pred_region
      %442 = dma.done [#allocation27], 512
    $region197: #{tpu_custom_call.1} parent=1 // pred_fallthru
      _
    // Predicated region
    $region198: #{tpu_custom_call.1} parent=1 // pred_check
      _
    $region199: #{tpu_custom_call.1} parent=1 // pred_check_branch
      %444 = sbr.rel (0) target = $region201
    $region200: #{tpu_custom_call.1} parent=1 // pred_region
      %446 = dma.done [#allocation30], 32
    $region201: #{tpu_custom_call.1} parent=1 // pred_fallthru
      _
    // Predicated region
    $region202: #{tpu_custom_call.1} parent=1 // pred_check
      _
    $region203: #{tpu_custom_call.1} parent=1 // pred_check_branch
      %448 = sbr.rel (0) target = $region205
    $region204: #{tpu_custom_call.1} parent=1 // pred_region
      %450 = dma.done [#allocation30], 32
    $region205: #{tpu_custom_call.1} parent=1 // pred_fallthru
      _
    // Predicated region
    $region206: #{tpu_custom_call.1} parent=1 // pred_check
      _
    $region207: #{tpu_custom_call.1} parent=1 // pred_check_branch
      %452 = sbr.rel (0) target = $region209
    $region208: #{tpu_custom_call.1} parent=1 // pred_region
      %454 = dma.done [#allocation33], 32
    $region209: #{tpu_custom_call.1} parent=1 // pred_fallthru
      _
    // Predicated region
    $region210: #{tpu_custom_call.1} parent=1 // pred_check
      _
    $region211: #{tpu_custom_call.1} parent=1 // pred_check_branch
      %456 = sbr.rel (0) target = $region213
    $region212: #{tpu_custom_call.1} parent=1 // pred_region
      %458 = dma.done [#allocation33], 32
    $region213: #{tpu_custom_call.1} parent=1 // pred_fallthru
      _
    // Predicated region
    $region214: #{tpu_custom_call.1} parent=1 // pred_check
      _
    $region215: #{tpu_custom_call.1} parent=1 // pred_check_branch
      %460 = sbr.rel (0) target = $region217
    $region216: #{tpu_custom_call.1} parent=1 // pred_region
      %462 = dma.done [#allocation36], 6144
    $region217: #{tpu_custom_call.1} parent=1 // pred_fallthru
      _
    %v464 = vld [vmem:[#allocation7] sm:$0x1f]
    %v465 = vld [vmem:[#allocation8] sm:$0x1]
    %v466 = vld [vmem:[#allocation10] sm:$0xf]
    %v467 = vld [vmem:[%s13] sm:$0xf]
    %v468 = vld [vmem:[#allocation11] sm:$0x1f]
    %v469 = vld [vmem:[#allocation13] sm:$0x1]
    %v470 = vld [vmem:[#allocation14] sm:$0x7]
    %v471 = vld [vmem:[%s21] sm:$0x7]
    %v472 = vld [vmem:[#allocation17] sm:$0xff]
    %v473 = vld [vmem:[#allocation17 + $0x8] sm:$0xf]
    %v474 = vld [vmem:[#allocation16] sm:$0x1]
    %v476 = vperm.slane %v474, 0
    %v478 = vadd.f32 %v472, %v476
    %v479 = vadd.f32 %v473, %v476
    %v480 = vld [vmem:[%s1] sm:$0x3]
    %v481 = vld [vmem:[%s1 + $0x2] sm:$0x3]
    %v482 = vld [vmem:[%s1 + $0x4] sm:$0x3]
    %v483 = vld [vmem:[%s1 + $0x6] sm:$0x3]
    %v484 = vperm.slane %v480, 0
    %v485 = vlaneseq
    %v486 = vshrl.u32 %v485, 7
    %488 = vset.pattern.permute.xlu0 %v486
    %489 = vperm.xlu0 %488, %v484
    %v490 = vpop.permute.xlu0 %489
    %v491 = vperm.slane %v481, 0
    %v492 = vlaneseq
    %v493 = vshrl.u32 %v492, 7
    %495 = vset.pattern.permute.xlu0 %v493
    %496 = vperm.xlu0 %495, %v491
    %v497 = vpop.permute.xlu0 %496
    %v498 = vperm.slane %v482, 0
    %v499 = vlaneseq
    %v500 = vshrl.u32 %v499, 7
    %502 = vset.pattern.permute.xlu0 %v500
    %503 = vperm.xlu0 %502, %v498
    %v504 = vpop.permute.xlu0 %503
    %v505 = vperm.slane %v483, 0
    %v506 = vlaneseq
    %v507 = vshrl.u32 %v506, 7
    %509 = vset.pattern.permute.xlu0 %v507
    %510 = vperm.xlu0 %509, %v505
    %v511 = vpop.permute.xlu0 %510
    %v512 = vperm.slane %v464, 0
    %v513 = vmul.f32 %v490, %v512
    %v514 = vmul.f32 %v497, %v512
    %v515 = vmul.f32 %v504, %v512
    %v516 = vmul.f32 %v511, %v512
    %v517 = vadd.f32 %v513, 0.0
    %v518 = vadd.f32 %v514, 0.0
    %v519 = vadd.f32 %v515, 0.0
    %v520 = vadd.f32 %v516, 0.0
    %v521 = vperm.slane %v480, 1
    %v522 = vlaneseq
    %v523 = vshrl.u32 %v522, 7
    %525 = vset.pattern.permute.xlu0 %v523
    %526 = vperm.xlu0 %525, %v521
    %v527 = vpop.permute.xlu0 %526
    %v528 = vperm.slane %v481, 1
    %v529 = vlaneseq
    %v530 = vshrl.u32 %v529, 7
    %532 = vset.pattern.permute.xlu0 %v530
    %533 = vperm.xlu0 %532, %v528
    %v534 = vpop.permute.xlu0 %533
    %v535 = vperm.slane %v482, 1
    %v536 = vlaneseq
    %v537 = vshrl.u32 %v536, 7
    %539 = vset.pattern.permute.xlu0 %v537
    %540 = vperm.xlu0 %539, %v535
    %v541 = vpop.permute.xlu0 %540
    %v542 = vperm.slane %v483, 1
    %v543 = vlaneseq
    %v544 = vshrl.u32 %v543, 7
    %546 = vset.pattern.permute.xlu0 %v544
    %547 = vperm.xlu0 %546, %v542
    %v548 = vpop.permute.xlu0 %547
    %v549 = vperm.slane %v464, 1
    %v550 = vmul.f32 %v527, %v549
    %v551 = vmul.f32 %v534, %v549
    %v552 = vmul.f32 %v541, %v549
    %v553 = vmul.f32 %v548, %v549
    %v554 = vadd.f32 %v517, %v550
    %v555 = vadd.f32 %v518, %v551
    %v556 = vadd.f32 %v519, %v552
    %v557 = vadd.f32 %v520, %v553
    %v558 = vlaneseq
    %v559 = vshrl.u32 %v558, 7
    %v560 = vadd.s32 %v559, 1
    %561 = vset.pattern.permute.xlu0 %v560
    %562 = vperm.xlu0 %561, %v484
    %v563 = vpop.permute.xlu0 %562
    %v564 = vlaneseq
    %v565 = vshrl.u32 %v564, 7
    %v566 = vadd.s32 %v565, 1
    %567 = vset.pattern.permute.xlu0 %v566
    %568 = vperm.xlu0 %567, %v491
    %v569 = vpop.permute.xlu0 %568
    %v570 = vlaneseq
    %v571 = vshrl.u32 %v570, 7
    %v572 = vadd.s32 %v571, 1
    %573 = vset.pattern.permute.xlu0 %v572
    %574 = vperm.xlu0 %573, %v498
    %v575 = vpop.permute.xlu0 %574
    %v576 = vlaneseq
    %v577 = vshrl.u32 %v576, 7
    %v578 = vadd.s32 %v577, 1
    %579 = vset.pattern.permute.xlu0 %v578
    %580 = vperm.xlu0 %579, %v505
    %v581 = vpop.permute.xlu0 %580
    %v582 = vperm.slane %v464, 2
    %v583 = vmul.f32 %v563, %v582
    %v584 = vmul.f32 %v569, %v582
    %v585 = vmul.f32 %v575, %v582
    %v586 = vmul.f32 %v581, %v582
    %v587 = vadd.f32 %v554, %v583
    %v588 = vadd.f32 %v555, %v584
    %v589 = vadd.f32 %v556, %v585
    %v590 = vadd.f32 %v557, %v586
    %v591 = vlaneseq
    %v592 = vshrl.u32 %v591, 7
    %v593 = vadd.s32 %v592, 1
    %594 = vset.pattern.permute.xlu0 %v593
    %595 = vperm.xlu0 %594, %v521
    %v596 = vpop.permute.xlu0 %595
    %v597 = vlaneseq
    %v598 = vshrl.u32 %v597, 7
    %v599 = vadd.s32 %v598, 1
    %600 = vset.pattern.permute.xlu0 %v599
    %601 = vperm.xlu0 %600, %v528
    %v602 = vpop.permute.xlu0 %601
    %v603 = vlaneseq
    %v604 = vshrl.u32 %v603, 7
    %v605 = vadd.s32 %v604, 1
    %606 = vset.pattern.permute.xlu0 %v605
    %607 = vperm.xlu0 %606, %v535
    %v608 = vpop.permute.xlu0 %607
    %v609 = vlaneseq
    %v610 = vshrl.u32 %v609, 7
    %v611 = vadd.s32 %v610, 1
    %612 = vset.pattern.permute.xlu0 %v611
    %613 = vperm.xlu0 %612, %v542
    %v614 = vpop.permute.xlu0 %613
    %v615 = vperm.slane %v464, 3
    %v616 = vmul.f32 %v596, %v615
    %v617 = vmul.f32 %v602, %v615
    %v618 = vmul.f32 %v608, %v615
    %v619 = vmul.f32 %v614, %v615
    %v620 = vadd.f32 %v587, %v616
    %v621 = vadd.f32 %v588, %v617
    %v622 = vadd.f32 %v589, %v618
    %v623 = vadd.f32 %v590, %v619
    %v624 = vlaneseq
    %v625 = vshrl.u32 %v624, 7
    %v626 = vadd.s32 %v625, 2
    %627 = vset.pattern.permute.xlu0 %v626
    %628 = vperm.xlu0 %627, %v484
    %v629 = vpop.permute.xlu0 %628
    %v630 = vlaneseq
    %v631 = vshrl.u32 %v630, 7
    %v632 = vadd.s32 %v631, 2
    %633 = vset.pattern.permute.xlu0 %v632
    %634 = vperm.xlu0 %633, %v491
    %v635 = vpop.permute.xlu0 %634
    %v636 = vlaneseq
    %v637 = vshrl.u32 %v636, 7
    %v638 = vadd.s32 %v637, 2
    %639 = vset.pattern.permute.xlu0 %v638
    %640 = vperm.xlu0 %639, %v498
    %v641 = vpop.permute.xlu0 %640
    %v642 = vlaneseq
    %v643 = vshrl.u32 %v642, 7
    %v644 = vadd.s32 %v643, 2
    %645 = vset.pattern.permute.xlu0 %v644
    %646 = vperm.xlu0 %645, %v505
    %v647 = vpop.permute.xlu0 %646
    %v648 = vperm.slane %v464, 4
    %v649 = vmul.f32 %v629, %v648
    %v650 = vmul.f32 %v635, %v648
    %v651 = vmul.f32 %v641, %v648
    %v652 = vmul.f32 %v647, %v648
    %v653 = vadd.f32 %v620, %v649
    %v654 = vadd.f32 %v621, %v650
    %v655 = vadd.f32 %v622, %v651
    %v656 = vadd.f32 %v623, %v652
    %v658 = vperm.slane %v465, 0
    %v660 = vadd.f32 %v653, %v658
    %v661 = vadd.f32 %v654, %v658
    %v662 = vadd.f32 %v655, %v658
    %v663 = vadd.f32 %v656, %v658
    %vm664 = vcmask 259072
    %v665 = vsel %vm664, %v660, 0.0
    %v666 = vrot.slane %v665, 4
    %v667 = vadd.f32 %v665, %v666
    %v668 = vrot.slane %v667, 2
    %v669 = vadd.f32 %v667, %v668
    %v670 = vrot.slane %v669, 1
    %v671 = vadd.f32 %v669, %v670
    %v672 = vsel %vm664, %v661, 0.0
    %v673 = vrot.slane %v672, 4
    %v674 = vadd.f32 %v672, %v673
    %v675 = vrot.slane %v674, 2
    %v676 = vadd.f32 %v674, %v675
    %v677 = vrot.slane %v676, 1
    %v678 = vadd.f32 %v676, %v677
    %v679 = vsel %vm664, %v662, 0.0
    %v680 = vrot.slane %v679, 4
    %v681 = vadd.f32 %v679, %v680
    %v682 = vrot.slane %v681, 2
    %v683 = vadd.f32 %v681, %v682
    %v684 = vrot.slane %v683, 1
    %v685 = vadd.f32 %v683, %v684
    %v686 = vsel %vm664, %v663, 0.0
    %v687 = vrot.slane %v686, 4
    %v688 = vadd.f32 %v686, %v687
    %v689 = vrot.slane %v688, 2
    %v690 = vadd.f32 %v688, %v689
    %v691 = vrot.slane %v690, 1
    %v692 = vadd.f32 %v690, %v691
    %v693 = vrcp.pop 6.0
    %v694 = vmul.f32 6.0, %v693
    %v695 = vsub.f32 1.0, %v694
    %v696 = vmul.f32 %v693, %v695
    %v697 = vadd.f32 %v693, %v696
    %vm698 = vweird.f32 %v693
    %v699 = vsel %vm698, %v693, %v697
    %v700 = vmul.f32 %v671, %v699
    %v701 = vmul.f32 %v678, %v699
    %v702 = vmul.f32 %v685, %v699
    %v703 = vmul.f32 %v692, %v699
    %705 = vset.pattern.permute.xlu0 0
    %706 = vperm.xlu0 %705, %v467
    %v707 = vpop.permute.xlu0 %706
    %vm713 = vcmask 1041409
    %v714 = vsel %vm713, %v701, %v700
    %vm715 = vcmask 1042434
    %v716 = vsel %vm715, %v702, %v714
    %vm717 = vcmask 1043459
    %v718 = vsel %vm717, %v703, %v716
    %vm719 = vcmask 31744
    %v721 = vsel %vm719, %v466, 0
    %vm723 = vcmask 1043456
    %v724 = vsel %vm723, %v718, 0
    %726 = vmatpush.msra.mxu0 0.0
    %727 = vmatpush.msra.mxu0 0.0
    %728 = vmatpush.msra.mxu0 0.0
    %729 = vmatpush.msra.mxu0 0.0
    %730 = vmatpush.msra.mxu0 0.0
    %731 = vmatpush.msra.mxu0 0.0
    %732 = vmatpush.msra.mxu0 0.0
    %733 = vmatpush.msra.mxu0 0.0
    %734 = vmatpush.msra.mxu0 0.0
    %735 = vmatpush.msra.mxu0 0.0
    %736 = vmatpush.msra.mxu0 0.0
    %737 = vmatpush.msra.mxu0 0.0
    %738 = vmatpush.msra.mxu0 0.0
    %739 = vmatpush.msra.mxu0 0.0
    %740 = vmatpush.msra.mxu0 0.0
    %741 = vmatpush.msra.mxu0 %v724
    %742 = vmatmul.f32.gmra.mxu0 %v721
    %v743 = vpop.f32.mrf.mxu0
    %v744 = vadd.f32 %v707, %v743
    %745 = vdwg.mxu0
    %vm746 = vcmask 257024
    %v747 = vsel %vm746, %v744, -inf
    %v748 = vrot.slane %v747, 4
    %v749 = vmax.f32 %v747, %v748
    %v750 = vrot.slane %v749, 2
    %v751 = vmax.f32 %v749, %v750
    %v752 = vrot.slane %v751, 1
    %v753 = vmax.f32 %v751, %v752
    %v754 = vsub.f32 %v744, %v753
    %v755 = vmul.f32 %v754, 1.442695
    %v756 = vpow.pop %v755
    %v757 = vsel %vm746, %v756, 0.0
    %v758 = vrot.slane %v757, 4
    %v759 = vadd.f32 %v757, %v758
    %v760 = vrot.slane %v759, 2
    %v761 = vadd.f32 %v759, %v760
    %v762 = vrot.slane %v761, 1
    %v763 = vadd.f32 %v761, %v762
    %v764 = vrcp.pop %v763
    %v765 = vmul.f32 %v756, %v764
    %v767 = vrot.slane %v765, 1
    %v768 = vrot.slane %v765, 2
    %v769 = vrot.slane %v765, 3
    %v770 = vperm.slane %v765, 0
    %v771 = vperm.slane %v767, 0
    %v772 = vperm.slane %v768, 0
    %v773 = vperm.slane %v769, 0
    %v778 = vmul.f32 %v660, %v770
    %v779 = vmul.f32 %v661, %v771
    %v780 = vmul.f32 %v662, %v772
    %v781 = vmul.f32 %v663, %v773
    %v782 = vsel %vm664, %v778, 0.0
    %v783 = vsel %vm664, %v779, 0.0
    %v784 = vadd.f32 %v782, %v783
    %v785 = vsel %vm664, %v780, 0.0
    %v786 = vadd.f32 %v784, %v785
    %v787 = vsel %vm664, %v781, 0.0
    %v788 = vadd.f32 %v786, %v787
    %v789 = vrcp.pop 4.0
    %v790 = vmul.f32 4.0, %v789
    %v791 = vsub.f32 1.0, %v790
    %v792 = vmul.f32 %v789, %v791
    %v793 = vadd.f32 %v789, %v792
    %vm794 = vweird.f32 %v789
    %v795 = vsel %vm794, %v789, %v793
    %v796 = vmul.f32 %v788, %v795
    %v797 = vld [vmem:[#allocation2] sm:$0x3]
    %v798 = vld [vmem:[#allocation2 + $0x2] sm:$0x3]
    %v799 = vld [vmem:[#allocation2 + $0x4] sm:$0x3]
    %v800 = vperm.slane %v797, 0
    %v801 = vlaneseq
    %v802 = vshrl.u32 %v801, 7
    %804 = vset.pattern.permute.xlu0 %v802
    %805 = vperm.xlu0 %804, %v800
    %v806 = vpop.permute.xlu0 %805
    %v807 = vperm.slane %v798, 0
    %v808 = vlaneseq
    %v809 = vshrl.u32 %v808, 7
    %811 = vset.pattern.permute.xlu0 %v809
    %812 = vperm.xlu0 %811, %v807
    %v813 = vpop.permute.xlu0 %812
    %v814 = vperm.slane %v799, 0
    %v815 = vlaneseq
    %v816 = vshrl.u32 %v815, 7
    %818 = vset.pattern.permute.xlu0 %v816
    %819 = vperm.xlu0 %818, %v814
    %v820 = vpop.permute.xlu0 %819
    %v821 = vperm.slane %v468, 0
    %v822 = vmul.f32 %v806, %v821
    %v823 = vmul.f32 %v813, %v821
    %v824 = vmul.f32 %v820, %v821
    %v825 = vadd.f32 %v822, 0.0
    %v826 = vadd.f32 %v823, 0.0
    %v827 = vadd.f32 %v824, 0.0
    %v828 = vperm.slane %v797, 1
    %v829 = vlaneseq
    %v830 = vshrl.u32 %v829, 7
    %832 = vset.pattern.permute.xlu0 %v830
    %833 = vperm.xlu0 %832, %v828
    %v834 = vpop.permute.xlu0 %833
    %v835 = vperm.slane %v798, 1
    %v836 = vlaneseq
    %v837 = vshrl.u32 %v836, 7
    %839 = vset.pattern.permute.xlu0 %v837
    %840 = vperm.xlu0 %839, %v835
    %v841 = vpop.permute.xlu0 %840
    %v842 = vperm.slane %v799, 1
    %v843 = vlaneseq
    %v844 = vshrl.u32 %v843, 7
    %846 = vset.pattern.permute.xlu0 %v844
    %847 = vperm.xlu0 %846, %v842
    %v848 = vpop.permute.xlu0 %847
    %v849 = vperm.slane %v468, 1
    %v850 = vmul.f32 %v834, %v849
    %v851 = vmul.f32 %v841, %v849
    %v852 = vmul.f32 %v848, %v849
    %v853 = vadd.f32 %v825, %v850
    %v854 = vadd.f32 %v826, %v851
    %v855 = vadd.f32 %v827, %v852
    %v856 = vlaneseq
    %v857 = vshrl.u32 %v856, 7
    %v858 = vadd.s32 %v857, 1
    %859 = vset.pattern.permute.xlu0 %v858
    %860 = vperm.xlu0 %859, %v800
    %v861 = vpop.permute.xlu0 %860
    %v862 = vlaneseq
    %v863 = vshrl.u32 %v862, 7
    %v864 = vadd.s32 %v863, 1
    %865 = vset.pattern.permute.xlu0 %v864
    %866 = vperm.xlu0 %865, %v807
    %v867 = vpop.permute.xlu0 %866
    %v868 = vlaneseq
    %v869 = vshrl.u32 %v868, 7
    %v870 = vadd.s32 %v869, 1
    %871 = vset.pattern.permute.xlu0 %v870
    %872 = vperm.xlu0 %871, %v814
    %v873 = vpop.permute.xlu0 %872
    %v874 = vperm.slane %v468, 2
    %v875 = vmul.f32 %v861, %v874
    %v876 = vmul.f32 %v867, %v874
    %v877 = vmul.f32 %v873, %v874
    %v878 = vadd.f32 %v853, %v875
    %v879 = vadd.f32 %v854, %v876
    %v880 = vadd.f32 %v855, %v877
    %v881 = vlaneseq
    %v882 = vshrl.u32 %v881, 7
    %v883 = vadd.s32 %v882, 1
    %884 = vset.pattern.permute.xlu0 %v883
    %885 = vperm.xlu0 %884, %v828
    %v886 = vpop.permute.xlu0 %885
    %v887 = vlaneseq
    %v888 = vshrl.u32 %v887, 7
    %v889 = vadd.s32 %v888, 1
    %890 = vset.pattern.permute.xlu0 %v889
    %891 = vperm.xlu0 %890, %v835
    %v892 = vpop.permute.xlu0 %891
    %v893 = vlaneseq
    %v894 = vshrl.u32 %v893, 7
    %v895 = vadd.s32 %v894, 1
    %896 = vset.pattern.permute.xlu0 %v895
    %897 = vperm.xlu0 %896, %v842
    %v898 = vpop.permute.xlu0 %897
    %v899 = vperm.slane %v468, 3
    %v900 = vmul.f32 %v886, %v899
    %v901 = vmul.f32 %v892, %v899
    %v902 = vmul.f32 %v898, %v899
    %v903 = vadd.f32 %v878, %v900
    %v904 = vadd.f32 %v879, %v901
    %v905 = vadd.f32 %v880, %v902
    %v906 = vlaneseq
    %v907 = vshrl.u32 %v906, 7
    %v908 = vadd.s32 %v907, 2
    %909 = vset.pattern.permute.xlu0 %v908
    %910 = vperm.xlu0 %909, %v800
    %v911 = vpop.permute.xlu0 %910
    %v912 = vlaneseq
    %v913 = vshrl.u32 %v912, 7
    %v914 = vadd.s32 %v913, 2
    %915 = vset.pattern.permute.xlu0 %v914
    %916 = vperm.xlu0 %915, %v807
    %v917 = vpop.permute.xlu0 %916
    %v918 = vlaneseq
    %v919 = vshrl.u32 %v918, 7
    %v920 = vadd.s32 %v919, 2
    %921 = vset.pattern.permute.xlu0 %v920
    %922 = vperm.xlu0 %921, %v814
    %v923 = vpop.permute.xlu0 %922
    %v924 = vperm.slane %v468, 4
    %v925 = vmul.f32 %v911, %v924
    %v926 = vmul.f32 %v917, %v924
    %v927 = vmul.f32 %v923, %v924
    %v928 = vadd.f32 %v903, %v925
    %v929 = vadd.f32 %v904, %v926
    %v930 = vadd.f32 %v905, %v927
    %v932 = vperm.slane %v469, 0
    %v934 = vadd.f32 %v928, %v932
    %v935 = vadd.f32 %v929, %v932
    %v936 = vadd.f32 %v930, %v932
    %v937 = vsel %vm664, %v934, 0.0
    %v938 = vrot.slane %v937, 4
    %v939 = vadd.f32 %v937, %v938
    %v940 = vrot.slane %v939, 2
    %v941 = vadd.f32 %v939, %v940
    %v942 = vrot.slane %v941, 1
    %v943 = vadd.f32 %v941, %v942
    %v944 = vsel %vm664, %v935, 0.0
    %v945 = vrot.slane %v944, 4
    %v946 = vadd.f32 %v944, %v945
    %v947 = vrot.slane %v946, 2
    %v948 = vadd.f32 %v946, %v947
    %v949 = vrot.slane %v948, 1
    %v950 = vadd.f32 %v948, %v949
    %v951 = vsel %vm664, %v936, 0.0
    %v952 = vrot.slane %v951, 4
    %v953 = vadd.f32 %v951, %v952
    %v954 = vrot.slane %v953, 2
    %v955 = vadd.f32 %v953, %v954
    %v956 = vrot.slane %v955, 1
    %v957 = vadd.f32 %v955, %v956
    %v958 = vmul.f32 %v943, %v699
    %v959 = vmul.f32 %v950, %v699
    %v960 = vmul.f32 %v957, %v699
    %962 = vset.pattern.permute.xlu0 0
    %963 = vperm.xlu0 %962, %v471
    %v964 = vpop.permute.xlu0 %963
    %v969 = vsel %vm713, %v959, %v958
    %v970 = vsel %vm715, %v960, %v969
    %vm971 = vcmask 23552
    %v973 = vsel %vm971, %v470, 0
    %vm975 = vcmask 1042432
    %v976 = vsel %vm975, %v970, 0
    %978 = vmatpush.msra.mxu0 0.0
    %979 = vmatpush.msra.mxu0 0.0
    %980 = vmatpush.msra.mxu0 0.0
    %981 = vmatpush.msra.mxu0 0.0
    %982 = vmatpush.msra.mxu0 0.0
    %983 = vmatpush.msra.mxu0 0.0
    %984 = vmatpush.msra.mxu0 0.0
    %985 = vmatpush.msra.mxu0 0.0
    %986 = vmatpush.msra.mxu0 0.0
    %987 = vmatpush.msra.mxu0 0.0
    %988 = vmatpush.msra.mxu0 0.0
    %989 = vmatpush.msra.mxu0 0.0
    %990 = vmatpush.msra.mxu0 0.0
    %991 = vmatpush.msra.mxu0 0.0
    %992 = vmatpush.msra.mxu0 0.0
    %993 = vmatpush.msra.mxu0 %v976
    %994 = vmatmul.f32.gmra.mxu0 %v973
    %v995 = vpop.f32.mrf.mxu0
    %v996 = vadd.f32 %v964, %v995
    %997 = vdwg.mxu0
    %vm998 = vcmask 256000
    %v999 = vsel %vm998, %v996, -inf
    %v1000 = vrot.slane %v999, 4
    %v1001 = vmax.f32 %v999, %v1000
    %v1002 = vrot.slane %v1001, 2
    %v1003 = vmax.f32 %v1001, %v1002
    %v1004 = vrot.slane %v1003, 1
    %v1005 = vmax.f32 %v1003, %v1004
    %v1006 = vsub.f32 %v996, %v1005
    %v1007 = vmul.f32 %v1006, 1.442695
    %v1008 = vpow.pop %v1007
    %v1009 = vsel %vm998, %v1008, 0.0
    %v1010 = vrot.slane %v1009, 4
    %v1011 = vadd.f32 %v1009, %v1010
    %v1012 = vrot.slane %v1011, 2
    %v1013 = vadd.f32 %v1011, %v1012
    %v1014 = vrot.slane %v1013, 1
    %v1015 = vadd.f32 %v1013, %v1014
    %v1016 = vrcp.pop %v1015
    %v1017 = vmul.f32 %v1008, %v1016
    %v1019 = vrot.slane %v1017, 1
    %v1020 = vrot.slane %v1017, 2
    %v1021 = vperm.slane %v1017, 0
    %v1022 = vperm.slane %v1019, 0
    %v1023 = vperm.slane %v1020, 0
    %v1027 = vmul.f32 %v934, %v1021
    %v1028 = vmul.f32 %v935, %v1022
    %v1029 = vmul.f32 %v936, %v1023
    %v1030 = vsel %vm664, %v1027, 0.0
    %v1031 = vsel %vm664, %v1028, 0.0
    %v1032 = vadd.f32 %v1030, %v1031
    %v1033 = vsel %vm664, %v1029, 0.0
    %v1034 = vadd.f32 %v1032, %v1033
    %v1035 = vrcp.pop 3.0
    %v1036 = vmul.f32 3.0, %v1035
    %v1037 = vsub.f32 1.0, %v1036
    %v1038 = vmul.f32 %v1035, %v1037
    %v1039 = vadd.f32 %v1035, %v1038
    %vm1040 = vweird.f32 %v1035
    %v1041 = vsel %vm1040, %v1035, %v1039
    %v1042 = vmul.f32 %v1034, %v1041
    %v1044 = vrot.slane %v796, 7
    %v1047 = vrot.slane %v1042, 1
    %vm1049 = vcmask 1040384
    %v1050 = vsel %vm1049, 0.0, %v1044
    %vm1051 = vcmask 1046528
    %v1052 = vsel %vm1051, %v1050, %v1047
    %vm1053 = vcmask 1044480
    %v1054 = vsel %vm1053, %v1047, 0.0
    %v1055 = vpack.c.bf16 %v1052, %v1052
    %v1056 = vpack.c.bf16 %v1054, %v1054
    %v1057 = vld [vmem:[%s23] sm:$0xf]
    %v1058 = vld [vmem:[%s23 + $0x4] sm:$0xf]
    %v1059 = vld [vmem:[%s23 + $0x8] sm:$0xf]
    %v1060 = vld [vmem:[%s23 + $0xc] sm:$0xf]
    %v1063 = vunpack.c.l.b16 %v1055
    %v1064 = vunpack.c.l.b16 %v1056
    %v1065 = vpack.c.b16 %v1064, %v1063
    %v1070 = vunpack.c.l.b16 %v1057
    %v1071 = vunpack.c.l.b16 %v1058
    %v1072 = vunpack.c.l.b16 %v1059
    %v1073 = vunpack.c.l.b16 %v1060
    %v1074 = vpack.c.b16 %v1071, %v1070
    %v1075 = vpack.c.b16 %v1073, %v1072
    %vm1078 = vcmask 261120
    %v1080 = vsel %vm1078, %v1065, 0
    %1082 = vmatpush.bf16.msra.mxu0 0
    %1083 = vmatpush.bf16.msra.mxu0 0
    %1084 = vmatpush.bf16.msra.mxu0 0
    %1085 = vmatpush.bf16.msra.mxu0 0
    %1086 = vmatpush.bf16.msra.mxu0 0
    %1087 = vmatpush.bf16.msra.mxu0 0
    %1088 = vmatpush.bf16.msra.mxu0 %v1075
    %1089 = vmatpush.bf16.msra.mxu0 %v1074
    %1090 = vmatmul.bf16.gmra.mxu0 %v1080
    %v1091 = vpop.f32.mrf.mxu0
    %v1092 = vadd.f32 0.0, %v1091
    %v1093 = vpop.f32.mrf.mxu0
    %v1094 = vadd.f32 0.0, %v1093
    %1095 = vdwg.mxu0
    %v1096 = vadd.f32 %v478, %v1092
    %v1097 = vadd.f32 %v479, %v1094
    %s1098 = scalar_lea.vmem %s23, 16
    %v1099 = vld [vmem:[%s1098] sm:$0xf]
    %v1100 = vld [vmem:[%s1098 + $0x4] sm:$0xf]
    %v1101 = vld [vmem:[%s1098 + $0x8] sm:$0xf]
    %v1102 = vld [vmem:[%s1098 + $0xc] sm:$0xf]
    %v1103 = vshrl.u32 %v1065, 16
    %v1105 = vshll.u32 %v1065, 16
    %v1107 = vrot.slane %v1105, 1
    %v1108 = vor.u32 %v1103, %v1107
    %v1113 = vunpack.c.l.b16 %v1099
    %v1114 = vunpack.c.l.b16 %v1100
    %v1115 = vunpack.c.l.b16 %v1101
    %v1116 = vunpack.c.l.b16 %v1102
    %v1117 = vpack.c.b16 %v1114, %v1113
    %v1118 = vpack.c.b16 %v1116, %v1115
    %v1122 = vsel %vm1078, %v1108, 0
    %1124 = vmatpush.bf16.msra.mxu0 0
    %1125 = vmatpush.bf16.msra.mxu0 0
    %1126 = vmatpush.bf16.msra.mxu0 0
    %1127 = vmatpush.bf16.msra.mxu0 0
    %1128 = vmatpush.bf16.msra.mxu0 0
    %1129 = vmatpush.bf16.msra.mxu0 0
    %1130 = vmatpush.bf16.msra.mxu0 %v1118
    %1131 = vmatpush.bf16.msra.mxu0 %v1117
    %1132 = vmatmul.bf16.gmra.mxu0 %v1122
    %v1133 = vpop.f32.mrf.mxu0
    %v1134 = vadd.f32 0.0, %v1133
    %v1135 = vpop.f32.mrf.mxu0
    %v1136 = vadd.f32 0.0, %v1135
    %1137 = vdwg.mxu0
    %v1138 = vadd.f32 %v1096, %v1134
    %v1139 = vadd.f32 %v1097, %v1136
    %s1140 = scalar_lea.vmem %s23, 32
    %v1141 = vld [vmem:[%s1140] sm:$0xf]
    %v1142 = vld [vmem:[%s1140 + $0x4] sm:$0xf]
    %v1143 = vld [vmem:[%s1140 + $0x8] sm:$0xf]
    %v1144 = vld [vmem:[%s1140 + $0xc] sm:$0xf]
    %v1145 = vrot.slane %v1065, 1
    %v1150 = vunpack.c.l.b16 %v1141
    %v1151 = vunpack.c.l.b16 %v1142
    %v1152 = vunpack.c.l.b16 %v1143
    %v1153 = vunpack.c.l.b16 %v1144
    %v1154 = vpack.c.b16 %v1151, %v1150
    %v1155 = vpack.c.b16 %v1153, %v1152
    %v1159 = vsel %vm1078, %v1145, 0
    %1161 = vmatpush.bf16.msra.mxu0 0
    %1162 = vmatpush.bf16.msra.mxu0 0
    %1163 = vmatpush.bf16.msra.mxu0 0
    %1164 = vmatpush.bf16.msra.mxu0 0
    %1165 = vmatpush.bf16.msra.mxu0 0
    %1166 = vmatpush.bf16.msra.mxu0 0
    %1167 = vmatpush.bf16.msra.mxu0 %v1155
    %1168 = vmatpush.bf16.msra.mxu0 %v1154
    %1169 = vmatmul.bf16.gmra.mxu0 %v1159
    %v1170 = vpop.f32.mrf.mxu0
    %v1171 = vadd.f32 0.0, %v1170
    %v1172 = vpop.f32.mrf.mxu0
    %v1173 = vadd.f32 0.0, %v1172
    %1174 = vdwg.mxu0
    %v1175 = vadd.f32 %v1138, %v1171
    %v1176 = vadd.f32 %v1139, %v1173
    %s1177 = scalar_lea.vmem %s1, 8
    %v1178 = vld [vmem:[%s1177] sm:$0x3]
    %v1179 = vld [vmem:[%s1177 + $0x2] sm:$0x3]
    %v1180 = vld [vmem:[%s1177 + $0x4] sm:$0x3]
    %v1181 = vld [vmem:[%s1177 + $0x6] sm:$0x3]
    %v1182 = vperm.slane %v1178, 0
    %v1183 = vlaneseq
    %v1184 = vshrl.u32 %v1183, 7
    %1186 = vset.pattern.permute.xlu0 %v1184
    %1187 = vperm.xlu0 %1186, %v1182
    %v1188 = vpop.permute.xlu0 %1187
    %v1189 = vperm.slane %v1179, 0
    %v1190 = vlaneseq
    %v1191 = vshrl.u32 %v1190, 7
    %1193 = vset.pattern.permute.xlu0 %v1191
    %1194 = vperm.xlu0 %1193, %v1189
    %v1195 = vpop.permute.xlu0 %1194
    %v1196 = vperm.slane %v1180, 0
    %v1197 = vlaneseq
    %v1198 = vshrl.u32 %v1197, 7
    %1200 = vset.pattern.permute.xlu0 %v1198
    %1201 = vperm.xlu0 %1200, %v1196
    %v1202 = vpop.permute.xlu0 %1201
    %v1203 = vperm.slane %v1181, 0
    %v1204 = vlaneseq
    %v1205 = vshrl.u32 %v1204, 7
    %1207 = vset.pattern.permute.xlu0 %v1205
    %1208 = vperm.xlu0 %1207, %v1203
    %v1209 = vpop.permute.xlu0 %1208
    %v1210 = vmul.f32 %v1188, %v512
    %v1211 = vmul.f32 %v1195, %v512
    %v1212 = vmul.f32 %v1202, %v512
    %v1213 = vmul.f32 %v1209, %v512
    %v1214 = vadd.f32 %v1210, 0.0
    %v1215 = vadd.f32 %v1211, 0.0
    %v1216 = vadd.f32 %v1212, 0.0
    %v1217 = vadd.f32 %v1213, 0.0
    %v1218 = vperm.slane %v1178, 1
    %v1219 = vlaneseq
    %v1220 = vshrl.u32 %v1219, 7
    %1222 = vset.pattern.permute.xlu0 %v1220
    %1223 = vperm.xlu0 %1222, %v1218
    %v1224 = vpop.permute.xlu0 %1223
    %v1225 = vperm.slane %v1179, 1
    %v1226 = vlaneseq
    %v1227 = vshrl.u32 %v1226, 7
    %1229 = vset.pattern.permute.xlu0 %v1227
    %1230 = vperm.xlu0 %1229, %v1225
    %v1231 = vpop.permute.xlu0 %1230
    %v1232 = vperm.slane %v1180, 1
    %v1233 = vlaneseq
    %v1234 = vshrl.u32 %v1233, 7
    %1236 = vset.pattern.permute.xlu0 %v1234
    %1237 = vperm.xlu0 %1236, %v1232
    %v1238 = vpop.permute.xlu0 %1237
    %v1239 = vperm.slane %v1181, 1
    %v1240 = vlaneseq
    %v1241 = vshrl.u32 %v1240, 7
    %1243 = vset.pattern.permute.xlu0 %v1241
    %1244 = vperm.xlu0 %1243, %v1239
    %v1245 = vpop.permute.xlu0 %1244
    %v1246 = vmul.f32 %v1224, %v549
    %v1247 = vmul.f32 %v1231, %v549
    %v1248 = vmul.f32 %v1238, %v549
    %v1249 = vmul.f32 %v1245, %v549
    %v1250 = vadd.f32 %v1214, %v1246
    %v1251 = vadd.f32 %v1215, %v1247
    %v1252 = vadd.f32 %v1216, %v1248
    %v1253 = vadd.f32 %v1217, %v1249
    %v1254 = vlaneseq
    %v1255 = vshrl.u32 %v1254, 7
    %v1256 = vadd.s32 %v1255, 1
    %1257 = vset.pattern.permute.xlu0 %v1256
    %1258 = vperm.xlu0 %1257, %v1182
    %v1259 = vpop.permute.xlu0 %1258
    %v1260 = vlaneseq
    %v1261 = vshrl.u32 %v1260, 7
    %v1262 = vadd.s32 %v1261, 1
    %1263 = vset.pattern.permute.xlu0 %v1262
    %1264 = vperm.xlu0 %1263, %v1189
    %v1265 = vpop.permute.xlu0 %1264
    %v1266 = vlaneseq
    %v1267 = vshrl.u32 %v1266, 7
    %v1268 = vadd.s32 %v1267, 1
    %1269 = vset.pattern.permute.xlu0 %v1268
    %1270 = vperm.xlu0 %1269, %v1196
    %v1271 = vpop.permute.xlu0 %1270
    %v1272 = vlaneseq
    %v1273 = vshrl.u32 %v1272, 7
    %v1274 = vadd.s32 %v1273, 1
    %1275 = vset.pattern.permute.xlu0 %v1274
    %1276 = vperm.xlu0 %1275, %v1203
    %v1277 = vpop.permute.xlu0 %1276
    %v1278 = vmul.f32 %v1259, %v582
    %v1279 = vmul.f32 %v1265, %v582
    %v1280 = vmul.f32 %v1271, %v582
    %v1281 = vmul.f32 %v1277, %v582
    %v1282 = vadd.f32 %v1250, %v1278
    %v1283 = vadd.f32 %v1251, %v1279
    %v1284 = vadd.f32 %v1252, %v1280
    %v1285 = vadd.f32 %v1253, %v1281
    %v1286 = vlaneseq
    %v1287 = vshrl.u32 %v1286, 7
    %v1288 = vadd.s32 %v1287, 1
    %1289 = vset.pattern.permute.xlu0 %v1288
    %1290 = vperm.xlu0 %1289, %v1218
    %v1291 = vpop.permute.xlu0 %1290
    %v1292 = vlaneseq
    %v1293 = vshrl.u32 %v1292, 7
    %v1294 = vadd.s32 %v1293, 1
    %1295 = vset.pattern.permute.xlu0 %v1294
    %1296 = vperm.xlu0 %1295, %v1225
    %v1297 = vpop.permute.xlu0 %1296
    %v1298 = vlaneseq
    %v1299 = vshrl.u32 %v1298, 7
    %v1300 = vadd.s32 %v1299, 1
    %1301 = vset.pattern.permute.xlu0 %v1300
    %1302 = vperm.xlu0 %1301, %v1232
    %v1303 = vpop.permute.xlu0 %1302
    %v1304 = vlaneseq
    %v1305 = vshrl.u32 %v1304, 7
    %v1306 = vadd.s32 %v1305, 1
    %1307 = vset.pattern.permute.xlu0 %v1306
    %1308 = vperm.xlu0 %1307, %v1239
    %v1309 = vpop.permute.xlu0 %1308
    %v1310 = vmul.f32 %v1291, %v615
    %v1311 = vmul.f32 %v1297, %v615
    %v1312 = vmul.f32 %v1303, %v615
    %v1313 = vmul.f32 %v1309, %v615
    %v1314 = vadd.f32 %v1282, %v1310
    %v1315 = vadd.f32 %v1283, %v1311
    %v1316 = vadd.f32 %v1284, %v1312
    %v1317 = vadd.f32 %v1285, %v1313
    %v1318 = vlaneseq
    %v1319 = vshrl.u32 %v1318, 7
    %v1320 = vadd.s32 %v1319, 2
    %1321 = vset.pattern.permute.xlu0 %v1320
    %1322 = vperm.xlu0 %1321, %v1182
    %v1323 = vpop.permute.xlu0 %1322
    %v1324 = vlaneseq
    %v1325 = vshrl.u32 %v1324, 7
    %v1326 = vadd.s32 %v1325, 2
    %1327 = vset.pattern.permute.xlu0 %v1326
    %1328 = vperm.xlu0 %1327, %v1189
    %v1329 = vpop.permute.xlu0 %1328
    %v1330 = vlaneseq
    %v1331 = vshrl.u32 %v1330, 7
    %v1332 = vadd.s32 %v1331, 2
    %1333 = vset.pattern.permute.xlu0 %v1332
    %1334 = vperm.xlu0 %1333, %v1196
    %v1335 = vpop.permute.xlu0 %1334
    %v1336 = vlaneseq
    %v1337 = vshrl.u32 %v1336, 7
    %v1338 = vadd.s32 %v1337, 2
    %1339 = vset.pattern.permute.xlu0 %v1338
    %1340 = vperm.xlu0 %1339, %v1203
    %v1341 = vpop.permute.xlu0 %1340
    %v1342 = vmul.f32 %v1323, %v648
    %v1343 = vmul.f32 %v1329, %v648
    %v1344 = vmul.f32 %v1335, %v648
    %v1345 = vmul.f32 %v1341, %v648
    %v1346 = vadd.f32 %v1314, %v1342
    %v1347 = vadd.f32 %v1315, %v1343
    %v1348 = vadd.f32 %v1316, %v1344
    %v1349 = vadd.f32 %v1317, %v1345
    %v1350 = vadd.f32 %v1346, %v658
    %v1351 = vadd.f32 %v1347, %v658
    %v1352 = vadd.f32 %v1348, %v658
    %v1353 = vadd.f32 %v1349, %v658
    %v1354 = vsel %vm664, %v1350, 0.0
    %v1355 = vrot.slane %v1354, 4
    %v1356 = vadd.f32 %v1354, %v1355
    %v1357 = vrot.slane %v1356, 2
    %v1358 = vadd.f32 %v1356, %v1357
    %v1359 = vrot.slane %v1358, 1
    %v1360 = vadd.f32 %v1358, %v1359
    %v1361 = vsel %vm664, %v1351, 0.0
    %v1362 = vrot.slane %v1361, 4
    %v1363 = vadd.f32 %v1361, %v1362
    %v1364 = vrot.slane %v1363, 2
    %v1365 = vadd.f32 %v1363, %v1364
    %v1366 = vrot.slane %v1365, 1
    %v1367 = vadd.f32 %v1365, %v1366
    %v1368 = vsel %vm664, %v1352, 0.0
    %v1369 = vrot.slane %v1368, 4
    %v1370 = vadd.f32 %v1368, %v1369
    %v1371 = vrot.slane %v1370, 2
    %v1372 = vadd.f32 %v1370, %v1371
    %v1373 = vrot.slane %v1372, 1
    %v1374 = vadd.f32 %v1372, %v1373
    %v1375 = vsel %vm664, %v1353, 0.0
    %v1376 = vrot.slane %v1375, 4
    %v1377 = vadd.f32 %v1375, %v1376
    %v1378 = vrot.slane %v1377, 2
    %v1379 = vadd.f32 %v1377, %v1378
    %v1380 = vrot.slane %v1379, 1
    %v1381 = vadd.f32 %v1379, %v1380
    %v1382 = vmul.f32 %v1360, %v699
    %v1383 = vmul.f32 %v1367, %v699
    %v1384 = vmul.f32 %v1374, %v699
    %v1385 = vmul.f32 %v1381, %v699
    %v1390 = vsel %vm713, %v1383, %v1382
    %v1391 = vsel %vm715, %v1384, %v1390
    %v1392 = vsel %vm717, %v1385, %v1391
    %v1393 = vsel %vm723, %v1392, 0
    %1395 = vmatpush.msra.mxu0 0.0
    %1396 = vmatpush.msra.mxu0 0.0
    %1397 = vmatpush.msra.mxu0 0.0
    %1398 = vmatpush.msra.mxu0 0.0
    %1399 = vmatpush.msra.mxu0 0.0
    %1400 = vmatpush.msra.mxu0 0.0
    %1401 = vmatpush.msra.mxu0 0.0
    %1402 = vmatpush.msra.mxu0 0.0
    %1403 = vmatpush.msra.mxu0 0.0
    %1404 = vmatpush.msra.mxu0 0.0
    %1405 = vmatpush.msra.mxu0 0.0
    %1406 = vmatpush.msra.mxu0 0.0
    %1407 = vmatpush.msra.mxu0 0.0
    %1408 = vmatpush.msra.mxu0 0.0
    %1409 = vmatpush.msra.mxu0 0.0
    %1410 = vmatpush.msra.mxu0 %v1393
    %1411 = vmatmul.f32.gmra.mxu0 %v721
    %v1412 = vpop.f32.mrf.mxu0
    %v1413 = vadd.f32 %v707, %v1412
    %1414 = vdwg.mxu0
    %v1415 = vsel %vm746, %v1413, -inf
    %v1416 = vrot.slane %v1415, 4
    %v1417 = vmax.f32 %v1415, %v1416
    %v1418 = vrot.slane %v1417, 2
    %v1419 = vmax.f32 %v1417, %v1418
    %v1420 = vrot.slane %v1419, 1
    %v1421 = vmax.f32 %v1419, %v1420
    %v1422 = vsub.f32 %v1413, %v1421
    %v1423 = vmul.f32 %v1422, 1.442695
    %v1424 = vpow.pop %v1423
    %v1425 = vsel %vm746, %v1424, 0.0
    %v1426 = vrot.slane %v1425, 4
    %v1427 = vadd.f32 %v1425, %v1426
    %v1428 = vrot.slane %v1427, 2
    %v1429 = vadd.f32 %v1427, %v1428
    %v1430 = vrot.slane %v1429, 1
    %v1431 = vadd.f32 %v1429, %v1430
    %v1432 = vrcp.pop %v1431
    %v1433 = vmul.f32 %v1424, %v1432
    %v1435 = vrot.slane %v1433, 1
    %v1436 = vrot.slane %v1433, 2
    %v1437 = vrot.slane %v1433, 3
    %v1438 = vperm.slane %v1433, 0
    %v1439 = vperm.slane %v1435, 0
    %v1440 = vperm.slane %v1436, 0
    %v1441 = vperm.slane %v1437, 0
    %v1446 = vmul.f32 %v1350, %v1438
    %v1447 = vmul.f32 %v1351, %v1439
    %v1448 = vmul.f32 %v1352, %v1440
    %v1449 = vmul.f32 %v1353, %v1441
    %v1450 = vsel %vm664, %v1446, 0.0
    %v1451 = vsel %vm664, %v1447, 0.0
    %v1452 = vadd.f32 %v1450, %v1451
    %v1453 = vsel %vm664, %v1448, 0.0
    %v1454 = vadd.f32 %v1452, %v1453
    %v1455 = vsel %vm664, %v1449, 0.0
    %v1456 = vadd.f32 %v1454, %v1455
    %v1457 = vmul.f32 %v1456, %v795
    %s1458 = scalar_lea.vmem [#allocation2], 6
    %v1459 = vld [vmem:[%s1458] sm:$0x3]
    %v1460 = vld [vmem:[%s1458 + $0x2] sm:$0x3]
    %v1461 = vld [vmem:[%s1458 + $0x4] sm:$0x3]
    %v1462 = vperm.slane %v1459, 0
    %v1463 = vlaneseq
    %v1464 = vshrl.u32 %v1463, 7
    %1466 = vset.pattern.permute.xlu0 %v1464
    %1467 = vperm.xlu0 %1466, %v1462
    %v1468 = vpop.permute.xlu0 %1467
    %v1469 = vperm.slane %v1460, 0
    %v1470 = vlaneseq
    %v1471 = vshrl.u32 %v1470, 7
    %1473 = vset.pattern.permute.xlu0 %v1471
    %1474 = vperm.xlu0 %1473, %v1469
    %v1475 = vpop.permute.xlu0 %1474
    %v1476 = vperm.slane %v1461, 0
    %v1477 = vlaneseq
    %v1478 = vshrl.u32 %v1477, 7
    %1480 = vset.pattern.permute.xlu0 %v1478
    %1481 = vperm.xlu0 %1480, %v1476
    %v1482 = vpop.permute.xlu0 %1481
    %v1483 = vmul.f32 %v1468, %v821
    %v1484 = vmul.f32 %v1475, %v821
    %v1485 = vmul.f32 %v1482, %v821
    %v1486 = vadd.f32 %v1483, 0.0
    %v1487 = vadd.f32 %v1484, 0.0
    %v1488 = vadd.f32 %v1485, 0.0
    %v1489 = vperm.slane %v1459, 1
    %v1490 = vlaneseq
    %v1491 = vshrl.u32 %v1490, 7
    %1493 = vset.pattern.permute.xlu0 %v1491
    %1494 = vperm.xlu0 %1493, %v1489
    %v1495 = vpop.permute.xlu0 %1494
    %v1496 = vperm.slane %v1460, 1
    %v1497 = vlaneseq
    %v1498 = vshrl.u32 %v1497, 7
    %1500 = vset.pattern.permute.xlu0 %v1498
    %1501 = vperm.xlu0 %1500, %v1496
    %v1502 = vpop.permute.xlu0 %1501
    %v1503 = vperm.slane %v1461, 1
    %v1504 = vlaneseq
    %v1505 = vshrl.u32 %v1504, 7
    %1507 = vset.pattern.permute.xlu0 %v1505
    %1508 = vperm.xlu0 %1507, %v1503
    %v1509 = vpop.permute.xlu0 %1508
    %v1510 = vmul.f32 %v1495, %v849
    %v1511 = vmul.f32 %v1502, %v849
    %v1512 = vmul.f32 %v1509, %v849
    %v1513 = vadd.f32 %v1486, %v1510
    %v1514 = vadd.f32 %v1487, %v1511
    %v1515 = vadd.f32 %v1488, %v1512
    %v1516 = vlaneseq
    %v1517 = vshrl.u32 %v1516, 7
    %v1518 = vadd.s32 %v1517, 1
    %1519 = vset.pattern.permute.xlu0 %v1518
    %1520 = vperm.xlu0 %1519, %v1462
    %v1521 = vpop.permute.xlu0 %1520
    %v1522 = vlaneseq
    %v1523 = vshrl.u32 %v1522, 7
    %v1524 = vadd.s32 %v1523, 1
    %1525 = vset.pattern.permute.xlu0 %v1524
    %1526 = vperm.xlu0 %1525, %v1469
    %v1527 = vpop.permute.xlu0 %1526
    %v1528 = vlaneseq
    %v1529 = vshrl.u32 %v1528, 7
    %v1530 = vadd.s32 %v1529, 1
    %1531 = vset.pattern.permute.xlu0 %v1530
    %1532 = vperm.xlu0 %1531, %v1476
    %v1533 = vpop.permute.xlu0 %1532
    %v1534 = vmul.f32 %v1521, %v874
    %v1535 = vmul.f32 %v1527, %v874
    %v1536 = vmul.f32 %v1533, %v874
    %v1537 = vadd.f32 %v1513, %v1534
    %v1538 = vadd.f32 %v1514, %v1535
    %v1539 = vadd.f32 %v1515, %v1536
    %v1540 = vlaneseq
    %v1541 = vshrl.u32 %v1540, 7
    %v1542 = vadd.s32 %v1541, 1
    %1543 = vset.pattern.permute.xlu0 %v1542
    %1544 = vperm.xlu0 %1543, %v1489
    %v1545 = vpop.permute.xlu0 %1544
    %v1546 = vlaneseq
    %v1547 = vshrl.u32 %v1546, 7
    %v1548 = vadd.s32 %v1547, 1
    %1549 = vset.pattern.permute.xlu0 %v1548
    %1550 = vperm.xlu0 %1549, %v1496
    %v1551 = vpop.permute.xlu0 %1550
    %v1552 = vlaneseq
    %v1553 = vshrl.u32 %v1552, 7
    %v1554 = vadd.s32 %v1553, 1
    %1555 = vset.pattern.permute.xlu0 %v1554
    %1556 = vperm.xlu0 %1555, %v1503
    %v1557 = vpop.permute.xlu0 %1556
    %v1558 = vmul.f32 %v1545, %v899
    %v1559 = vmul.f32 %v1551, %v899
    %v1560 = vmul.f32 %v1557, %v899
    %v1561 = vadd.f32 %v1537, %v1558
    %v1562 = vadd.f32 %v1538, %v1559
    %v1563 = vadd.f32 %v1539, %v1560
    %v1564 = vlaneseq
    %v1565 = vshrl.u32 %v1564, 7
    %v1566 = vadd.s32 %v1565, 2
    %1567 = vset.pattern.permute.xlu0 %v1566
    %1568 = vperm.xlu0 %1567, %v1462
    %v1569 = vpop.permute.xlu0 %1568
    %v1570 = vlaneseq
    %v1571 = vshrl.u32 %v1570, 7
    %v1572 = vadd.s32 %v1571, 2
    %1573 = vset.pattern.permute.xlu0 %v1572
    %1574 = vperm.xlu0 %1573, %v1469
    %v1575 = vpop.permute.xlu0 %1574
    %v1576 = vlaneseq
    %v1577 = vshrl.u32 %v1576, 7
    %v1578 = vadd.s32 %v1577, 2
    %1579 = vset.pattern.permute.xlu0 %v1578
    %1580 = vperm.xlu0 %1579, %v1476
    %v1581 = vpop.permute.xlu0 %1580
    %v1582 = vmul.f32 %v1569, %v924
    %v1583 = vmul.f32 %v1575, %v924
    %v1584 = vmul.f32 %v1581, %v924
    %v1585 = vadd.f32 %v1561, %v1582
    %v1586 = vadd.f32 %v1562, %v1583
    %v1587 = vadd.f32 %v1563, %v1584
    %v1588 = vadd.f32 %v1585, %v932
    %v1589 = vadd.f32 %v1586, %v932
    %v1590 = vadd.f32 %v1587, %v932
    %v1591 = vsel %vm664, %v1588, 0.0
    %v1592 = vrot.slane %v1591, 4
    %v1593 = vadd.f32 %v1591, %v1592
    %v1594 = vrot.slane %v1593, 2
    %v1595 = vadd.f32 %v1593, %v1594
    %v1596 = vrot.slane %v1595, 1
    %v1597 = vadd.f32 %v1595, %v1596
    %v1598 = vsel %vm664, %v1589, 0.0
    %v1599 = vrot.slane %v1598, 4
    %v1600 = vadd.f32 %v1598, %v1599
    %v1601 = vrot.slane %v1600, 2
    %v1602 = vadd.f32 %v1600, %v1601
    %v1603 = vrot.slane %v1602, 1
    %v1604 = vadd.f32 %v1602, %v1603
    %v1605 = vsel %vm664, %v1590, 0.0
    %v1606 = vrot.slane %v1605, 4
    %v1607 = vadd.f32 %v1605, %v1606
    %v1608 = vrot.slane %v1607, 2
    %v1609 = vadd.f32 %v1607, %v1608
    %v1610 = vrot.slane %v1609, 1
    %v1611 = vadd.f32 %v1609, %v1610
    %v1612 = vmul.f32 %v1597, %v699
    %v1613 = vmul.f32 %v1604, %v699
    %v1614 = vmul.f32 %v1611, %v699
    %v1618 = vsel %vm713, %v1613, %v1612
    %v1619 = vsel %vm715, %v1614, %v1618
    %v1620 = vsel %vm975, %v1619, 0
    %1622 = vmatpush.msra.mxu0 0.0
    %1623 = vmatpush.msra.mxu0 0.0
    %1624 = vmatpush.msra.mxu0 0.0
    %1625 = vmatpush.msra.mxu0 0.0
    %1626 = vmatpush.msra.mxu0 0.0
    %1627 = vmatpush.msra.mxu0 0.0
    %1628 = vmatpush.msra.mxu0 0.0
    %1629 = vmatpush.msra.mxu0 0.0
    %1630 = vmatpush.msra.mxu0 0.0
    %1631 = vmatpush.msra.mxu0 0.0
    %1632 = vmatpush.msra.mxu0 0.0
    %1633 = vmatpush.msra.mxu0 0.0
    %1634 = vmatpush.msra.mxu0 0.0
    %1635 = vmatpush.msra.mxu0 0.0
    %1636 = vmatpush.msra.mxu0 0.0
    %1637 = vmatpush.msra.mxu0 %v1620
    %1638 = vmatmul.f32.gmra.mxu0 %v973
    %v1639 = vpop.f32.mrf.mxu0
    %v1640 = vadd.f32 %v964, %v1639
    %1641 = vdwg.mxu0
    %v1642 = vsel %vm998, %v1640, -inf
    %v1643 = vrot.slane %v1642, 4
    %v1644 = vmax.f32 %v1642, %v1643
    %v1645 = vrot.slane %v1644, 2
    %v1646 = vmax.f32 %v1644, %v1645
    %v1647 = vrot.slane %v1646, 1
    %v1648 = vmax.f32 %v1646, %v1647
    %v1649 = vsub.f32 %v1640, %v1648
    %v1650 = vmul.f32 %v1649, 1.442695
    %v1651 = vpow.pop %v1650
    %v1652 = vsel %vm998, %v1651, 0.0
    %v1653 = vrot.slane %v1652, 4
    %v1654 = vadd.f32 %v1652, %v1653
    %v1655 = vrot.slane %v1654, 2
    %v1656 = vadd.f32 %v1654, %v1655
    %v1657 = vrot.slane %v1656, 1
    %v1658 = vadd.f32 %v1656, %v1657
    %v1659 = vrcp.pop %v1658
    %v1660 = vmul.f32 %v1651, %v1659
    %v1662 = vrot.slane %v1660, 1
    %v1663 = vrot.slane %v1660, 2
    %v1664 = vperm.slane %v1660, 0
    %v1665 = vperm.slane %v1662, 0
    %v1666 = vperm.slane %v1663, 0
    %v1670 = vmul.f32 %v1588, %v1664
    %v1671 = vmul.f32 %v1589, %v1665
    %v1672 = vmul.f32 %v1590, %v1666
    %v1673 = vsel %vm664, %v1670, 0.0
    %v1674 = vsel %vm664, %v1671, 0.0
    %v1675 = vadd.f32 %v1673, %v1674
    %v1676 = vsel %vm664, %v1672, 0.0
    %v1677 = vadd.f32 %v1675, %v1676
    %v1678 = vmul.f32 %v1677, %v1041
    %v1680 = vrot.slane %v1457, 7
    %v1683 = vrot.slane %v1678, 1
    %v1685 = vsel %vm1049, 0.0, %v1680
    %v1686 = vsel %vm1051, %v1685, %v1683
    %v1687 = vsel %vm1053, %v1683, 0.0
    %v1688 = vpack.c.bf16 %v1686, %v1686
    %v1689 = vpack.c.bf16 %v1687, %v1687
    %v1692 = vunpack.c.l.b16 %v1688
    %v1693 = vunpack.c.l.b16 %v1689
    %v1694 = vpack.c.b16 %v1693, %v1692
    %v1696 = vsel %vm1078, %v1694, 0
    %1698 = vmatpush.bf16.msra.mxu0 0
    %1699 = vmatpush.bf16.msra.mxu0 0
    %1700 = vmatpush.bf16.msra.mxu0 0
    %1701 = vmatpush.bf16.msra.mxu0 0
    %1702 = vmatpush.bf16.msra.mxu0 0
    %1703 = vmatpush.bf16.msra.mxu0 0
    %1704 = vmatpush.bf16.msra.mxu0 %v1075
    %1705 = vmatpush.bf16.msra.mxu0 %v1074
    %1706 = vmatmul.bf16.gmra.mxu0 %v1696
    %v1707 = vpop.f32.mrf.mxu0
    %v1708 = vadd.f32 0.0, %v1707
    %v1709 = vpop.f32.mrf.mxu0
    %v1710 = vadd.f32 0.0, %v1709
    %1711 = vdwg.mxu0
    %v1712 = vadd.f32 %v478, %v1708
    %v1713 = vadd.f32 %v479, %v1710
    %v1714 = vshrl.u32 %v1694, 16
    %v1716 = vshll.u32 %v1694, 16
    %v1718 = vrot.slane %v1716, 1
    %v1719 = vor.u32 %v1714, %v1718
    %v1721 = vsel %vm1078, %v1719, 0
    %1723 = vmatpush.bf16.msra.mxu0 0
    %1724 = vmatpush.bf16.msra.mxu0 0
    %1725 = vmatpush.bf16.msra.mxu0 0
    %1726 = vmatpush.bf16.msra.mxu0 0
    %1727 = vmatpush.bf16.msra.mxu0 0
    %1728 = vmatpush.bf16.msra.mxu0 0
    %1729 = vmatpush.bf16.msra.mxu0 %v1118
    %1730 = vmatpush.bf16.msra.mxu0 %v1117
    %1731 = vmatmul.bf16.gmra.mxu0 %v1721
    %v1732 = vpop.f32.mrf.mxu0
    %v1733 = vadd.f32 0.0, %v1732
    %v1734 = vpop.f32.mrf.mxu0
    %v1735 = vadd.f32 0.0, %v1734
    %1736 = vdwg.mxu0
    %v1737 = vadd.f32 %v1712, %v1733
    %v1738 = vadd.f32 %v1713, %v1735
    %v1739 = vrot.slane %v1694, 1
    %v1741 = vsel %vm1078, %v1739, 0
    %1743 = vmatpush.bf16.msra.mxu0 0
    %1744 = vmatpush.bf16.msra.mxu0 0
    %1745 = vmatpush.bf16.msra.mxu0 0
    %1746 = vmatpush.bf16.msra.mxu0 0
    %1747 = vmatpush.bf16.msra.mxu0 0
    %1748 = vmatpush.bf16.msra.mxu0 0
    %1749 = vmatpush.bf16.msra.mxu0 %v1155
    %1750 = vmatpush.bf16.msra.mxu0 %v1154
    %1751 = vmatmul.bf16.gmra.mxu0 %v1741
    %v1752 = vpop.f32.mrf.mxu0
    %v1753 = vadd.f32 0.0, %v1752
    %v1754 = vpop.f32.mrf.mxu0
    %v1755 = vadd.f32 0.0, %v1754
    %1756 = vdwg.mxu0
    %v1757 = vadd.f32 %v1737, %v1753
    %v1758 = vadd.f32 %v1738, %v1755
    %v1761 = vrot.slane %v1757, 4
    %v1762 = vrot.slane %v1758, 4
    %v1763 = vsel %vm723, %v1761, %v1762
    %v1766 = vsel %vm723, %v1176, %v1761
    %v1767 = vld [vmem:[#allocation5] sm:$0xff]
    %v1768 = vld [vmem:[#allocation5 + $0x8] sm:$0xff]
    %v1769 = vld [vmem:[#allocation5 + $0x10] sm:$0xff]
    loop: start=0, step=1, limit=2
    $region218: #{tpu_custom_call.1} parent=1 // loop_pre_header
      _
    $region219: #{tpu_custom_call.1} parent=1 // loop_header
      %s1771 = sphi 0, %s1775
      %p1772 = scmp.ge.s32.totalorder %s1771, 2
      %v1776 = vphi %v1175, %v2769
      %v1777 = vphi %v1766, %v2770
      %v1778 = vphi %v1763, %v2771
    $region220: #{tpu_custom_call.1} parent=1 // loop_header_branch
      %1774 = sbr.rel (%p1772) target = $region224
    $region221: #{tpu_custom_call.1} parent=1 // loop_body
      %v1779 = vpack.c.bf16 %v1777, %v1776
      %v1780 = vpack.c.bf16 %v1778, %v1778
      %s1781 = smul.u32 %s1771, 4
      %s1782 = smul.addr %s1781, 4
      %s1783 = scalar_lea.vmem %s29, %s1782
      %v1784 = vld [vmem:[%s1783] sm:$0xf]
      %v1785 = vld [vmem:[%s1783 + $0x4] sm:$0xf]
      %v1786 = vld [vmem:[%s1783 + $0x8] sm:$0xf]
      %v1787 = vld [vmem:[%s1783 + $0xc] sm:$0xf]
      %s1788 = scalar_lea.vmem %s31, %s1771
      %v1789 = vld [vmem:[%s1788] sm:$0x1]
      %v1791 = vperm.slane %v1789, 0
      %v1797 = vunpack.c.l.b16 %v1784
      %v1798 = vunpack.c.l.b16 %v1785
      %v1799 = vunpack.c.l.b16 %v1786
      %v1800 = vunpack.c.l.b16 %v1787
      %v1801 = vpack.c.b16 %v1798, %v1797
      %v1802 = vpack.c.b16 %v1800, %v1799
      %v1806 = vsel %vm1078, %v1779, 0
      %v1809 = vsel %vm1078, %v1780, 0
      %1811 = vmatpush.bf16.msra.mxu0 0
      %1812 = vmatpush.bf16.msra.mxu0 0
      %1813 = vmatpush.bf16.msra.mxu0 0
      %1814 = vmatpush.bf16.msra.mxu0 0
      %1815 = vmatpush.bf16.msra.mxu0 0
      %1816 = vmatpush.bf16.msra.mxu0 0
      %1817 = vmatpush.bf16.msra.mxu0 %v1802
      %1818 = vmatpush.bf16.msra.mxu0 %v1801
      %1819 = vmatmul.bf16.gmra.mxu0 %v1806
      %v1820 = vpop.f32.mrf.mxu0
      %v1821 = vadd.f32 %v1791, %v1820
      %v1822 = vpop.f32.mrf.mxu0
      %v1823 = vadd.f32 %v1791, %v1822
      %1824 = vmatmul.bf16.gmra.mxu0 %v1809
      %v1825 = vpop.f32.mrf.mxu0
      %v1826 = vadd.f32 %v1791, %v1825
      %v1827 = vpop.f32.mrf.mxu0
      %1828 = vdwg.mxu0
      %s1829 = smul.addr %s1781, 4
      %s1830 = scalar_lea.vmem %s33, %s1829
      %v1831 = vld [vmem:[%s1830] sm:$0xf]
      %v1832 = vld [vmem:[%s1830 + $0x4] sm:$0xf]
      %v1833 = vld [vmem:[%s1830 + $0x8] sm:$0xf]
      %v1834 = vld [vmem:[%s1830 + $0xc] sm:$0xf]
      %s1835 = scalar_lea.vmem [#allocation19], %s1771
      %v1836 = vld [vmem:[%s1835] sm:$0x1]
      %v1838 = vperm.slane %v1836, 0
      %v1844 = vunpack.c.l.b16 %v1831
      %v1845 = vunpack.c.l.b16 %v1832
      %v1846 = vunpack.c.l.b16 %v1833
      %v1847 = vunpack.c.l.b16 %v1834
      %v1848 = vpack.c.b16 %v1845, %v1844
      %v1849 = vpack.c.b16 %v1847, %v1846
      %1852 = vmatpush.bf16.msra.mxu0 0
      %1853 = vmatpush.bf16.msra.mxu0 0
      %1854 = vmatpush.bf16.msra.mxu0 0
      %1855 = vmatpush.bf16.msra.mxu0 0
      %1856 = vmatpush.bf16.msra.mxu0 0
      %1857 = vmatpush.bf16.msra.mxu0 0
      %1858 = vmatpush.bf16.msra.mxu0 %v1849
      %1859 = vmatpush.bf16.msra.mxu0 %v1848
      %1860 = vmatmul.bf16.gmra.mxu0 %v1806
      %v1861 = vpop.f32.mrf.mxu0
      %v1862 = vadd.f32 %v1838, %v1861
      %v1863 = vpop.f32.mrf.mxu0
      %v1864 = vadd.f32 %v1838, %v1863
      %1865 = vmatmul.bf16.gmra.mxu0 %v1809
      %v1866 = vpop.f32.mrf.mxu0
      %v1867 = vadd.f32 %v1838, %v1866
      %v1868 = vpop.f32.mrf.mxu0
      %1869 = vdwg.mxu0
      %s1870 = smul.addr %s1781, 4
      %s1871 = scalar_lea.vmem %s37, %s1870
      %v1872 = vld [vmem:[%s1871] sm:$0xf]
      %v1873 = vld [vmem:[%s1871 + $0x4] sm:$0xf]
      %v1874 = vld [vmem:[%s1871 + $0x8] sm:$0xf]
      %v1875 = vld [vmem:[%s1871 + $0xc] sm:$0xf]
      %s1876 = scalar_lea.vmem [#allocation20], %s1771
      %v1877 = vld [vmem:[%s1876] sm:$0x1]
      %v1879 = vperm.slane %v1877, 0
      %v1885 = vunpack.c.l.b16 %v1872
      %v1886 = vunpack.c.l.b16 %v1873
      %v1887 = vunpack.c.l.b16 %v1874
      %v1888 = vunpack.c.l.b16 %v1875
      %v1889 = vpack.c.b16 %v1886, %v1885
      %v1890 = vpack.c.b16 %v1888, %v1887
      %1893 = vmatpush.bf16.msra.mxu0 0
      %1894 = vmatpush.bf16.msra.mxu0 0
      %1895 = vmatpush.bf16.msra.mxu0 0
      %1896 = vmatpush.bf16.msra.mxu0 0
      %1897 = vmatpush.bf16.msra.mxu0 0
      %1898 = vmatpush.bf16.msra.mxu0 0
      %1899 = vmatpush.bf16.msra.mxu0 %v1890
      %1900 = vmatpush.bf16.msra.mxu0 %v1889
      %1901 = vmatmul.bf16.gmra.mxu0 %v1806
      %v1902 = vpop.f32.mrf.mxu0
      %v1903 = vadd.f32 %v1879, %v1902
      %v1904 = vpop.f32.mrf.mxu0
      %v1905 = vadd.f32 %v1879, %v1904
      %1906 = vmatmul.bf16.gmra.mxu0 %v1809
      %v1907 = vpop.f32.mrf.mxu0
      %v1908 = vadd.f32 %v1879, %v1907
      %v1909 = vpop.f32.mrf.mxu0
      %1910 = vdwg.mxu0
      %v1911 = vpack.c.bf16 %v1823, %v1821
      %v1912 = vpack.c.bf16 %v1826, %v1826
      %v1913 = vpack.c.bf16 %v1864, %v1862
      %v1914 = vpack.c.bf16 %v1867, %v1867
      %vm1915 = vcmask 64512
      %v1917 = vsel %vm1915, %v1911, 0
      %v1920 = vsel %vm1915, %v1912, 0
      %v1923 = vsel %vm1915, %v1913, 0
      %v1926 = vsel %vm1915, %v1914, 0
      %1928 = vmatpush.bf16.xpose.msra.mxu0 0
      %1929 = vmatpush.bf16.xpose.msra.mxu0 0
      %1930 = vmatpush.bf16.xpose.msra.mxu0 0
      %1931 = vmatpush.bf16.xpose.msra.mxu0 0
      %1932 = vmatpush.bf16.xpose.msra.mxu0 0
      %1933 = vmatpush.bf16.xpose.msra.mxu0 0
      %1934 = vmatpush.bf16.xpose.msra.mxu0 %v1926
      %1935 = vmatpush.bf16.xpose.msra.mxu0 %v1923
      %1936 = vmatmul.bf16.gmra.mxu0 %v1917
      %v1937 = vpop.f32.mrf.mxu0
      %v1938 = vadd.f32 0.0, %v1937
      %v1939 = vpop.f32.mrf.mxu0
      %v1940 = vadd.f32 0.0, %v1939
      %1941 = vmatmul.bf16.gmra.mxu0 %v1920
      %v1942 = vpop.f32.mrf.mxu0
      %v1943 = vadd.f32 0.0, %v1942
      %v1944 = vpop.f32.mrf.mxu0
      %1945 = vdwg.mxu0
      %v1946 = vmul.f32 %v1938, 0.35355338
      %v1947 = vmul.f32 %v1940, 0.35355338
      %v1948 = vmul.f32 %v1943, 0.35355338
      %v1949 = vadd.f32 %v1946, %v1767
      %v1950 = vadd.f32 %v1947, %v1768
      %v1951 = vadd.f32 %v1948, %v1769
      %vm1952 = vcmask 195584
      %v1953 = vsel %vm1952, %v1949, -inf
      %1954 = vmax.xlane.f32.xlu0 %v1953
      %v1955 = vpop.xlane.xlu0 %1954
      %v1956 = vsel %vm1952, %v1950, -inf
      %1957 = vmax.xlane.f32.xlu0 %v1956
      %v1958 = vpop.xlane.xlu0 %1957
      %v1959 = vsel %vm1952, %v1951, -inf
      %1960 = vmax.xlane.f32.xlu0 %v1959
      %v1961 = vpop.xlane.xlu0 %1960
      %v1962 = vsub.f32 %v1949, %v1955
      %v1963 = vsub.f32 %v1950, %v1958
      %v1964 = vsub.f32 %v1951, %v1961
      %v1965 = vmul.f32 %v1962, 1.442695
      %v1966 = vpow.pop %v1965
      %v1967 = vmul.f32 %v1963, 1.442695
      %v1968 = vpow.pop %v1967
      %v1969 = vmul.f32 %v1964, 1.442695
      %v1970 = vpow.pop %v1969
      %v1971 = vsel %vm1952, %v1966, 0.0
      %1972 = vadd.xlane.f32.xlu0 %v1971
      %v1973 = vpop.xlane.xlu0 %1972
      %v1974 = vsel %vm1952, %v1968, 0.0
      %1975 = vadd.xlane.f32.xlu0 %v1974
      %v1976 = vpop.xlane.xlu0 %1975
      %v1977 = vsel %vm1952, %v1970, 0.0
      %1978 = vadd.xlane.f32.xlu0 %v1977
      %v1979 = vpop.xlane.xlu0 %1978
      %v1980 = vrcp.pop %v1973
      %v1981 = vrcp.pop %v1976
      %v1982 = vrcp.pop %v1979
      %v1983 = vmul.f32 %v1966, %v1980
      %v1984 = vmul.f32 %v1968, %v1981
      %v1985 = vmul.f32 %v1970, %v1982
      %v1986 = vpack.c.bf16 %v1984, %v1983
      %v1987 = vpack.c.bf16 %v1985, %v1985
      %v1988 = vpack.c.bf16 %v1905, %v1903
      %v1989 = vpack.c.bf16 %v1908, %v1908
      %v1991 = vsel %vm1952, %v1986, 0
      %v1994 = vsel %vm1952, %v1987, 0
      %v1997 = vsel %vm723, %v1989, 0
      %1999 = vmatpush.bf16.msra.mxu0 0
      %2000 = vmatpush.bf16.msra.mxu0 0
      %2001 = vmatpush.bf16.msra.mxu0 0
      %2002 = vmatpush.bf16.msra.mxu0 0
      %2003 = vmatpush.bf16.msra.mxu0 0
      %2004 = vmatpush.bf16.msra.mxu0 0
      %2005 = vmatpush.bf16.msra.mxu0 %v1997
      %2006 = vmatpush.bf16.msra.mxu0 %v1988
      %2007 = vmatmul.bf16.gmra.mxu0 %v1991
      %v2008 = vpop.f32.mrf.mxu0
      %v2009 = vadd.f32 0.0, %v2008
      %v2010 = vpop.f32.mrf.mxu0
      %v2011 = vadd.f32 0.0, %v2010
      %2012 = vmatmul.bf16.gmra.mxu0 %v1994
      %v2013 = vpop.f32.mrf.mxu0
      %v2014 = vadd.f32 0.0, %v2013
      %v2015 = vpop.f32.mrf.mxu0
      %2016 = vdwg.mxu0
      %2019 = vrot.lane.b32.xlu0 %v1911, 120
      %v2020 = vpop.permute.xlu0 %2019
      %2021 = vrot.lane.b32.xlu0 %v1912, 120
      %v2022 = vpop.permute.xlu0 %2021
      %2025 = vrot.lane.b32.xlu0 %v1913, 120
      %v2026 = vpop.permute.xlu0 %2025
      %2027 = vrot.lane.b32.xlu0 %v1914, 120
      %v2028 = vpop.permute.xlu0 %2027
      %v2030 = vsel %vm1915, %v2020, 0
      %v2033 = vsel %vm1915, %v2022, 0
      %v2036 = vsel %vm1915, %v2026, 0
      %v2039 = vsel %vm1915, %v2028, 0
      %2041 = vmatpush.bf16.xpose.msra.mxu0 0
      %2042 = vmatpush.bf16.xpose.msra.mxu0 0
      %2043 = vmatpush.bf16.xpose.msra.mxu0 0
      %2044 = vmatpush.bf16.xpose.msra.mxu0 0
      %2045 = vmatpush.bf16.xpose.msra.mxu0 0
      %2046 = vmatpush.bf16.xpose.msra.mxu0 0
      %2047 = vmatpush.bf16.xpose.msra.mxu0 %v2039
      %2048 = vmatpush.bf16.xpose.msra.mxu0 %v2036
      %2049 = vmatmul.bf16.gmra.mxu0 %v2030
      %v2050 = vpop.f32.mrf.mxu0
      %v2051 = vadd.f32 0.0, %v2050
      %v2052 = vpop.f32.mrf.mxu0
      %v2053 = vadd.f32 0.0, %v2052
      %2054 = vmatmul.bf16.gmra.mxu0 %v2033
      %v2055 = vpop.f32.mrf.mxu0
      %v2056 = vadd.f32 0.0, %v2055
      %v2057 = vpop.f32.mrf.mxu0
      %2058 = vdwg.mxu0
      %v2059 = vmul.f32 %v2051, 0.35355338
      %v2060 = vmul.f32 %v2053, 0.35355338
      %v2061 = vmul.f32 %v2056, 0.35355338
      %v2062 = vadd.f32 %v2059, %v1767
      %v2063 = vadd.f32 %v2060, %v1768
      %v2064 = vadd.f32 %v2061, %v1769
      %v2065 = vsel %vm1952, %v2062, -inf
      %2066 = vmax.xlane.f32.xlu0 %v2065
      %v2067 = vpop.xlane.xlu0 %2066
      %v2068 = vsel %vm1952, %v2063, -inf
      %2069 = vmax.xlane.f32.xlu0 %v2068
      %v2070 = vpop.xlane.xlu0 %2069
      %v2071 = vsel %vm1952, %v2064, -inf
      %2072 = vmax.xlane.f32.xlu0 %v2071
      %v2073 = vpop.xlane.xlu0 %2072
      %v2074 = vsub.f32 %v2062, %v2067
      %v2075 = vsub.f32 %v2063, %v2070
      %v2076 = vsub.f32 %v2064, %v2073
      %v2077 = vmul.f32 %v2074, 1.442695
      %v2078 = vpow.pop %v2077
      %v2079 = vmul.f32 %v2075, 1.442695
      %v2080 = vpow.pop %v2079
      %v2081 = vmul.f32 %v2076, 1.442695
      %v2082 = vpow.pop %v2081
      %v2083 = vsel %vm1952, %v2078, 0.0
      %2084 = vadd.xlane.f32.xlu0 %v2083
      %v2085 = vpop.xlane.xlu0 %2084
      %v2086 = vsel %vm1952, %v2080, 0.0
      %2087 = vadd.xlane.f32.xlu0 %v2086
      %v2088 = vpop.xlane.xlu0 %2087
      %v2089 = vsel %vm1952, %v2082, 0.0
      %2090 = vadd.xlane.f32.xlu0 %v2089
      %v2091 = vpop.xlane.xlu0 %2090
      %v2092 = vrcp.pop %v2085
      %v2093 = vrcp.pop %v2088
      %v2094 = vrcp.pop %v2091
      %v2095 = vmul.f32 %v2078, %v2092
      %v2096 = vmul.f32 %v2080, %v2093
      %v2097 = vmul.f32 %v2082, %v2094
      %v2098 = vpack.c.bf16 %v2096, %v2095
      %v2099 = vpack.c.bf16 %v2097, %v2097
      %2102 = vrot.lane.b32.xlu0 %v1988, 120
      %v2103 = vpop.permute.xlu0 %2102
      %2104 = vrot.lane.b32.xlu0 %v1989, 120
      %v2105 = vpop.permute.xlu0 %2104
      %v2108 = vsel %vm1952, %v2098, 0
      %v2111 = vsel %vm1952, %v2099, 0
      %v2114 = vsel %vm723, %v2105, 0
      %2116 = vmatpush.bf16.msra.mxu0 0
      %2117 = vmatpush.bf16.msra.mxu0 0
      %2118 = vmatpush.bf16.msra.mxu0 0
      %2119 = vmatpush.bf16.msra.mxu0 0
      %2120 = vmatpush.bf16.msra.mxu0 0
      %2121 = vmatpush.bf16.msra.mxu0 0
      %2122 = vmatpush.bf16.msra.mxu0 %v2114
      %2123 = vmatpush.bf16.msra.mxu0 %v2103
      %2124 = vmatmul.bf16.gmra.mxu0 %v2108
      %v2125 = vpop.f32.mrf.mxu0
      %v2126 = vadd.f32 0.0, %v2125
      %v2127 = vpop.f32.mrf.mxu0
      %v2128 = vadd.f32 0.0, %v2127
      %2129 = vmatmul.bf16.gmra.mxu0 %v2111
      %v2130 = vpop.f32.mrf.mxu0
      %v2131 = vadd.f32 0.0, %v2130
      %v2132 = vpop.f32.mrf.mxu0
      %2133 = vdwg.mxu0
      %2134 = vrot.lane.b32.xlu0 %v1911, 112
      %v2135 = vpop.permute.xlu0 %2134
      %2136 = vrot.lane.b32.xlu0 %v1912, 112
      %v2137 = vpop.permute.xlu0 %2136
      %2138 = vrot.lane.b32.xlu0 %v1913, 112
      %v2139 = vpop.permute.xlu0 %2138
      %2140 = vrot.lane.b32.xlu0 %v1914, 112
      %v2141 = vpop.permute.xlu0 %2140
      %v2143 = vsel %vm1915, %v2135, 0
      %v2146 = vsel %vm1915, %v2137, 0
      %v2149 = vsel %vm1915, %v2139, 0
      %v2152 = vsel %vm1915, %v2141, 0
      %2154 = vmatpush.bf16.xpose.msra.mxu0 0
      %2155 = vmatpush.bf16.xpose.msra.mxu0 0
      %2156 = vmatpush.bf16.xpose.msra.mxu0 0
      %2157 = vmatpush.bf16.xpose.msra.mxu0 0
      %2158 = vmatpush.bf16.xpose.msra.mxu0 0
      %2159 = vmatpush.bf16.xpose.msra.mxu0 0
      %2160 = vmatpush.bf16.xpose.msra.mxu0 %v2152
      %2161 = vmatpush.bf16.xpose.msra.mxu0 %v2149
      %2162 = vmatmul.bf16.gmra.mxu0 %v2143
      %v2163 = vpop.f32.mrf.mxu0
      %v2164 = vadd.f32 0.0, %v2163
      %v2165 = vpop.f32.mrf.mxu0
      %v2166 = vadd.f32 0.0, %v2165
      %2167 = vmatmul.bf16.gmra.mxu0 %v2146
      %v2168 = vpop.f32.mrf.mxu0
      %v2169 = vadd.f32 0.0, %v2168
      %v2170 = vpop.f32.mrf.mxu0
      %2171 = vdwg.mxu0
      %v2172 = vmul.f32 %v2164, 0.35355338
      %v2173 = vmul.f32 %v2166, 0.35355338
      %v2174 = vmul.f32 %v2169, 0.35355338
      %v2175 = vadd.f32 %v2172, %v1767
      %v2176 = vadd.f32 %v2173, %v1768
      %v2177 = vadd.f32 %v2174, %v1769
      %v2178 = vsel %vm1952, %v2175, -inf
      %2179 = vmax.xlane.f32.xlu0 %v2178
      %v2180 = vpop.xlane.xlu0 %2179
      %v2181 = vsel %vm1952, %v2176, -inf
      %2182 = vmax.xlane.f32.xlu0 %v2181
      %v2183 = vpop.xlane.xlu0 %2182
      %v2184 = vsel %vm1952, %v2177, -inf
      %2185 = vmax.xlane.f32.xlu0 %v2184
      %v2186 = vpop.xlane.xlu0 %2185
      %v2187 = vsub.f32 %v2175, %v2180
      %v2188 = vsub.f32 %v2176, %v2183
      %v2189 = vsub.f32 %v2177, %v2186
      %v2190 = vmul.f32 %v2187, 1.442695
      %v2191 = vpow.pop %v2190
      %v2192 = vmul.f32 %v2188, 1.442695
      %v2193 = vpow.pop %v2192
      %v2194 = vmul.f32 %v2189, 1.442695
      %v2195 = vpow.pop %v2194
      %v2196 = vsel %vm1952, %v2191, 0.0
      %2197 = vadd.xlane.f32.xlu0 %v2196
      %v2198 = vpop.xlane.xlu0 %2197
      %v2199 = vsel %vm1952, %v2193, 0.0
      %2200 = vadd.xlane.f32.xlu0 %v2199
      %v2201 = vpop.xlane.xlu0 %2200
      %v2202 = vsel %vm1952, %v2195, 0.0
      %2203 = vadd.xlane.f32.xlu0 %v2202
      %v2204 = vpop.xlane.xlu0 %2203
      %v2205 = vrcp.pop %v2198
      %v2206 = vrcp.pop %v2201
      %v2207 = vrcp.pop %v2204
      %v2208 = vmul.f32 %v2191, %v2205
      %v2209 = vmul.f32 %v2193, %v2206
      %v2210 = vmul.f32 %v2195, %v2207
      %v2211 = vpack.c.bf16 %v2209, %v2208
      %v2212 = vpack.c.bf16 %v2210, %v2210
      %2213 = vrot.lane.b32.xlu0 %v1988, 112
      %v2214 = vpop.permute.xlu0 %2213
      %2215 = vrot.lane.b32.xlu0 %v1989, 112
      %v2216 = vpop.permute.xlu0 %2215
      %v2219 = vsel %vm1952, %v2211, 0
      %v2222 = vsel %vm1952, %v2212, 0
      %v2225 = vsel %vm723, %v2216, 0
      %2227 = vmatpush.bf16.msra.mxu0 0
      %2228 = vmatpush.bf16.msra.mxu0 0
      %2229 = vmatpush.bf16.msra.mxu0 0
      %2230 = vmatpush.bf16.msra.mxu0 0
      %2231 = vmatpush.bf16.msra.mxu0 0
      %2232 = vmatpush.bf16.msra.mxu0 0
      %2233 = vmatpush.bf16.msra.mxu0 %v2225
      %2234 = vmatpush.bf16.msra.mxu0 %v2214
      %2235 = vmatmul.bf16.gmra.mxu0 %v2219
      %v2236 = vpop.f32.mrf.mxu0
      %v2237 = vadd.f32 0.0, %v2236
      %v2238 = vpop.f32.mrf.mxu0
      %v2239 = vadd.f32 0.0, %v2238
      %2240 = vmatmul.bf16.gmra.mxu0 %v2222
      %v2241 = vpop.f32.mrf.mxu0
      %v2242 = vadd.f32 0.0, %v2241
      %v2243 = vpop.f32.mrf.mxu0
      %2244 = vdwg.mxu0
      %2245 = vrot.lane.b32.xlu0 %v1911, 104
      %v2246 = vpop.permute.xlu0 %2245
      %2247 = vrot.lane.b32.xlu0 %v1912, 104
      %v2248 = vpop.permute.xlu0 %2247
      %2249 = vrot.lane.b32.xlu0 %v1913, 104
      %v2250 = vpop.permute.xlu0 %2249
      %2251 = vrot.lane.b32.xlu0 %v1914, 104
      %v2252 = vpop.permute.xlu0 %2251
      %v2254 = vsel %vm1915, %v2246, 0
      %v2257 = vsel %vm1915, %v2248, 0
      %v2260 = vsel %vm1915, %v2250, 0
      %v2263 = vsel %vm1915, %v2252, 0
      %2265 = vmatpush.bf16.xpose.msra.mxu0 0
      %2266 = vmatpush.bf16.xpose.msra.mxu0 0
      %2267 = vmatpush.bf16.xpose.msra.mxu0 0
      %2268 = vmatpush.bf16.xpose.msra.mxu0 0
      %2269 = vmatpush.bf16.xpose.msra.mxu0 0
      %2270 = vmatpush.bf16.xpose.msra.mxu0 0
      %2271 = vmatpush.bf16.xpose.msra.mxu0 %v2263
      %2272 = vmatpush.bf16.xpose.msra.mxu0 %v2260
      %2273 = vmatmul.bf16.gmra.mxu0 %v2254
      %v2274 = vpop.f32.mrf.mxu0
      %v2275 = vadd.f32 0.0, %v2274
      %v2276 = vpop.f32.mrf.mxu0
      %v2277 = vadd.f32 0.0, %v2276
      %2278 = vmatmul.bf16.gmra.mxu0 %v2257
      %v2279 = vpop.f32.mrf.mxu0
      %v2280 = vadd.f32 0.0, %v2279
      %v2281 = vpop.f32.mrf.mxu0
      %2282 = vdwg.mxu0
      %v2283 = vmul.f32 %v2275, 0.35355338
      %v2284 = vmul.f32 %v2277, 0.35355338
      %v2285 = vmul.f32 %v2280, 0.35355338
      %v2286 = vadd.f32 %v2283, %v1767
      %v2287 = vadd.f32 %v2284, %v1768
      %v2288 = vadd.f32 %v2285, %v1769
      %v2289 = vsel %vm1952, %v2286, -inf
      %2290 = vmax.xlane.f32.xlu0 %v2289
      %v2291 = vpop.xlane.xlu0 %2290
      %v2292 = vsel %vm1952, %v2287, -inf
      %2293 = vmax.xlane.f32.xlu0 %v2292
      %v2294 = vpop.xlane.xlu0 %2293
      %v2295 = vsel %vm1952, %v2288, -inf
      %2296 = vmax.xlane.f32.xlu0 %v2295
      %v2297 = vpop.xlane.xlu0 %2296
      %v2298 = vsub.f32 %v2286, %v2291
      %v2299 = vsub.f32 %v2287, %v2294
      %v2300 = vsub.f32 %v2288, %v2297
      %v2301 = vmul.f32 %v2298, 1.442695
      %v2302 = vpow.pop %v2301
      %v2303 = vmul.f32 %v2299, 1.442695
      %v2304 = vpow.pop %v2303
      %v2305 = vmul.f32 %v2300, 1.442695
      %v2306 = vpow.pop %v2305
      %v2307 = vsel %vm1952, %v2302, 0.0
      %2308 = vadd.xlane.f32.xlu0 %v2307
      %v2309 = vpop.xlane.xlu0 %2308
      %v2310 = vsel %vm1952, %v2304, 0.0
      %2311 = vadd.xlane.f32.xlu0 %v2310
      %v2312 = vpop.xlane.xlu0 %2311
      %v2313 = vsel %vm1952, %v2306, 0.0
      %2314 = vadd.xlane.f32.xlu0 %v2313
      %v2315 = vpop.xlane.xlu0 %2314
      %v2316 = vrcp.pop %v2309
      %v2317 = vrcp.pop %v2312
      %v2318 = vrcp.pop %v2315
      %v2319 = vmul.f32 %v2302, %v2316
      %v2320 = vmul.f32 %v2304, %v2317
      %v2321 = vmul.f32 %v2306, %v2318
      %v2322 = vpack.c.bf16 %v2320, %v2319
      %v2323 = vpack.c.bf16 %v2321, %v2321
      %2324 = vrot.lane.b32.xlu0 %v1988, 104
      %v2325 = vpop.permute.xlu0 %2324
      %2326 = vrot.lane.b32.xlu0 %v1989, 104
      %v2327 = vpop.permute.xlu0 %2326
      %v2330 = vsel %vm1952, %v2322, 0
      %v2333 = vsel %vm1952, %v2323, 0
      %v2336 = vsel %vm723, %v2327, 0
      %2338 = vmatpush.bf16.msra.mxu0 0
      %2339 = vmatpush.bf16.msra.mxu0 0
      %2340 = vmatpush.bf16.msra.mxu0 0
      %2341 = vmatpush.bf16.msra.mxu0 0
      %2342 = vmatpush.bf16.msra.mxu0 0
      %2343 = vmatpush.bf16.msra.mxu0 0
      %2344 = vmatpush.bf16.msra.mxu0 %v2336
      %2345 = vmatpush.bf16.msra.mxu0 %v2325
      %2346 = vmatmul.bf16.gmra.mxu0 %v2330
      %v2347 = vpop.f32.mrf.mxu0
      %v2348 = vadd.f32 0.0, %v2347
      %v2349 = vpop.f32.mrf.mxu0
      %v2350 = vadd.f32 0.0, %v2349
      %2351 = vmatmul.bf16.gmra.mxu0 %v2333
      %v2352 = vpop.f32.mrf.mxu0
      %v2353 = vadd.f32 0.0, %v2352
      %v2354 = vpop.f32.mrf.mxu0
      %2355 = vdwg.mxu0
      %2359 = vrot.lane.b32.xlu0 %v2126, 8
      %v2360 = vpop.permute.xlu0 %2359
      %2361 = vrot.lane.b32.xlu0 %v2128, 8
      %v2362 = vpop.permute.xlu0 %2361
      %2363 = vrot.lane.b32.xlu0 %v2131, 8
      %v2364 = vpop.permute.xlu0 %2363
      %2371 = vrot.lane.b32.xlu0 %v2237, 16
      %v2372 = vpop.permute.xlu0 %2371
      %2373 = vrot.lane.b32.xlu0 %v2239, 16
      %v2374 = vpop.permute.xlu0 %2373
      %2375 = vrot.lane.b32.xlu0 %v2242, 16
      %v2376 = vpop.permute.xlu0 %2375
      %2383 = vrot.lane.b32.xlu0 %v2348, 24
      %v2384 = vpop.permute.xlu0 %2383
      %2385 = vrot.lane.b32.xlu0 %v2350, 24
      %v2386 = vpop.permute.xlu0 %2385
      %2387 = vrot.lane.b32.xlu0 %v2353, 24
      %v2388 = vpop.permute.xlu0 %2387
      %v2392 = vsel %vm1915, %v2009, %v2360
      %v2393 = vsel %vm1915, %v2011, %v2362
      %v2394 = vsel %vm1915, %v2014, %v2364
      %vm2395 = vcmask 130048
      %v2396 = vsel %vm2395, %v2392, %v2372
      %v2397 = vsel %vm2395, %v2393, %v2374
      %v2398 = vsel %vm2395, %v2394, %v2376
      %v2399 = vsel %vm1952, %v2396, %v2384
      %v2400 = vsel %vm1952, %v2397, %v2386
      %v2401 = vsel %vm1952, %v2398, %v2388
      %v2402 = vpack.c.bf16 %v2400, %v2399
      %v2403 = vpack.c.bf16 %v2401, %v2401
      %s2404 = smul.addr %s1781, 4
      %s2405 = scalar_lea.vmem [#allocation22], %s2404
      %v2406 = vld [vmem:[%s2405] sm:$0xf]
      %v2407 = vld [vmem:[%s2405 + $0x4] sm:$0xf]
      %v2408 = vld [vmem:[%s2405 + $0x8] sm:$0xf]
      %v2409 = vld [vmem:[%s2405 + $0xc] sm:$0xf]
      %s2410 = scalar_lea.vmem [#allocation23], %s1771
      %v2411 = vld [vmem:[%s2410] sm:$0x1]
      %v2413 = vperm.slane %v2411, 0
      %v2419 = vunpack.c.l.b16 %v2406
      %v2420 = vunpack.c.l.b16 %v2407
      %v2421 = vunpack.c.l.b16 %v2408
      %v2422 = vunpack.c.l.b16 %v2409
      %v2423 = vpack.c.b16 %v2420, %v2419
      %v2424 = vpack.c.b16 %v2422, %v2421
      %v2428 = vsel %vm1078, %v2402, 0
      %v2431 = vsel %vm1078, %v2403, 0
      %2433 = vmatpush.bf16.msra.mxu0 0
      %2434 = vmatpush.bf16.msra.mxu0 0
      %2435 = vmatpush.bf16.msra.mxu0 0
      %2436 = vmatpush.bf16.msra.mxu0 0
      %2437 = vmatpush.bf16.msra.mxu0 0
      %2438 = vmatpush.bf16.msra.mxu0 0
      %2439 = vmatpush.bf16.msra.mxu0 %v2424
      %2440 = vmatpush.bf16.msra.mxu0 %v2423
      %2441 = vmatmul.bf16.gmra.mxu0 %v2428
      %v2442 = vpop.f32.mrf.mxu0
      %v2443 = vadd.f32 %v2413, %v2442
      %v2444 = vpop.f32.mrf.mxu0
      %v2445 = vadd.f32 %v2413, %v2444
      %2446 = vmatmul.bf16.gmra.mxu0 %v2431
      %v2447 = vpop.f32.mrf.mxu0
      %v2448 = vadd.f32 %v2413, %v2447
      %v2449 = vpop.f32.mrf.mxu0
      %2450 = vdwg.mxu0
      %v2451 = vadd.f32 %v1776, %v2443
      %v2452 = vadd.f32 %v1777, %v2445
      %v2453 = vadd.f32 %v1778, %v2448
      %s2454 = scalar_lea.vmem [#allocation25], %s1771
      %v2455 = vld [vmem:[%s2454] sm:$0x1]
      %s2456 = scalar_lea.vmem [#allocation26], %s1771
      %v2457 = vld [vmem:[%s2456] sm:$0x1]
      %v2458 = vsel %vm1078, %v2451, 0.0
      %2459 = vadd.xlane.f32.xlu0 %v2458
      %v2460 = vpop.xlane.xlu0 %2459
      %v2461 = vsel %vm1078, %v2452, 0.0
      %2462 = vadd.xlane.f32.xlu0 %v2461
      %v2463 = vpop.xlane.xlu0 %2462
      %v2464 = vsel %vm1078, %v2453, 0.0
      %2465 = vadd.xlane.f32.xlu0 %v2464
      %v2466 = vpop.xlane.xlu0 %2465
      %v2467 = vrcp.pop 32.0
      %v2468 = vmul.f32 32.0, %v2467
      %v2469 = vsub.f32 1.0, %v2468
      %v2470 = vmul.f32 %v2467, %v2469
      %v2471 = vadd.f32 %v2467, %v2470
      %vm2472 = vweird.f32 %v2467
      %v2473 = vsel %vm2472, %v2467, %v2471
      %v2474 = vmul.f32 %v2460, %v2473
      %v2475 = vmul.f32 %v2463, %v2473
      %v2476 = vmul.f32 %v2466, %v2473
      %v2477 = vsub.f32 %v2451, %v2474
      %v2478 = vsub.f32 %v2452, %v2475
      %v2479 = vsub.f32 %v2453, %v2476
      %v2480 = vmul.f32 %v2477, %v2477
      %v2481 = vmul.f32 %v2478, %v2478
      %v2482 = vmul.f32 %v2479, %v2479
      %v2483 = vsel %vm1078, %v2480, 0.0
      %2484 = vadd.xlane.f32.xlu0 %v2483
      %v2485 = vpop.xlane.xlu0 %2484
      %v2486 = vsel %vm1078, %v2481, 0.0
      %2487 = vadd.xlane.f32.xlu0 %v2486
      %v2488 = vpop.xlane.xlu0 %2487
      %v2489 = vsel %vm1078, %v2482, 0.0
      %2490 = vadd.xlane.f32.xlu0 %v2489
      %v2491 = vpop.xlane.xlu0 %2490
      %v2492 = vmul.f32 %v2485, %v2473
      %v2493 = vmul.f32 %v2488, %v2473
      %v2494 = vmul.f32 %v2491, %v2473
      %v2495 = vadd.f32 %v2492, 1e-05
      %v2496 = vadd.f32 %v2493, 1e-05
      %v2497 = vadd.f32 %v2494, 1e-05
      %v2498 = vrsqrt.pop %v2495
      %v2499 = vmul.f32 %v2498, %v2495
      %v2500 = vmul.f32 %v2499, %v2498
      %v2501 = vmul.f32 0.5, %v2500
      %v2502 = vsub.f32 1.5, %v2501
      %v2503 = vmul.f32 %v2498, %v2502
      %vm2504 = vweird.f32 %v2495
      %vm2505 = vweird.f32 %v2498
      %vm2506 = vmor %vm2504, %vm2505
      %v2507 = vsel %vm2506, %v2498, %v2503
      %v2508 = vrsqrt.pop %v2496
      %v2509 = vmul.f32 %v2508, %v2496
      %v2510 = vmul.f32 %v2509, %v2508
      %v2511 = vmul.f32 0.5, %v2510
      %v2512 = vsub.f32 1.5, %v2511
      %v2513 = vmul.f32 %v2508, %v2512
      %vm2514 = vweird.f32 %v2496
      %vm2515 = vweird.f32 %v2508
      %vm2516 = vmor %vm2514, %vm2515
      %v2517 = vsel %vm2516, %v2508, %v2513
      %v2518 = vrsqrt.pop %v2497
      %v2519 = vmul.f32 %v2518, %v2497
      %v2520 = vmul.f32 %v2519, %v2518
      %v2521 = vmul.f32 0.5, %v2520
      %v2522 = vsub.f32 1.5, %v2521
      %v2523 = vmul.f32 %v2518, %v2522
      %vm2524 = vweird.f32 %v2497
      %vm2525 = vweird.f32 %v2518
      %vm2526 = vmor %vm2524, %vm2525
      %v2527 = vsel %vm2526, %v2518, %v2523
      %v2528 = vmul.f32 %v2477, %v2507
      %v2529 = vmul.f32 %v2478, %v2517
      %v2530 = vmul.f32 %v2479, %v2527
      %v2532 = vperm.slane %v2455, 0
      %v2534 = vmul.f32 %v2528, %v2532
      %v2535 = vmul.f32 %v2529, %v2532
      %v2536 = vmul.f32 %v2530, %v2532
      %v2538 = vperm.slane %v2457, 0
      %v2540 = vadd.f32 %v2534, %v2538
      %v2541 = vadd.f32 %v2535, %v2538
      %v2542 = vadd.f32 %v2536, %v2538
      %v2543 = vpack.c.bf16 %v2541, %v2540
      %v2544 = vpack.c.bf16 %v2542, %v2542
      %s2545 = smul.addr %s1781, 4
      %s2546 = scalar_lea.vmem [#allocation28], %s2545
      %v2547 = vld [vmem:[%s2546] sm:$0xf]
      %v2548 = vld [vmem:[%s2546 + $0x4] sm:$0xf]
      %v2549 = vld [vmem:[%s2546 + $0x8] sm:$0xf]
      %v2550 = vld [vmem:[%s2546 + $0xc] sm:$0xf]
      %s2551 = scalar_lea.vmem [#allocation29], %s1771
      %v2552 = vld [vmem:[%s2551] sm:$0x1]
      %v2554 = vperm.slane %v2552, 0
      %v2560 = vunpack.c.l.b16 %v2547
      %v2561 = vunpack.c.l.b16 %v2548
      %v2562 = vunpack.c.l.b16 %v2549
      %v2563 = vunpack.c.l.b16 %v2550
      %v2564 = vpack.c.b16 %v2561, %v2560
      %v2565 = vpack.c.b16 %v2563, %v2562
      %v2569 = vsel %vm1078, %v2543, 0
      %v2572 = vsel %vm1078, %v2544, 0
      %2574 = vmatpush.bf16.msra.mxu0 0
      %2575 = vmatpush.bf16.msra.mxu0 0
      %2576 = vmatpush.bf16.msra.mxu0 0
      %2577 = vmatpush.bf16.msra.mxu0 0
      %2578 = vmatpush.bf16.msra.mxu0 0
      %2579 = vmatpush.bf16.msra.mxu0 0
      %2580 = vmatpush.bf16.msra.mxu0 %v2565
      %2581 = vmatpush.bf16.msra.mxu0 %v2564
      %2582 = vmatmul.bf16.gmra.mxu0 %v2569
      %v2583 = vpop.f32.mrf.mxu0
      %v2584 = vadd.f32 %v2554, %v2583
      %v2585 = vpop.f32.mrf.mxu0
      %v2586 = vadd.f32 %v2554, %v2585
      %2587 = vmatmul.bf16.gmra.mxu0 %v2572
      %v2588 = vpop.f32.mrf.mxu0
      %v2589 = vadd.f32 %v2554, %v2588
      %v2590 = vpop.f32.mrf.mxu0
      %2591 = vdwg.mxu0
      %v2592 = vmax.f32 %v2584, 0.0
      %v2593 = vmax.f32 %v2586, 0.0
      %v2594 = vmax.f32 %v2589, 0.0
      %v2595 = vpack.c.bf16 %v2593, %v2592
      %v2596 = vpack.c.bf16 %v2594, %v2594
      %s2597 = smul.u32 %s1771, 16
      %s2598 = smul.addr %s2597, 4
      %s2599 = scalar_lea.vmem %s53, %s2598
      %v2600 = vld [vmem:[%s2599] sm:$0xf]
      %v2601 = vld [vmem:[%s2599 + $0x4] sm:$0xf]
      %v2602 = vld [vmem:[%s2599 + $0x8] sm:$0xf]
      %v2603 = vld [vmem:[%s2599 + $0xc] sm:$0xf]
      %v2604 = vld [vmem:[%s2599 + $0x10] sm:$0xf]
      %v2605 = vld [vmem:[%s2599 + $0x14] sm:$0xf]
      %v2606 = vld [vmem:[%s2599 + $0x18] sm:$0xf]
      %v2607 = vld [vmem:[%s2599 + $0x1c] sm:$0xf]
      %v2608 = vld [vmem:[%s2599 + $0x20] sm:$0xf]
      %v2609 = vld [vmem:[%s2599 + $0x24] sm:$0xf]
      %v2610 = vld [vmem:[%s2599 + $0x28] sm:$0xf]
      %v2611 = vld [vmem:[%s2599 + $0x2c] sm:$0xf]
      %v2612 = vld [vmem:[%s2599 + $0x30] sm:$0xf]
      %v2613 = vld [vmem:[%s2599 + $0x34] sm:$0xf]
      %v2614 = vld [vmem:[%s2599 + $0x38] sm:$0xf]
      %v2615 = vld [vmem:[%s2599 + $0x3c] sm:$0xf]
      %s2616 = scalar_lea.vmem [#allocation31], %s1771
      %v2617 = vld [vmem:[%s2616] sm:$0x1]
      %v2619 = vperm.slane %v2617, 0
      %v2637 = vunpack.c.l.b16 %v2600
      %v2638 = vunpack.c.l.b16 %v2601
      %v2639 = vunpack.c.l.b16 %v2602
      %v2640 = vunpack.c.l.b16 %v2603
      %v2641 = vunpack.c.l.b16 %v2604
      %v2642 = vunpack.c.l.b16 %v2605
      %v2643 = vunpack.c.l.b16 %v2606
      %v2644 = vunpack.c.l.b16 %v2607
      %v2645 = vunpack.c.l.b16 %v2608
      %v2646 = vunpack.c.l.b16 %v2609
      %v2647 = vunpack.c.l.b16 %v2610
      %v2648 = vunpack.c.l.b16 %v2611
      %v2649 = vunpack.c.l.b16 %v2612
      %v2650 = vunpack.c.l.b16 %v2613
      %v2651 = vunpack.c.l.b16 %v2614
      %v2652 = vunpack.c.l.b16 %v2615
      %v2653 = vpack.c.b16 %v2638, %v2637
      %v2654 = vpack.c.b16 %v2640, %v2639
      %v2655 = vpack.c.b16 %v2642, %v2641
      %v2656 = vpack.c.b16 %v2644, %v2643
      %v2657 = vpack.c.b16 %v2646, %v2645
      %v2658 = vpack.c.b16 %v2648, %v2647
      %v2659 = vpack.c.b16 %v2650, %v2649
      %v2660 = vpack.c.b16 %v2652, %v2651
      %2669 = vmatpush.bf16.msra.mxu0 %v2660
      %2670 = vmatpush.bf16.msra.mxu0 %v2659
      %2671 = vmatpush.bf16.msra.mxu0 %v2658
      %2672 = vmatpush.bf16.msra.mxu0 %v2657
      %2673 = vmatpush.bf16.msra.mxu0 %v2656
      %2674 = vmatpush.bf16.msra.mxu0 %v2655
      %2675 = vmatpush.bf16.msra.mxu0 %v2654
      %2676 = vmatpush.bf16.msra.mxu0 %v2653
      %2677 = vmatmul.bf16.gmra.mxu0 %v2595
      %v2678 = vpop.f32.mrf.mxu0
      %v2679 = vadd.f32 %v2619, %v2678
      %v2680 = vpop.f32.mrf.mxu0
      %v2681 = vadd.f32 %v2619, %v2680
      %2682 = vmatmul.bf16.gmra.mxu0 %v2596
      %v2683 = vpop.f32.mrf.mxu0
      %v2684 = vadd.f32 %v2619, %v2683
      %v2685 = vpop.f32.mrf.mxu0
      %2686 = vdwg.mxu0
      %v2687 = vadd.f32 %v2540, %v2679
      %v2688 = vadd.f32 %v2541, %v2681
      %v2689 = vadd.f32 %v2542, %v2684
      %s2690 = scalar_lea.vmem [#allocation32], %s1771
      %v2691 = vld [vmem:[%s2690] sm:$0x1]
      %s2692 = scalar_lea.vmem [#allocation34], %s1771
      %v2693 = vld [vmem:[%s2692] sm:$0x1]
      %v2694 = vsel %vm1078, %v2687, 0.0
      %2695 = vadd.xlane.f32.xlu0 %v2694
      %v2696 = vpop.xlane.xlu0 %2695
      %v2697 = vsel %vm1078, %v2688, 0.0
      %2698 = vadd.xlane.f32.xlu0 %v2697
      %v2699 = vpop.xlane.xlu0 %2698
      %v2700 = vsel %vm1078, %v2689, 0.0
      %2701 = vadd.xlane.f32.xlu0 %v2700
      %v2702 = vpop.xlane.xlu0 %2701
      %v2703 = vmul.f32 %v2696, %v2473
      %v2704 = vmul.f32 %v2699, %v2473
      %v2705 = vmul.f32 %v2702, %v2473
      %v2706 = vsub.f32 %v2687, %v2703
      %v2707 = vsub.f32 %v2688, %v2704
      %v2708 = vsub.f32 %v2689, %v2705
      %v2709 = vmul.f32 %v2706, %v2706
      %v2710 = vmul.f32 %v2707, %v2707
      %v2711 = vmul.f32 %v2708, %v2708
      %v2712 = vsel %vm1078, %v2709, 0.0
      %2713 = vadd.xlane.f32.xlu0 %v2712
      %v2714 = vpop.xlane.xlu0 %2713
      %v2715 = vsel %vm1078, %v2710, 0.0
      %2716 = vadd.xlane.f32.xlu0 %v2715
      %v2717 = vpop.xlane.xlu0 %2716
      %v2718 = vsel %vm1078, %v2711, 0.0
      %2719 = vadd.xlane.f32.xlu0 %v2718
      %v2720 = vpop.xlane.xlu0 %2719
      %v2721 = vmul.f32 %v2714, %v2473
      %v2722 = vmul.f32 %v2717, %v2473
      %v2723 = vmul.f32 %v2720, %v2473
      %v2724 = vadd.f32 %v2721, 1e-05
      %v2725 = vadd.f32 %v2722, 1e-05
      %v2726 = vadd.f32 %v2723, 1e-05
      %v2727 = vrsqrt.pop %v2724
      %v2728 = vmul.f32 %v2727, %v2724
      %v2729 = vmul.f32 %v2728, %v2727
      %v2730 = vmul.f32 0.5, %v2729
      %v2731 = vsub.f32 1.5, %v2730
      %v2732 = vmul.f32 %v2727, %v2731
      %vm2733 = vweird.f32 %v2724
      %vm2734 = vweird.f32 %v2727
      %vm2735 = vmor %vm2733, %vm2734
      %v2736 = vsel %vm2735, %v2727, %v2732
      %v2737 = vrsqrt.pop %v2725
      %v2738 = vmul.f32 %v2737, %v2725
      %v2739 = vmul.f32 %v2738, %v2737
      %v2740 = vmul.f32 0.5, %v2739
      %v2741 = vsub.f32 1.5, %v2740
      %v2742 = vmul.f32 %v2737, %v2741
      %vm2743 = vweird.f32 %v2725
      %vm2744 = vweird.f32 %v2737
      %vm2745 = vmor %vm2743, %vm2744
      %v2746 = vsel %vm2745, %v2737, %v2742
      %v2747 = vrsqrt.pop %v2726
      %v2748 = vmul.f32 %v2747, %v2726
      %v2749 = vmul.f32 %v2748, %v2747
      %v2750 = vmul.f32 0.5, %v2749
      %v2751 = vsub.f32 1.5, %v2750
      %v2752 = vmul.f32 %v2747, %v2751
      %vm2753 = vweird.f32 %v2726
      %vm2754 = vweird.f32 %v2747
      %vm2755 = vmor %vm2753, %vm2754
      %v2756 = vsel %vm2755, %v2747, %v2752
      %v2757 = vmul.f32 %v2706, %v2736
      %v2758 = vmul.f32 %v2707, %v2746
      %v2759 = vmul.f32 %v2708, %v2756
      %v2761 = vperm.slane %v2691, 0
      %v2763 = vmul.f32 %v2757, %v2761
      %v2764 = vmul.f32 %v2758, %v2761
      %v2765 = vmul.f32 %v2759, %v2761
      %v2767 = vperm.slane %v2693, 0
      %v2769 = vadd.f32 %v2763, %v2767
      %v2770 = vadd.f32 %v2764, %v2767
      %v2771 = vadd.f32 %v2765, %v2767
    $region222: #{tpu_custom_call.1} parent=1 // loop_footer
      %s1775 = sadd.s32 1, %s1771
    $region223: #{tpu_custom_call.1} parent=1 // loop_footer_branch
      %1770 = sbr.rel target = $region219
    $region224: #{tpu_custom_call.1} parent=1 // loop_exit
      _
    %v2772 = vld [vmem:[%s63] sm:$0x1]
    %v2774 = vperm.slane %v2772, 0
    %v2776 = vadd.f32 %v2774, 0.0
    %v2778 = vrot.slane %v1777, 3
    %v2780 = vsel %vm1049, %v1776, %v2778
    %v2781 = vld [vmem:[#allocation35] sm:$0xff]
    %v2782 = vld [vmem:[#allocation35 + $0x8] sm:$0xff]
    %v2783 = vld [vmem:[#allocation35 + $0x10] sm:$0xff]
    %v2784 = vld [vmem:[#allocation35 + $0x18] sm:$0xff]
    %v2786 = vsel %vm1078, %v2780, 0
    %2788 = vmatpush.msra.mxu0 0.0
    %2789 = vmatpush.msra.mxu0 0.0
    %2790 = vmatpush.msra.mxu0 0.0
    %2791 = vmatpush.msra.mxu0 0.0
    %2792 = vmatpush.msra.mxu0 0.0
    %2793 = vmatpush.msra.mxu0 0.0
    %2794 = vmatpush.msra.mxu0 0.0
    %2795 = vmatpush.msra.mxu0 0.0
    %2796 = vmatpush.msra.mxu0 0.0
    %2797 = vmatpush.msra.mxu0 0.0
    %2798 = vmatpush.msra.mxu0 0.0
    %2799 = vmatpush.msra.mxu0 0.0
    %2800 = vmatpush.msra.mxu0 %v2784
    %2801 = vmatpush.msra.mxu0 %v2783
    %2802 = vmatpush.msra.mxu0 %v2782
    %2803 = vmatpush.msra.mxu0 %v2781
    %2804 = vmatmul.f32.gmra.mxu0 %v2786
    %v2805 = vpop.f32.mrf.mxu0
    %v2806 = vadd.f32 0.0, %v2805
    %2807 = vdwg.mxu0
    %v2808 = vadd.f32 %v2776, %v2806
    %v2810 = vrot.slane %v1776, 1
    %v2812 = vrot.slane %v1777, 4
    %v2814 = vsel %vm1049, %v2810, %v2812
    %s2815 = scalar_lea.vmem [#allocation35], 32
    %v2816 = vld [vmem:[%s2815] sm:$0xff]
    %v2817 = vld [vmem:[%s2815 + $0x8] sm:$0xff]
    %v2818 = vld [vmem:[%s2815 + $0x10] sm:$0xff]
    %v2819 = vld [vmem:[%s2815 + $0x18] sm:$0xff]
    %v2821 = vsel %vm1078, %v2814, 0
    %2823 = vmatpush.msra.mxu0 0.0
    %2824 = vmatpush.msra.mxu0 0.0
    %2825 = vmatpush.msra.mxu0 0.0
    %2826 = vmatpush.msra.mxu0 0.0
    %2827 = vmatpush.msra.mxu0 0.0
    %2828 = vmatpush.msra.mxu0 0.0
    %2829 = vmatpush.msra.mxu0 0.0
    %2830 = vmatpush.msra.mxu0 0.0
    %2831 = vmatpush.msra.mxu0 0.0
    %2832 = vmatpush.msra.mxu0 0.0
    %2833 = vmatpush.msra.mxu0 0.0
    %2834 = vmatpush.msra.mxu0 0.0
    %2835 = vmatpush.msra.mxu0 %v2819
    %2836 = vmatpush.msra.mxu0 %v2818
    %2837 = vmatpush.msra.mxu0 %v2817
    %2838 = vmatpush.msra.mxu0 %v2816
    %2839 = vmatmul.f32.gmra.mxu0 %v2821
    %v2840 = vpop.f32.mrf.mxu0
    %v2841 = vadd.f32 0.0, %v2840
    %2842 = vdwg.mxu0
    %v2843 = vadd.f32 %v2808, %v2841
    %v2844 = vrot.slane %v1776, 2
    %v2846 = vrot.slane %v1777, 5
    %v2848 = vsel %vm1049, %v2844, %v2846
    %s2849 = scalar_lea.vmem [#allocation35], 64
    %v2850 = vld [vmem:[%s2849] sm:$0xff]
    %v2851 = vld [vmem:[%s2849 + $0x8] sm:$0xff]
    %v2852 = vld [vmem:[%s2849 + $0x10] sm:$0xff]
    %v2853 = vld [vmem:[%s2849 + $0x18] sm:$0xff]
    %v2855 = vsel %vm1078, %v2848, 0
    %2857 = vmatpush.msra.mxu0 0.0
    %2858 = vmatpush.msra.mxu0 0.0
    %2859 = vmatpush.msra.mxu0 0.0
    %2860 = vmatpush.msra.mxu0 0.0
    %2861 = vmatpush.msra.mxu0 0.0
    %2862 = vmatpush.msra.mxu0 0.0
    %2863 = vmatpush.msra.mxu0 0.0
    %2864 = vmatpush.msra.mxu0 0.0
    %2865 = vmatpush.msra.mxu0 0.0
    %2866 = vmatpush.msra.mxu0 0.0
    %2867 = vmatpush.msra.mxu0 0.0
    %2868 = vmatpush.msra.mxu0 0.0
    %2869 = vmatpush.msra.mxu0 %v2853
    %2870 = vmatpush.msra.mxu0 %v2852
    %2871 = vmatpush.msra.mxu0 %v2851
    %2872 = vmatpush.msra.mxu0 %v2850
    %2873 = vmatmul.f32.gmra.mxu0 %v2855
    %v2874 = vpop.f32.mrf.mxu0
    %v2875 = vadd.f32 0.0, %v2874
    %2876 = vdwg.mxu0
    %v2877 = vadd.f32 %v2843, %v2875
    %v2878 = vrot.slane %v1776, 3
    %v2880 = vrot.slane %v1777, 6
    %v2882 = vsel %vm1049, %v2878, %v2880
    %s2883 = scalar_lea.vmem [#allocation35], 96
    %v2884 = vld [vmem:[%s2883] sm:$0xff]
    %v2885 = vld [vmem:[%s2883 + $0x8] sm:$0xff]
    %v2886 = vld [vmem:[%s2883 + $0x10] sm:$0xff]
    %v2887 = vld [vmem:[%s2883 + $0x18] sm:$0xff]
    %v2889 = vsel %vm1078, %v2882, 0
    %2891 = vmatpush.msra.mxu0 0.0
    %2892 = vmatpush.msra.mxu0 0.0
    %2893 = vmatpush.msra.mxu0 0.0
    %2894 = vmatpush.msra.mxu0 0.0
    %2895 = vmatpush.msra.mxu0 0.0
    %2896 = vmatpush.msra.mxu0 0.0
    %2897 = vmatpush.msra.mxu0 0.0
    %2898 = vmatpush.msra.mxu0 0.0
    %2899 = vmatpush.msra.mxu0 0.0
    %2900 = vmatpush.msra.mxu0 0.0
    %2901 = vmatpush.msra.mxu0 0.0
    %2902 = vmatpush.msra.mxu0 0.0
    %2903 = vmatpush.msra.mxu0 %v2887
    %2904 = vmatpush.msra.mxu0 %v2886
    %2905 = vmatpush.msra.mxu0 %v2885
    %2906 = vmatpush.msra.mxu0 %v2884
    %2907 = vmatmul.f32.gmra.mxu0 %v2889
    %v2908 = vpop.f32.mrf.mxu0
    %v2909 = vadd.f32 0.0, %v2908
    %2910 = vdwg.mxu0
    %v2911 = vadd.f32 %v2877, %v2909
    %v2912 = vrot.slane %v1776, 4
    %v2915 = vrot.slane %v1778, 7
    %v2917 = vsel %vm1049, %v2912, %v2915
    %s2918 = scalar_lea.vmem [#allocation35], 128
    %v2919 = vld [vmem:[%s2918] sm:$0xff]
    %v2920 = vld [vmem:[%s2918 + $0x8] sm:$0xff]
    %v2921 = vld [vmem:[%s2918 + $0x10] sm:$0xff]
    %v2922 = vld [vmem:[%s2918 + $0x18] sm:$0xff]
    %v2924 = vsel %vm1078, %v2917, 0
    %2926 = vmatpush.msra.mxu0 0.0
    %2927 = vmatpush.msra.mxu0 0.0
    %2928 = vmatpush.msra.mxu0 0.0
    %2929 = vmatpush.msra.mxu0 0.0
    %2930 = vmatpush.msra.mxu0 0.0
    %2931 = vmatpush.msra.mxu0 0.0
    %2932 = vmatpush.msra.mxu0 0.0
    %2933 = vmatpush.msra.mxu0 0.0
    %2934 = vmatpush.msra.mxu0 0.0
    %2935 = vmatpush.msra.mxu0 0.0
    %2936 = vmatpush.msra.mxu0 0.0
    %2937 = vmatpush.msra.mxu0 0.0
    %2938 = vmatpush.msra.mxu0 %v2922
    %2939 = vmatpush.msra.mxu0 %v2921
    %2940 = vmatpush.msra.mxu0 %v2920
    %2941 = vmatpush.msra.mxu0 %v2919
    %2942 = vmatmul.f32.gmra.mxu0 %v2924
    %v2943 = vpop.f32.mrf.mxu0
    %v2944 = vadd.f32 0.0, %v2943
    %2945 = vdwg.mxu0
    %v2946 = vadd.f32 %v2911, %v2944
    %v2947 = vrot.slane %v1776, 5
    %v2949 = vsel %vm1049, %v2947, %v1778
    %s2950 = scalar_lea.vmem [#allocation35], 160
    %v2951 = vld [vmem:[%s2950] sm:$0xff]
    %v2952 = vld [vmem:[%s2950 + $0x8] sm:$0xff]
    %v2953 = vld [vmem:[%s2950 + $0x10] sm:$0xff]
    %v2954 = vld [vmem:[%s2950 + $0x18] sm:$0xff]
    %v2956 = vsel %vm1078, %v2949, 0
    %2958 = vmatpush.msra.mxu0 0.0
    %2959 = vmatpush.msra.mxu0 0.0
    %2960 = vmatpush.msra.mxu0 0.0
    %2961 = vmatpush.msra.mxu0 0.0
    %2962 = vmatpush.msra.mxu0 0.0
    %2963 = vmatpush.msra.mxu0 0.0
    %2964 = vmatpush.msra.mxu0 0.0
    %2965 = vmatpush.msra.mxu0 0.0
    %2966 = vmatpush.msra.mxu0 0.0
    %2967 = vmatpush.msra.mxu0 0.0
    %2968 = vmatpush.msra.mxu0 0.0
    %2969 = vmatpush.msra.mxu0 0.0
    %2970 = vmatpush.msra.mxu0 %v2954
    %2971 = vmatpush.msra.mxu0 %v2953
    %2972 = vmatpush.msra.mxu0 %v2952
    %2973 = vmatpush.msra.mxu0 %v2951
    %2974 = vmatmul.f32.gmra.mxu0 %v2956
    %v2975 = vpop.f32.mrf.mxu0
    %v2976 = vadd.f32 0.0, %v2975
    %2977 = vdwg.mxu0
    %v2978 = vadd.f32 %v2946, %v2976
    %v2979 = vrot.slane %v1776, 6
    %v2981 = vrot.slane %v1778, 1
    %v2983 = vsel %vm1049, %v2979, %v2981
    %s2984 = scalar_lea.vmem [#allocation35], 192
    %v2985 = vld [vmem:[%s2984] sm:$0xff]
    %v2986 = vld [vmem:[%s2984 + $0x8] sm:$0xff]
    %v2987 = vld [vmem:[%s2984 + $0x10] sm:$0xff]
    %v2988 = vld [vmem:[%s2984 + $0x18] sm:$0xff]
    %v2990 = vsel %vm1078, %v2983, 0
    %2992 = vmatpush.msra.mxu0 0.0
    %2993 = vmatpush.msra.mxu0 0.0
    %2994 = vmatpush.msra.mxu0 0.0
    %2995 = vmatpush.msra.mxu0 0.0
    %2996 = vmatpush.msra.mxu0 0.0
    %2997 = vmatpush.msra.mxu0 0.0
    %2998 = vmatpush.msra.mxu0 0.0
    %2999 = vmatpush.msra.mxu0 0.0
    %3000 = vmatpush.msra.mxu0 0.0
    %3001 = vmatpush.msra.mxu0 0.0
    %3002 = vmatpush.msra.mxu0 0.0
    %3003 = vmatpush.msra.mxu0 0.0
    %3004 = vmatpush.msra.mxu0 %v2988
    %3005 = vmatpush.msra.mxu0 %v2987
    %3006 = vmatpush.msra.mxu0 %v2986
    %3007 = vmatpush.msra.mxu0 %v2985
    %3008 = vmatmul.f32.gmra.mxu0 %v2990
    %v3009 = vpop.f32.mrf.mxu0
    %v3010 = vadd.f32 0.0, %v3009
    %3011 = vdwg.mxu0
    %v3012 = vadd.f32 %v2978, %v3010
    %v3013 = vrot.slane %v1776, 7
    %v3015 = vrot.slane %v1778, 2
    %v3017 = vsel %vm1049, %v3013, %v3015
    %s3018 = scalar_lea.vmem [#allocation35], 224
    %v3019 = vld [vmem:[%s3018] sm:$0xff]
    %v3020 = vld [vmem:[%s3018 + $0x8] sm:$0xff]
    %v3021 = vld [vmem:[%s3018 + $0x10] sm:$0xff]
    %v3022 = vld [vmem:[%s3018 + $0x18] sm:$0xff]
    %v3024 = vsel %vm1078, %v3017, 0
    %3026 = vmatpush.msra.mxu0 0.0
    %3027 = vmatpush.msra.mxu0 0.0
    %3028 = vmatpush.msra.mxu0 0.0
    %3029 = vmatpush.msra.mxu0 0.0
    %3030 = vmatpush.msra.mxu0 0.0
    %3031 = vmatpush.msra.mxu0 0.0
    %3032 = vmatpush.msra.mxu0 0.0
    %3033 = vmatpush.msra.mxu0 0.0
    %3034 = vmatpush.msra.mxu0 0.0
    %3035 = vmatpush.msra.mxu0 0.0
    %3036 = vmatpush.msra.mxu0 0.0
    %3037 = vmatpush.msra.mxu0 0.0
    %3038 = vmatpush.msra.mxu0 %v3022
    %3039 = vmatpush.msra.mxu0 %v3021
    %3040 = vmatpush.msra.mxu0 %v3020
    %3041 = vmatpush.msra.mxu0 %v3019
    %3042 = vmatmul.f32.gmra.mxu0 %v3024
    %v3043 = vpop.f32.mrf.mxu0
    %v3044 = vadd.f32 0.0, %v3043
    %3045 = vdwg.mxu0
    %v3046 = vadd.f32 %v3012, %v3044
    %v3047 = vrot.slane %v1778, 3
    %v3049 = vsel %vm1049, %v1777, %v3047
    %s3050 = scalar_lea.vmem [#allocation35], 256
    %v3051 = vld [vmem:[%s3050] sm:$0xff]
    %v3052 = vld [vmem:[%s3050 + $0x8] sm:$0xff]
    %v3053 = vld [vmem:[%s3050 + $0x10] sm:$0xff]
    %v3054 = vld [vmem:[%s3050 + $0x18] sm:$0xff]
    %v3056 = vsel %vm1078, %v3049, 0
    %3058 = vmatpush.msra.mxu0 0.0
    %3059 = vmatpush.msra.mxu0 0.0
    %3060 = vmatpush.msra.mxu0 0.0
    %3061 = vmatpush.msra.mxu0 0.0
    %3062 = vmatpush.msra.mxu0 0.0
    %3063 = vmatpush.msra.mxu0 0.0
    %3064 = vmatpush.msra.mxu0 0.0
    %3065 = vmatpush.msra.mxu0 0.0
    %3066 = vmatpush.msra.mxu0 0.0
    %3067 = vmatpush.msra.mxu0 0.0
    %3068 = vmatpush.msra.mxu0 0.0
    %3069 = vmatpush.msra.mxu0 0.0
    %3070 = vmatpush.msra.mxu0 %v3054
    %3071 = vmatpush.msra.mxu0 %v3053
    %3072 = vmatpush.msra.mxu0 %v3052
    %3073 = vmatpush.msra.mxu0 %v3051
    %3074 = vmatmul.f32.gmra.mxu0 %v3056
    %v3075 = vpop.f32.mrf.mxu0
    %v3076 = vadd.f32 0.0, %v3075
    %3077 = vdwg.mxu0
    %v3078 = vadd.f32 %v3046, %v3076
    %v3079 = vrot.slane %v1777, 1
    %v3081 = vrot.slane %v1778, 4
    %v3083 = vsel %vm1049, %v3079, %v3081
    %s3084 = scalar_lea.vmem [#allocation35], 288
    %v3085 = vld [vmem:[%s3084] sm:$0xff]
    %v3086 = vld [vmem:[%s3084 + $0x8] sm:$0xff]
    %v3087 = vld [vmem:[%s3084 + $0x10] sm:$0xff]
    %v3088 = vld [vmem:[%s3084 + $0x18] sm:$0xff]
    %v3090 = vsel %vm1078, %v3083, 0
    %3092 = vmatpush.msra.mxu0 0.0
    %3093 = vmatpush.msra.mxu0 0.0
    %3094 = vmatpush.msra.mxu0 0.0
    %3095 = vmatpush.msra.mxu0 0.0
    %3096 = vmatpush.msra.mxu0 0.0
    %3097 = vmatpush.msra.mxu0 0.0
    %3098 = vmatpush.msra.mxu0 0.0
    %3099 = vmatpush.msra.mxu0 0.0
    %3100 = vmatpush.msra.mxu0 0.0
    %3101 = vmatpush.msra.mxu0 0.0
    %3102 = vmatpush.msra.mxu0 0.0
    %3103 = vmatpush.msra.mxu0 0.0
    %3104 = vmatpush.msra.mxu0 %v3088
    %3105 = vmatpush.msra.mxu0 %v3087
    %3106 = vmatpush.msra.mxu0 %v3086
    %3107 = vmatpush.msra.mxu0 %v3085
    %3108 = vmatmul.f32.gmra.mxu0 %v3090
    %v3109 = vpop.f32.mrf.mxu0
    %v3110 = vadd.f32 0.0, %v3109
    %3111 = vdwg.mxu0
    %v3112 = vadd.f32 %v3078, %v3110
    %v3113 = vrot.slane %v1777, 2
    %v3115 = vrot.slane %v1778, 5
    %v3117 = vsel %vm1049, %v3113, %v3115
    %s3118 = scalar_lea.vmem [#allocation35], 320
    %v3119 = vld [vmem:[%s3118] sm:$0xff]
    %v3120 = vld [vmem:[%s3118 + $0x8] sm:$0xff]
    %v3121 = vld [vmem:[%s3118 + $0x10] sm:$0xff]
    %v3122 = vld [vmem:[%s3118 + $0x18] sm:$0xff]
    %v3124 = vsel %vm1078, %v3117, 0
    %3126 = vmatpush.msra.mxu0 0.0
    %3127 = vmatpush.msra.mxu0 0.0
    %3128 = vmatpush.msra.mxu0 0.0
    %3129 = vmatpush.msra.mxu0 0.0
    %3130 = vmatpush.msra.mxu0 0.0
    %3131 = vmatpush.msra.mxu0 0.0
    %3132 = vmatpush.msra.mxu0 0.0
    %3133 = vmatpush.msra.mxu0 0.0
    %3134 = vmatpush.msra.mxu0 0.0
    %3135 = vmatpush.msra.mxu0 0.0
    %3136 = vmatpush.msra.mxu0 0.0
    %3137 = vmatpush.msra.mxu0 0.0
    %3138 = vmatpush.msra.mxu0 %v3122
    %3139 = vmatpush.msra.mxu0 %v3121
    %3140 = vmatpush.msra.mxu0 %v3120
    %3141 = vmatpush.msra.mxu0 %v3119
    %3142 = vmatmul.f32.gmra.mxu0 %v3124
    %v3143 = vpop.f32.mrf.mxu0
    %v3144 = vadd.f32 0.0, %v3143
    %3145 = vdwg.mxu0
    %v3146 = vadd.f32 %v3112, %v3144
    %v3147 = vrot.slane %v1778, 6
    %v3149 = vsel %vm1049, %v2778, %v3147
    %s3150 = scalar_lea.vmem [#allocation35], 352
    %v3151 = vld [vmem:[%s3150] sm:$0xff]
    %v3152 = vld [vmem:[%s3150 + $0x8] sm:$0xff]
    %v3153 = vld [vmem:[%s3150 + $0x10] sm:$0xff]
    %v3154 = vld [vmem:[%s3150 + $0x18] sm:$0xff]
    %v3156 = vsel %vm1078, %v3149, 0
    %3158 = vmatpush.msra.mxu0 0.0
    %3159 = vmatpush.msra.mxu0 0.0
    %3160 = vmatpush.msra.mxu0 0.0
    %3161 = vmatpush.msra.mxu0 0.0
    %3162 = vmatpush.msra.mxu0 0.0
    %3163 = vmatpush.msra.mxu0 0.0
    %3164 = vmatpush.msra.mxu0 0.0
    %3165 = vmatpush.msra.mxu0 0.0
    %3166 = vmatpush.msra.mxu0 0.0
    %3167 = vmatpush.msra.mxu0 0.0
    %3168 = vmatpush.msra.mxu0 0.0
    %3169 = vmatpush.msra.mxu0 0.0
    %3170 = vmatpush.msra.mxu0 %v3154
    %3171 = vmatpush.msra.mxu0 %v3153
    %3172 = vmatpush.msra.mxu0 %v3152
    %3173 = vmatpush.msra.mxu0 %v3151
    %3174 = vmatmul.f32.gmra.mxu0 %v3156
    %v3175 = vpop.f32.mrf.mxu0
    %v3176 = vadd.f32 0.0, %v3175
    %3177 = vdwg.mxu0
    %v3178 = vadd.f32 %v3146, %v3176
    %vm3179 = vcmask 1041408
    %v3180 = vsel %vm3179, %v3178, -inf
    %3181 = vmax.xlane.f32.xlu0 %v3180
    %v3182 = vpop.xlane.xlu0 %3181
    %v3183 = vsub.f32 %v3178, %v3182
    %v3184 = vmul.f32 %v3183, 1.442695
    %v3185 = vpow.pop %v3184
    %v3186 = vsel %vm3179, %v3185, 0.0
    %3187 = vadd.xlane.f32.xlu0 %v3186
    %v3188 = vpop.xlane.xlu0 %3187
    %v3189 = vlog2.pop %v3188
    %v3190 = vmul.f32 %v3189, 0.6931472
    %v3191 = vadd.f32 %v3182, %v3190
    %v3192 = vsub.f32 %v3178, %v3191
    %3193 = vst [vmem:[#allocation37] sm:$0x3] %v3192
    // Predicated region
    $region225: #{tpu_custom_call.1} parent=1 // pred_check
      _
    $region226: #{tpu_custom_call.1} parent=1 // pred_check_branch
      %3195 = sbr.rel (0) target = $region228
    $region227: #{tpu_custom_call.1} parent=1 // pred_region
      %3197 = vsyncadd [#allocation4], 0
      %s3199 = sshll.u32 [#allocation37], 4
      %s3200 = int_to_ptr.vmem [resolvable:$true] %s3199
      %s3201 = sshll.u32 %s65, 4
      %s3202 = int_to_ptr.hbm [resolvable:$true] %s3201
      %3204 = dma.vmem_to_hbm [thread:$0]  %s3200, 32, %s3202, [#allocation4]
    $region228: #{tpu_custom_call.1} parent=1 // pred_fallthru
      _
    // Predicated region
    $region229: #{tpu_custom_call.1} parent=1 // pred_check
      _
    $region230: #{tpu_custom_call.1} parent=1 // pred_check_branch
      %3206 = sbr.rel (0) target = $region232
    $region231: #{tpu_custom_call.1} parent=1 // pred_region
      %3208 = dma.done [#allocation4], 32
    $region232: #{tpu_custom_call.1} parent=1 // pred_fallthru
      _
    %3209 = vsyncpa [#allocation3], 1
    %3210 = vsyncpa [#allocation6], 1
    %3211 = vsyncpa [#allocation9], 1
    %3212 = vsyncpa [#allocation12], 1
    %3213 = vsyncpa [#allocation15], 1
    %3214 = vsyncpa [#allocation18], 1
    %3215 = vsyncpa [#allocation21], 1
    %3216 = vsyncpa [#allocation24], 1
    %3217 = vsyncpa [#allocation27], 1
    %3218 = vsyncpa [#allocation30], 1
    %3219 = vsyncpa [#allocation33], 1
    %3220 = vsyncpa [#allocation36], 1
    %3221 = vsyncpa [#allocation4], 1

</llo_original>
